<compile_context>
chip_gen: v5e
topology: v5e:2x2
jax: 0.10.0
libtpu: 0.0.40
codegen_flags: <defaults>
</compile_context>

<pallas_src>
import jax
import jax.numpy as jnp
from jax.experimental import pallas as pl
from jax.experimental.pallas import tpu as pltpu


def _round_up(x, m):
    return ((x + m - 1) // m) * m


def _mlp_kernel(x_ref, w1_ref, wh_ref, bh_ref, w6_ref, b6_ref, o_ref):
    """One feature-major tile of the 6-layer MLP.

    x_ref : (3, T)        f32 coordinates, lane-dense along T
    w1_ref: (F, 3)        f32
    wh_ref: (4, F, F)     matmul dtype (bf16 or f32)
    bh_ref: (5, F, 1)     f32
    w6_ref: (out_dim, F)  f32 when out_dim <= 8 (VPU path), else matmul dtype
    b6_ref: (out_dim, 1)  f32
    o_ref : (out_dim, T)  f32
    """
    x = x_ref[...]
    w1 = w1_ref[...]

    # Layer 1 (K = 3): broadcast FMAs on the VPU; an MXU pass here would use
    # only 3/256 of the systolic array.
    h = (w1[:, 0:1] * x[0:1, :]
         + w1[:, 1:2] * x[1:2, :]
         + w1[:, 2:3] * x[2:3, :]
         + bh_ref[0])                                  # (F, T)
    h = jnp.maximum(h, 0.0)

    # Hidden layers 2..5: lane-dense W @ H on the MXU.  Operands in
    # wh_ref.dtype (bf16 by default), accumulation in f32; bias/ReLU in f32.
    mm_dtype = wh_ref.dtype
    for li in range(4):
        y = jnp.dot(wh_ref[li], h.astype(mm_dtype),
                    preferred_element_type=jnp.float32)
        h = jnp.maximum(y + bh_ref[li + 1], 0.0)

    # Final layer (no ReLU).  For small out_dim, compute it as out_dim
    # row-reductions on the VPU/XLU instead of an MXU matmul: MXU push count
    # is set by the number of N columns, not M, so a 4-row K=32 matmul would
    # cost about as much MXU time as a full hidden layer.
    w6 = w6_ref[...]
    b6 = b6_ref[...]
    out_dim = w6.shape[0]
    if out_dim <= 8:
        rows = []
        for r in range(out_dim):
            contrib = w6[r, :][:, None] * h            # (F, T) f32, lane bcast
            rows.append(jnp.sum(contrib, axis=0, keepdims=True))
        out = jnp.concatenate(rows, axis=0) + b6       # (out_dim, T)
    else:
        out = jnp.dot(w6, h.astype(w6.dtype),
                      preferred_element_type=jnp.float32) + b6
    o_ref[...] = out.astype(o_ref.dtype)


def neural_field_forward_fm(coords_fm, params, *, tile_n=2048,
                            matmul_dtype=jnp.bfloat16):
    """Feature-major entry point.

    coords_fm: (3, N) f32; params: list of 6 (W (out, in), b (out,)) pairs in
    PyTorch orientation.  Returns (out_dim, N) f32.  Using this layout
    end-to-end avoids the two extra HBM transpose passes the (N, 3) wrapper
    below has to add.
    """
    three, n = coords_fm.shape
    assert three == 3
    assert len(params) == 6
    feat = params[0][0].shape[0]
    out_dim = params[5][0].shape[0]

    # Pad N up to a lane-friendly multiple of the tile so every store is an
    # unmasked lane-dense vst; slice the padding off afterwards.
    tile = min(tile_n, _round_up(n, 128))
    n_pad = _round_up(n, tile)
    coords_p = coords_fm
    if n_pad != n:
        coords_p = jnp.pad(coords_fm, ((0, 0), (0, n_pad - n)))
    grid_n = n_pad // tile

    f32 = jnp.float32
    # Pack the 12 tiny weight/bias operands into 5 resident VMEM blocks.
    w1 = params[0][0].astype(f32)                                    # (F, 3)
    wh = jnp.stack([params[i][0] for i in range(1, 5)]).astype(matmul_dtype)
    bh = jnp.stack([params[i][1] for i in range(0, 5)])[..., None].astype(f32)
    w6_dtype = f32 if out_dim <= 8 else matmul_dtype                 # VPU path
    w6 = params[5][0].astype(w6_dtype)                               # (out, F)
    b6 = params[5][1][:, None].astype(f32)                           # (out, 1)

    def full(shape):
        return pl.BlockSpec(shape, lambda i, _s=shape: (0,) * len(_s))

    weight_bytes = sum(int(a.size) * a.dtype.itemsize
                       for a in (w1, wh, bh, w6, b6))
    cost = pl.CostEstimate(
        flops=2 * n_pad * (3 * feat + 4 * feat * feat + feat * out_dim),
        transcendentals=0,
        bytes_accessed=4 * n_pad * (3 + out_dim) + weight_bytes)

    out_fm = pl.pallas_call(
        _mlp_kernel,
        out_shape=jax.ShapeDtypeStruct((out_dim, n_pad), jnp.float32),
        grid_spec=pltpu.PrefetchScalarGridSpec(
            num_scalar_prefetch=0,
            grid=(grid_n,),
            in_specs=[
                pl.BlockSpec((3, tile), lambda i: (0, i)),   # coords tile
                full(w1.shape),
                full(wh.shape),
                full(bh.shape),
                full(w6.shape),
                full(b6.shape),
            ],
            out_specs=pl.BlockSpec((out_dim, tile), lambda i: (0, i)),
        ),
        compiler_params=pltpu.CompilerParams(
            dimension_semantics=("parallel",)),
        cost_estimate=cost,
    )(coords_p, w1, wh, bh, w6, b6)

    if n_pad != n:
        out_fm = out_fm[:, :n]
    return out_fm


def neural_field_forward(coords, params, *, tile_n=2048,
                         matmul_dtype=jnp.bfloat16):
    """PyTorch-layout convenience wrapper: coords (N, 3) -> (N, out_dim).

    The two transposes are pure layout plumbing (extra HBM passes); prefer
    neural_field_forward_fm when the producer/consumer can use the
    feature-major layout directly.
    """
    out_fm = neural_field_forward_fm(coords.T, params, tile_n=tile_n,
                                     matmul_dtype=matmul_dtype)
    return out_fm.T


def make_neural_field_params(key, feature_dim, out_dim):
    """Kaiming-normal (fan_in, relu gain) init; zero biases.

    Matches the PyTorch init semantics (std = sqrt(2 / fan_in), bias = 0),
    though not torch's RNG stream.  Weights stored PyTorch-style as (out, in).
    """
    dims = [3, feature_dim, feature_dim, feature_dim, feature_dim,
            feature_dim, out_dim]
    params = []
    for li in range(6):
        key, sub = jax.random.split(key)
        fan_in, fan_out = dims[li], dims[li + 1]
        std = (2.0 / fan_in) ** 0.5
        w = jax.random.normal(sub, (fan_out, fan_in), dtype=jnp.float32) * std
        b = jnp.zeros((fan_out,), dtype=jnp.float32)
        params.append((w, b))
    return params


def _reference_forward(coords, params):
    # HIGHEST precision so the f32 parity check is against a true-f32 matmul.
    h = coords
    for li, (w, b) in enumerate(params):
        h = jnp.dot(h, w.T, precision=jax.lax.Precision.HIGHEST) + b
        if li < len(params) - 1:
            h = jnp.maximum(h, 0.0)
    return h


if __name__ == "__main__":
    feature_dim = 32
    out_dim = 4
    N = 16384            # 8 tiles of 2048 columns -> even grid for v7x's 2 TCs
    tile_n = 2048

    key = jax.random.PRNGKey(0)
    key_p, key_x = jax.random.split(key)

    params = make_neural_field_params(key_p, feature_dim, out_dim)
    coords = jax.random.uniform(key_x, (N, 3), dtype=jnp.float32,
                                minval=-1.0, maxval=1.0)
    ref = _reference_forward(coords, params)

    # 1) Performance path: feature-major I/O, bf16 MXU operands (f32 accum).
    out_fm = neural_field_forward_fm(coords.T, params, tile_n=tile_n)
    out_fm = jax.block_until_ready(out_fm)
    assert out_fm.shape == (out_dim, N)
    assert jnp.allclose(out_fm.T, ref, atol=1e-1, rtol=1e-1), \
        "bf16 path mismatch vs reference"

    # 2) f32 parity path through the PyTorch-layout wrapper with a ragged N
    #    (exercises the pad-and-slice path); tight tolerance.
    n_rag = 1000
    out_f32 = neural_field_forward(coords[:n_rag], params, tile_n=tile_n,
                                   matmul_dtype=jnp.float32)
    out_f32 = jax.block_until_ready(out_f32)
    assert out_f32.shape == (n_rag, out_dim)
    assert jnp.allclose(out_f32, ref[:n_rag], atol=1e-4, rtol=1e-4), \
        "f32 parity mismatch vs reference"

    print("KERNEL_OK")
</pallas_src>

<mosaic_0001>
module attributes {stable_mosaic.version = 11 : i64} {
  func.func @_mlp_kernel(%arg0: i32, %arg1: memref<3x2048xf32, #tpu.memory_space<vmem>>, %arg2: memref<32x3xf32, #tpu.memory_space<vmem>>, %arg3: memref<4x32x32xbf16, #tpu.memory_space<vmem>>, %arg4: memref<5x32x1xf32, #tpu.memory_space<vmem>>, %arg5: memref<4x32xf32, #tpu.memory_space<vmem>>, %arg6: memref<4x1xf32, #tpu.memory_space<vmem>>, %arg7: memref<4x2048xf32, #tpu.memory_space<vmem>>) attributes {dimension_semantics = [#tpu.dimension_semantics<parallel>], iteration_bounds = array<i64: 8>, scalar_prefetch = 0 : i64, scratch_operands = 0 : i64, tpu.core_type = #tpu.core_type<tc>, window_params = [{transform_indices = @transform_0, window_bounds = array<i64: 3, 2048>}, {pipeline_mode = #tpu.pipeline_mode<synchronous>, transform_indices = @transform_1, window_bounds = array<i64: 32, 3>}, {pipeline_mode = #tpu.pipeline_mode<synchronous>, transform_indices = @transform_2, window_bounds = array<i64: 4, 32, 32>}, {pipeline_mode = #tpu.pipeline_mode<synchronous>, transform_indices = @transform_3, window_bounds = array<i64: 5, 32, 1>}, {pipeline_mode = #tpu.pipeline_mode<synchronous>, transform_indices = @transform_4, window_bounds = array<i64: 4, 32>}, {pipeline_mode = #tpu.pipeline_mode<synchronous>, transform_indices = @transform_5, window_bounds = array<i64: 4, 1>}, {transform_indices = @transform_6, window_bounds = array<i64: 4, 2048>}]} {
    %c0 = arith.constant 0 : index
    %c0_0 = arith.constant 0 : index
    %0 = vector.load %arg1[%c0, %c0_0] : memref<3x2048xf32, #tpu.memory_space<vmem>>, vector<3x2048xf32>
    %c0_1 = arith.constant 0 : index
    %c0_2 = arith.constant 0 : index
    %1 = vector.load %arg2[%c0_1, %c0_2] : memref<32x3xf32, #tpu.memory_space<vmem>>, vector<32x3xf32>
    %2 = vector.extract_strided_slice %1 {offsets = [0, 0], sizes = [32, 1], strides = [1, 1]} : vector<32x3xf32> to vector<32x1xf32>
    %3 = vector.extract_strided_slice %0 {offsets = [0, 0], sizes = [1, 2048], strides = [1, 1]} : vector<3x2048xf32> to vector<1x2048xf32>
    %4 = vector.broadcast %2 : vector<32x1xf32> to vector<32x2048xf32>
    %5 = vector.broadcast %3 : vector<1x2048xf32> to vector<32x2048xf32>
    %6 = arith.mulf %4, %5 : vector<32x2048xf32>
    %7 = vector.extract_strided_slice %1 {offsets = [0, 1], sizes = [32, 1], strides = [1, 1]} : vector<32x3xf32> to vector<32x1xf32>
    %8 = vector.extract_strided_slice %0 {offsets = [1, 0], sizes = [1, 2048], strides = [1, 1]} : vector<3x2048xf32> to vector<1x2048xf32>
    %9 = vector.broadcast %7 : vector<32x1xf32> to vector<32x2048xf32>
    %10 = vector.broadcast %8 : vector<1x2048xf32> to vector<32x2048xf32>
    %11 = arith.mulf %9, %10 : vector<32x2048xf32>
    %12 = arith.addf %6, %11 : vector<32x2048xf32>
    %13 = vector.extract_strided_slice %1 {offsets = [0, 2], sizes = [32, 1], strides = [1, 1]} : vector<32x3xf32> to vector<32x1xf32>
    %14 = vector.extract_strided_slice %0 {offsets = [2, 0], sizes = [1, 2048], strides = [1, 1]} : vector<3x2048xf32> to vector<1x2048xf32>
    %15 = vector.broadcast %13 : vector<32x1xf32> to vector<32x2048xf32>
    %16 = vector.broadcast %14 : vector<1x2048xf32> to vector<32x2048xf32>
    %17 = arith.mulf %15, %16 : vector<32x2048xf32>
    %18 = arith.addf %12, %17 : vector<32x2048xf32>
    %c0_3 = arith.constant 0 : index
    %c0_4 = arith.constant 0 : index
    %c0_5 = arith.constant 0 : index
    %19 = vector.load %arg4[%c0_3, %c0_4, %c0_5] : memref<5x32x1xf32, #tpu.memory_space<vmem>>, vector<1x32x1xf32>
    %20 = vector.shape_cast %19 : vector<1x32x1xf32> to vector<32x1xf32>
    %21 = vector.broadcast %20 : vector<32x1xf32> to vector<32x2048xf32>
    %22 = arith.addf %18, %21 : vector<32x2048xf32>
    %cst = arith.constant 0.000000e+00 : f32
    %23 = vector.broadcast %cst : f32 to vector<32x2048xf32>
    %24 = arith.maximumf %22, %23 : vector<32x2048xf32>
    %c0_6 = arith.constant 0 : index
    %c0_7 = arith.constant 0 : index
    %c0_8 = arith.constant 0 : index
    %25 = vector.load %arg3[%c0_6, %c0_7, %c0_8] : memref<4x32x32xbf16, #tpu.memory_space<vmem>>, vector<1x32x32xbf16>
    %26 = vector.shape_cast %25 : vector<1x32x32xbf16> to vector<32x32xbf16>
    %27 = arith.truncf %24 : vector<32x2048xf32> to vector<32x2048xbf16>
    %cst_9 = arith.constant dense<0.000000e+00> : vector<32x2048xf32>
    %28 = tpu.matmul %26, %27, %cst_9 {dimension_numbers = #tpu.dot_dimension_numbers<[1], [0], [0], [1], [0, 0, 1, 1], [], []>} : vector<32x32xbf16>, vector<32x2048xbf16>, vector<32x2048xf32> -> vector<32x2048xf32>
    %c1 = arith.constant 1 : index
    %c0_10 = arith.constant 0 : index
    %c0_11 = arith.constant 0 : index
    %29 = vector.load %arg4[%c1, %c0_10, %c0_11] : memref<5x32x1xf32, #tpu.memory_space<vmem>>, vector<1x32x1xf32>
    %30 = vector.shape_cast %29 : vector<1x32x1xf32> to vector<32x1xf32>
    %31 = vector.broadcast %30 : vector<32x1xf32> to vector<32x2048xf32>
    %32 = arith.addf %28, %31 : vector<32x2048xf32>
    %cst_12 = arith.constant 0.000000e+00 : f32
    %33 = vector.broadcast %cst_12 : f32 to vector<32x2048xf32>
    %34 = arith.maximumf %32, %33 : vector<32x2048xf32>
    %c1_13 = arith.constant 1 : index
    %c0_14 = arith.constant 0 : index
    %c0_15 = arith.constant 0 : index
    %35 = vector.load %arg3[%c1_13, %c0_14, %c0_15] : memref<4x32x32xbf16, #tpu.memory_space<vmem>>, vector<1x32x32xbf16>
    %36 = vector.shape_cast %35 : vector<1x32x32xbf16> to vector<32x32xbf16>
    %37 = arith.truncf %34 : vector<32x2048xf32> to vector<32x2048xbf16>
    %cst_16 = arith.constant dense<0.000000e+00> : vector<32x2048xf32>
    %38 = tpu.matmul %36, %37, %cst_16 {dimension_numbers = #tpu.dot_dimension_numbers<[1], [0], [0], [1], [0, 0, 1, 1], [], []>} : vector<32x32xbf16>, vector<32x2048xbf16>, vector<32x2048xf32> -> vector<32x2048xf32>
    %c2 = arith.constant 2 : index
    %c0_17 = arith.constant 0 : index
    %c0_18 = arith.constant 0 : index
    %39 = vector.load %arg4[%c2, %c0_17, %c0_18] : memref<5x32x1xf32, #tpu.memory_space<vmem>>, vector<1x32x1xf32>
    %40 = vector.shape_cast %39 : vector<1x32x1xf32> to vector<32x1xf32>
    %41 = vector.broadcast %40 : vector<32x1xf32> to vector<32x2048xf32>
    %42 = arith.addf %38, %41 : vector<32x2048xf32>
    %cst_19 = arith.constant 0.000000e+00 : f32
    %43 = vector.broadcast %cst_19 : f32 to vector<32x2048xf32>
    %44 = arith.maximumf %42, %43 : vector<32x2048xf32>
    %c2_20 = arith.constant 2 : index
    %c0_21 = arith.constant 0 : index
    %c0_22 = arith.constant 0 : index
    %45 = vector.load %arg3[%c2_20, %c0_21, %c0_22] : memref<4x32x32xbf16, #tpu.memory_space<vmem>>, vector<1x32x32xbf16>
    %46 = vector.shape_cast %45 : vector<1x32x32xbf16> to vector<32x32xbf16>
    %47 = arith.truncf %44 : vector<32x2048xf32> to vector<32x2048xbf16>
    %cst_23 = arith.constant dense<0.000000e+00> : vector<32x2048xf32>
    %48 = tpu.matmul %46, %47, %cst_23 {dimension_numbers = #tpu.dot_dimension_numbers<[1], [0], [0], [1], [0, 0, 1, 1], [], []>} : vector<32x32xbf16>, vector<32x2048xbf16>, vector<32x2048xf32> -> vector<32x2048xf32>
    %c3 = arith.constant 3 : index
    %c0_24 = arith.constant 0 : index
    %c0_25 = arith.constant 0 : index
    %49 = vector.load %arg4[%c3, %c0_24, %c0_25] : memref<5x32x1xf32, #tpu.memory_space<vmem>>, vector<1x32x1xf32>
    %50 = vector.shape_cast %49 : vector<1x32x1xf32> to vector<32x1xf32>
    %51 = vector.broadcast %50 : vector<32x1xf32> to vector<32x2048xf32>
    %52 = arith.addf %48, %51 : vector<32x2048xf32>
    %cst_26 = arith.constant 0.000000e+00 : f32
    %53 = vector.broadcast %cst_26 : f32 to vector<32x2048xf32>
    %54 = arith.maximumf %52, %53 : vector<32x2048xf32>
    %c3_27 = arith.constant 3 : index
    %c0_28 = arith.constant 0 : index
    %c0_29 = arith.constant 0 : index
    %55 = vector.load %arg3[%c3_27, %c0_28, %c0_29] : memref<4x32x32xbf16, #tpu.memory_space<vmem>>, vector<1x32x32xbf16>
    %56 = vector.shape_cast %55 : vector<1x32x32xbf16> to vector<32x32xbf16>
    %57 = arith.truncf %54 : vector<32x2048xf32> to vector<32x2048xbf16>
    %cst_30 = arith.constant dense<0.000000e+00> : vector<32x2048xf32>
    %58 = tpu.matmul %56, %57, %cst_30 {dimension_numbers = #tpu.dot_dimension_numbers<[1], [0], [0], [1], [0, 0, 1, 1], [], []>} : vector<32x32xbf16>, vector<32x2048xbf16>, vector<32x2048xf32> -> vector<32x2048xf32>
    %c4 = arith.constant 4 : index
    %c0_31 = arith.constant 0 : index
    %c0_32 = arith.constant 0 : index
    %59 = vector.load %arg4[%c4, %c0_31, %c0_32] : memref<5x32x1xf32, #tpu.memory_space<vmem>>, vector<1x32x1xf32>
    %60 = vector.shape_cast %59 : vector<1x32x1xf32> to vector<32x1xf32>
    %61 = vector.broadcast %60 : vector<32x1xf32> to vector<32x2048xf32>
    %62 = arith.addf %58, %61 : vector<32x2048xf32>
    %cst_33 = arith.constant 0.000000e+00 : f32
    %63 = vector.broadcast %cst_33 : f32 to vector<32x2048xf32>
    %64 = arith.maximumf %62, %63 : vector<32x2048xf32>
    %c0_34 = arith.constant 0 : index
    %c0_35 = arith.constant 0 : index
    %65 = vector.load %arg5[%c0_34, %c0_35] : memref<4x32xf32, #tpu.memory_space<vmem>>, vector<4x32xf32>
    %c0_36 = arith.constant 0 : index
    %c0_37 = arith.constant 0 : index
    %66 = vector.load %arg6[%c0_36, %c0_37] : memref<4x1xf32, #tpu.memory_space<vmem>>, vector<4x1xf32>
    %67 = vector.extract_strided_slice %65 {offsets = [0, 0], sizes = [1, 32], strides = [1, 1]} : vector<4x32xf32> to vector<1x32xf32>
    %68 = vector.shape_cast %67 : vector<1x32xf32> to vector<32xf32>
    %69 = vector.shape_cast %68 : vector<32xf32> to vector<32x1xf32>
    %70 = vector.broadcast %69 : vector<32x1xf32> to vector<32x2048xf32>
    %71 = arith.mulf %70, %64 : vector<32x2048xf32>
    %cst_38 = arith.constant dense<0.000000e+00> : vector<2048xf32>
    %72 = vector.multi_reduction <add>, %71, %cst_38 [0] : vector<32x2048xf32> to vector<2048xf32>
    %73 = vector.shape_cast %72 : vector<2048xf32> to vector<1x2048xf32>
    %74 = vector.extract_strided_slice %65 {offsets = [1, 0], sizes = [1, 32], strides = [1, 1]} : vector<4x32xf32> to vector<1x32xf32>
    %75 = vector.shape_cast %74 : vector<1x32xf32> to vector<32xf32>
    %76 = vector.shape_cast %75 : vector<32xf32> to vector<32x1xf32>
    %77 = vector.broadcast %76 : vector<32x1xf32> to vector<32x2048xf32>
    %78 = arith.mulf %77, %64 : vector<32x2048xf32>
    %cst_39 = arith.constant dense<0.000000e+00> : vector<2048xf32>
    %79 = vector.multi_reduction <add>, %78, %cst_39 [0] : vector<32x2048xf32> to vector<2048xf32>
    %80 = vector.shape_cast %79 : vector<2048xf32> to vector<1x2048xf32>
    %81 = vector.extract_strided_slice %65 {offsets = [2, 0], sizes = [1, 32], strides = [1, 1]} : vector<4x32xf32> to vector<1x32xf32>
    %82 = vector.shape_cast %81 : vector<1x32xf32> to vector<32xf32>
    %83 = vector.shape_cast %82 : vector<32xf32> to vector<32x1xf32>
    %84 = vector.broadcast %83 : vector<32x1xf32> to vector<32x2048xf32>
    %85 = arith.mulf %84, %64 : vector<32x2048xf32>
    %cst_40 = arith.constant dense<0.000000e+00> : vector<2048xf32>
    %86 = vector.multi_reduction <add>, %85, %cst_40 [0] : vector<32x2048xf32> to vector<2048xf32>
    %87 = vector.shape_cast %86 : vector<2048xf32> to vector<1x2048xf32>
    %88 = vector.extract_strided_slice %65 {offsets = [3, 0], sizes = [1, 32], strides = [1, 1]} : vector<4x32xf32> to vector<1x32xf32>
    %89 = vector.shape_cast %88 : vector<1x32xf32> to vector<32xf32>
    %90 = vector.shape_cast %89 : vector<32xf32> to vector<32x1xf32>
    %91 = vector.broadcast %90 : vector<32x1xf32> to vector<32x2048xf32>
    %92 = arith.mulf %91, %64 : vector<32x2048xf32>
    %cst_41 = arith.constant dense<0.000000e+00> : vector<2048xf32>
    %93 = vector.multi_reduction <add>, %92, %cst_41 [0] : vector<32x2048xf32> to vector<2048xf32>
    %94 = vector.shape_cast %93 : vector<2048xf32> to vector<1x2048xf32>
    %95 = tpu.concatenate %73, %80, %87, %94 in 0 : vector<1x2048xf32>, vector<1x2048xf32>, vector<1x2048xf32>, vector<1x2048xf32> -> vector<4x2048xf32>
    %96 = vector.broadcast %66 : vector<4x1xf32> to vector<4x2048xf32>
    %97 = arith.addf %95, %96 : vector<4x2048xf32>
    %c0_42 = arith.constant 0 : index
    %c0_43 = arith.constant 0 : index
    %98 = vector.load %arg7[%c0_42, %c0_43] : memref<4x2048xf32, #tpu.memory_space<vmem>>, vector<4x2048xf32>
    tpu.vector_store %arg7[%c0_42, %c0_43], %97 {strides = array<i32>} : memref<4x2048xf32, #tpu.memory_space<vmem>>, vector<4x2048xf32>,
    return
  }
  func.func @transform_0(%arg0: i32) -> (i32, i32) {
    %c0_i32 = arith.constant 0 : i32
    %c0_i32_0 = arith.constant 0 : i32
    return %c0_i32, %arg0 : i32, i32
  }
  func.func @transform_1(%arg0: i32) -> (i32, i32) {
    %c0_i32 = arith.constant 0 : i32
    %c0_i32_0 = arith.constant 0 : i32
    %c0_i32_1 = arith.constant 0 : i32
    return %c0_i32, %c0_i32_0 : i32, i32
  }
  func.func @transform_2(%arg0: i32) -> (i32, i32, i32) {
    %c0_i32 = arith.constant 0 : i32
    %c0_i32_0 = arith.constant 0 : i32
    %c0_i32_1 = arith.constant 0 : i32
    %c0_i32_2 = arith.constant 0 : i32
    return %c0_i32, %c0_i32_0, %c0_i32_1 : i32, i32, i32
  }
  func.func @transform_3(%arg0: i32) -> (i32, i32, i32) {
    %c0_i32 = arith.constant 0 : i32
    %c0_i32_0 = arith.constant 0 : i32
    %c0_i32_1 = arith.constant 0 : i32
    %c0_i32_2 = arith.constant 0 : i32
    return %c0_i32, %c0_i32_0, %c0_i32_1 : i32, i32, i32
  }
  func.func @transform_4(%arg0: i32) -> (i32, i32) {
    %c0_i32 = arith.constant 0 : i32
    %c0_i32_0 = arith.constant 0 : i32
    %c0_i32_1 = arith.constant 0 : i32
    return %c0_i32, %c0_i32_0 : i32, i32
  }
  func.func @transform_5(%arg0: i32) -> (i32, i32) {
    %c0_i32 = arith.constant 0 : i32
    %c0_i32_0 = arith.constant 0 : i32
    %c0_i32_1 = arith.constant 0 : i32
    return %c0_i32, %c0_i32_0 : i32, i32
  }
  func.func @transform_6(%arg0: i32) -> (i32, i32) {
    %c0_i32 = arith.constant 0 : i32
    %c0_i32_0 = arith.constant 0 : i32
    return %c0_i32, %arg0 : i32, i32
  }
}

</mosaic_0001>

<llo_original>
// kernel: tpu_custom_call.1
$region0: #{tpu_custom_call.1}
  #allocation0 [shape = 'u32[]', space=smem, size = 0x4, offset = 0x4, fixed_abs, tag = 'smem constant byte address 0x4 - core index']
  #allocation1 [shape = 'u32[72,128]{1,0:T(1,128)}', space=vmem, size = 0x9000, scoped, tag = 'internal scratch']
  %s0 = inlined_call_operand.hbm [shape: f32[3,16384], index: 0, kind: input, shape index: {}]
  %s1 = inlined_call_operand.vmem [shape: f32[32,3], index: 1, kind: input, shape index: {}]
  %s2 = inlined_call_operand.vmem [shape: bf16[4,32,32], index: 2, kind: input, shape index: {}]
  %s3 = inlined_call_operand.vmem [shape: f32[5,32,1], index: 3, kind: input, shape index: {}]
  %s4 = inlined_call_operand.vmem [shape: f32[4,32], index: 4, kind: input, shape index: {}]
  %s5 = inlined_call_operand.vmem [shape: f32[4,1], index: 5, kind: input, shape index: {}]
  %s6 = inlined_call_operand.hbm [shape: f32[4,16384], index: 6, kind: output, shape index: {}]
  %s7 = sld [smem:[#allocation0]]
  $region61: #{tpu_custom_call.1} parent=0
    _
  %s9 = ssub.s32 1, %s7
  %s10 = scalar_select 0, %s9, %s7
  $region1: #{tpu_custom_call.1} parent=0
    #allocation2 [shape = 'u8[65536]{0}', space=vmem, size = 0x10000, scoped, tag = 'input window, operand 0']
    #allocation3 [shape = 's32[2]{0}', space=sflag, size = 0x8, scoped, tag = 'scoped memory for tpu_custom_call.1']
    #allocation4 [shape = 's32[2]{0}', space=sflag, size = 0x8, scoped, tag = 'scoped memory for tpu_custom_call.1']
    #allocation5 [shape = 'u8[65536]{0}', space=vmem, size = 0x10000, scoped, tag = 'output window, operand 0']
    %11 = vsyncpa [#allocation3], 0
    %s12 = scalar_lea.sflag [#allocation3], 1
    %13 = vsyncpa %s12, 0
    %14 = vsyncpa [#allocation4], 0
    %s15 = scalar_lea.sflag [#allocation4], 1
    %16 = vsyncpa %s15, 0
    loop: start=0, step=1, limit=10
    $region2: #{tpu_custom_call.1} parent=1 // loop_pre_header
      _
    $region3: #{tpu_custom_call.1} parent=1 // loop_header
      %s18 = sphi 0, %s22
      %p19 = scmp.ge.s32.totalorder %s18, 10
      %s28 = sphi 0, %s30
      %s31 = sphi 0, %s28
      %s32 = sphi 0, %s31
      %s48 = sphi 0, %s32
      %s52 = sphi 0, %s52
      %s54 = sphi 0, %s52
      %s55 = sphi 0, %s54
      %s69 = sphi 0, %s55
      %s73 = sphi 0, %s73
      %s75 = sphi 0, %s73
      %s76 = sphi 0, %s75
      %s90 = sphi 0, %s76
      %s94 = sphi 0, %s94
      %s96 = sphi 0, %s94
      %s97 = sphi 0, %s96
      %s111 = sphi 0, %s97
      %s115 = sphi 0, %s115
      %s117 = sphi 0, %s115
      %s118 = sphi 0, %s117
      %s132 = sphi 0, %s118
      %s136 = sphi 0, %s136
      %s138 = sphi 0, %s136
      %s139 = sphi 0, %s138
      %s153 = sphi 0, %s139
      %s159 = sphi 0, %s161
      %s162 = sphi 0, %s159
      %s163 = sphi 0, %s162
      %s179 = sphi 0, %s163
    $region4: #{tpu_custom_call.1} parent=1 // loop_header_branch
      %21 = sbr.rel (%p19) target = $region8
    $region5: #{tpu_custom_call.1} parent=1 // loop_body
      %s23 = ssub.s32 %s18, 1
      %s24 = ssub.s32 %s18, 2
      %s25 = sadd.s32 %s18, 1
      %s26 = ssub.s32 %s18, %s25
      %p27 = scmp.eq.s32.totalorder %s26, 0
      %s29 = sadd.s32 %s28, 1
      %s30 = scalar_select %p27, %s28, %s29
      %p33 = pneg %p27
      %p34 = scmp.eq.s32.totalorder %s18, 7
      %p35 = por %p33, %p34
      %p36 = scmp.ne.s32.totalorder %s28, %s31
      %p37 = scmp.eq.s32.totalorder %s18, 0
      %p38 = por %p36, %p37
      %p39 = scmp.ne.s32.totalorder %s28, %s31
      %p40 = scmp.eq.s32.totalorder %s23, 7
      %p41 = por %p39, %p40
      %p42 = scmp.ne.s32.totalorder %s31, %s32
      %p43 = scmp.eq.s32.totalorder %s23, 0
      %p44 = por %p42, %p43
      %p45 = scmp.ne.s32.totalorder %s31, %s32
      %p46 = scmp.eq.s32.totalorder %s24, 7
      %p47 = por %p45, %p46
      %p49 = scmp.ne.s32.totalorder %s32, %s48
      %p50 = scmp.eq.s32.totalorder %s24, 0
      %p51 = por %p49, %p50
      %s53 = sadd.s32 %s52, 1
      %p56 = scmp.eq.s32.totalorder %s18, 7
      %p57 = scmp.ne.s32.totalorder %s52, %s54
      %p58 = scmp.eq.s32.totalorder %s18, 0
      %p59 = por %p57, %p58
      %p60 = scmp.ne.s32.totalorder %s52, %s54
      %p61 = scmp.eq.s32.totalorder %s23, 7
      %p62 = por %p60, %p61
      %p63 = scmp.ne.s32.totalorder %s54, %s55
      %p64 = scmp.eq.s32.totalorder %s23, 0
      %p65 = por %p63, %p64
      %p66 = scmp.ne.s32.totalorder %s54, %s55
      %p67 = scmp.eq.s32.totalorder %s24, 7
      %p68 = por %p66, %p67
      %p70 = scmp.ne.s32.totalorder %s55, %s69
      %p71 = scmp.eq.s32.totalorder %s24, 0
      %p72 = por %p70, %p71
      %s74 = sadd.s32 %s73, 1
      %p77 = scmp.eq.s32.totalorder %s18, 7
      %p78 = scmp.ne.s32.totalorder %s73, %s75
      %p79 = scmp.eq.s32.totalorder %s18, 0
      %p80 = por %p78, %p79
      %p81 = scmp.ne.s32.totalorder %s73, %s75
      %p82 = scmp.eq.s32.totalorder %s23, 7
      %p83 = por %p81, %p82
      %p84 = scmp.ne.s32.totalorder %s75, %s76
      %p85 = scmp.eq.s32.totalorder %s23, 0
      %p86 = por %p84, %p85
      %p87 = scmp.ne.s32.totalorder %s75, %s76
      %p88 = scmp.eq.s32.totalorder %s24, 7
      %p89 = por %p87, %p88
      %p91 = scmp.ne.s32.totalorder %s76, %s90
      %p92 = scmp.eq.s32.totalorder %s24, 0
      %p93 = por %p91, %p92
      %s95 = sadd.s32 %s94, 1
      %p98 = scmp.eq.s32.totalorder %s18, 7
      %p99 = scmp.ne.s32.totalorder %s94, %s96
      %p100 = scmp.eq.s32.totalorder %s18, 0
      %p101 = por %p99, %p100
      %p102 = scmp.ne.s32.totalorder %s94, %s96
      %p103 = scmp.eq.s32.totalorder %s23, 7
      %p104 = por %p102, %p103
      %p105 = scmp.ne.s32.totalorder %s96, %s97
      %p106 = scmp.eq.s32.totalorder %s23, 0
      %p107 = por %p105, %p106
      %p108 = scmp.ne.s32.totalorder %s96, %s97
      %p109 = scmp.eq.s32.totalorder %s24, 7
      %p110 = por %p108, %p109
      %p112 = scmp.ne.s32.totalorder %s97, %s111
      %p113 = scmp.eq.s32.totalorder %s24, 0
      %p114 = por %p112, %p113
      %s116 = sadd.s32 %s115, 1
      %p119 = scmp.eq.s32.totalorder %s18, 7
      %p120 = scmp.ne.s32.totalorder %s115, %s117
      %p121 = scmp.eq.s32.totalorder %s18, 0
      %p122 = por %p120, %p121
      %p123 = scmp.ne.s32.totalorder %s115, %s117
      %p124 = scmp.eq.s32.totalorder %s23, 7
      %p125 = por %p123, %p124
      %p126 = scmp.ne.s32.totalorder %s117, %s118
      %p127 = scmp.eq.s32.totalorder %s23, 0
      %p128 = por %p126, %p127
      %p129 = scmp.ne.s32.totalorder %s117, %s118
      %p130 = scmp.eq.s32.totalorder %s24, 7
      %p131 = por %p129, %p130
      %p133 = scmp.ne.s32.totalorder %s118, %s132
      %p134 = scmp.eq.s32.totalorder %s24, 0
      %p135 = por %p133, %p134
      %s137 = sadd.s32 %s136, 1
      %p140 = scmp.eq.s32.totalorder %s18, 7
      %p141 = scmp.ne.s32.totalorder %s136, %s138
      %p142 = scmp.eq.s32.totalorder %s18, 0
      %p143 = por %p141, %p142
      %p144 = scmp.ne.s32.totalorder %s136, %s138
      %p145 = scmp.eq.s32.totalorder %s23, 7
      %p146 = por %p144, %p145
      %p147 = scmp.ne.s32.totalorder %s138, %s139
      %p148 = scmp.eq.s32.totalorder %s23, 0
      %p149 = por %p147, %p148
      %p150 = scmp.ne.s32.totalorder %s138, %s139
      %p151 = scmp.eq.s32.totalorder %s24, 7
      %p152 = por %p150, %p151
      %p154 = scmp.ne.s32.totalorder %s139, %s153
      %p155 = scmp.eq.s32.totalorder %s24, 0
      %p156 = por %p154, %p155
      %s157 = ssub.s32 %s18, %s25
      %p158 = scmp.eq.s32.totalorder %s157, 0
      %s160 = sadd.s32 %s159, 1
      %s161 = scalar_select %p158, %s159, %s160
      %p164 = pneg %p158
      %p165 = scmp.eq.s32.totalorder %s18, 7
      %p166 = por %p164, %p165
      %p167 = scmp.ne.s32.totalorder %s159, %s162
      %p168 = scmp.eq.s32.totalorder %s18, 0
      %p169 = por %p167, %p168
      %p170 = scmp.ne.s32.totalorder %s159, %s162
      %p171 = scmp.eq.s32.totalorder %s23, 7
      %p172 = por %p170, %p171
      %p173 = scmp.ne.s32.totalorder %s162, %s163
      %p174 = scmp.eq.s32.totalorder %s23, 0
      %p175 = por %p173, %p174
      %p176 = scmp.ne.s32.totalorder %s162, %s163
      %p177 = scmp.eq.s32.totalorder %s24, 7
      %p178 = por %p176, %p177
      %p180 = scmp.ne.s32.totalorder %s163, %s179
      %p181 = scmp.eq.s32.totalorder %s24, 0
      %p182 = por %p180, %p181
      %p183 = scmp.le.s32.totalorder 1, %s18
      %p184 = scmp.lt.s32.totalorder %s18, 9
      %p185 = pnand %p183, %p184
      %p186 = pneg %p185
      // Predicated region
      $region9: #{tpu_custom_call.1} parent=5 // pred_check
        _
      $region10: #{tpu_custom_call.1} parent=5 // pred_check_branch
        %188 = sbr.rel (%p185) target = $region12
      $region11: #{tpu_custom_call.1} parent=5 // pred_region
        %s189 = ssub.s32 %s18, 1
        // Predicated region
        $region13: #{tpu_custom_call.1} parent=11 // pred_check
          %p190 = pneg %p65
        $region14: #{tpu_custom_call.1} parent=11 // pred_check_branch
          %192 = sbr.rel (%p190) target = $region16
        $region15: #{tpu_custom_call.1} parent=11 // pred_region
          _
        $region16: #{tpu_custom_call.1} parent=11 // pred_fallthru
          _
        // Predicated region
        $region17: #{tpu_custom_call.1} parent=11 // pred_check
          %p193 = pneg %p86
        $region18: #{tpu_custom_call.1} parent=11 // pred_check_branch
          %195 = sbr.rel (%p193) target = $region20
        $region19: #{tpu_custom_call.1} parent=11 // pred_region
          _
        $region20: #{tpu_custom_call.1} parent=11 // pred_fallthru
          _
        // Predicated region
        $region21: #{tpu_custom_call.1} parent=11 // pred_check
          %p196 = pneg %p107
        $region22: #{tpu_custom_call.1} parent=11 // pred_check_branch
          %198 = sbr.rel (%p196) target = $region24
        $region23: #{tpu_custom_call.1} parent=11 // pred_region
          _
        $region24: #{tpu_custom_call.1} parent=11 // pred_fallthru
          _
        // Predicated region
        $region25: #{tpu_custom_call.1} parent=11 // pred_check
          %p199 = pneg %p128
        $region26: #{tpu_custom_call.1} parent=11 // pred_check_branch
          %201 = sbr.rel (%p199) target = $region28
        $region27: #{tpu_custom_call.1} parent=11 // pred_region
          _
        $region28: #{tpu_custom_call.1} parent=11 // pred_fallthru
          _
        // Predicated region
        $region29: #{tpu_custom_call.1} parent=11 // pred_check
          %p202 = pneg %p149
        $region30: #{tpu_custom_call.1} parent=11 // pred_check_branch
          %204 = sbr.rel (%p202) target = $region32
        $region31: #{tpu_custom_call.1} parent=11 // pred_region
          _
        $region32: #{tpu_custom_call.1} parent=11 // pred_fallthru
          _
      $region12: #{tpu_custom_call.1} parent=5 // pred_fallthru
        _
      %p205 = scmp.lt.s32.totalorder %s18, 8
      // Predicated region
      $region33: #{tpu_custom_call.1} parent=5 // pred_check
        %p206 = pneg %p205
      $region34: #{tpu_custom_call.1} parent=5 // pred_check_branch
        %208 = sbr.rel (%p206) target = $region36
      $region35: #{tpu_custom_call.1} parent=5 // pred_region
        // Predicated region
        $region37: #{tpu_custom_call.1} parent=35 // pred_check
          %p209 = pneg %p38
        $region38: #{tpu_custom_call.1} parent=35 // pred_check_branch
          %211 = sbr.rel (%p209) target = $region40
        $region39: #{tpu_custom_call.1} parent=35 // pred_region
          %s212 = sand.u32 %s28, 1
          %s213 = scalar_lea.sflag [#allocation3], %s212
          %s214 = sand.u32 %s28, 1
          %s215 = smul.addr %s214, 64
          %s216 = scalar_lea.vmem [#allocation2], %s215
          %s217 = smul.u32 16, %s18
          %219 = vsyncadd %s213, 0
          %s220 = smul.addr %s217, 4
          %s221 = scalar_lea.hbm %s0, %s220
          %s223 = sshll.u32 %s221, 4
          %s224 = int_to_ptr.hbm [resolvable:$true] %s223
          %s225 = sshll.u32 %s216, 4
          %s226 = int_to_ptr.vmem [resolvable:$true] %s225
          %228 = dma.hbm_to_vmem [thread:$0]  %s224, 1024, %s226, %s213
        $region40: #{tpu_custom_call.1} parent=35 // pred_fallthru
          _
      $region36: #{tpu_custom_call.1} parent=5 // pred_fallthru
        _
      %p229 = scmp.le.s32.totalorder 1, %s18
      %p230 = scmp.lt.s32.totalorder %s18, 9
      %p231 = pnand %p229, %p230
      %p232 = pneg %p231
      // Predicated region
      $region41: #{tpu_custom_call.1} parent=5 // pred_check
        _
      $region42: #{tpu_custom_call.1} parent=5 // pred_check_branch
        %234 = sbr.rel (%p231) target = $region44
      $region43: #{tpu_custom_call.1} parent=5 // pred_region
        %s235 = ssub.s32 %s18, 1
        %s236 = sand.u32 %s31, 1
        %s237 = scalar_lea.sflag [#allocation3], %s236
        %s238 = sand.u32 %s31, 1
        %s239 = smul.addr %s238, 64
        %s240 = scalar_lea.vmem [#allocation2], %s239
        // Predicated region
        $region45: #{tpu_custom_call.1} parent=43 // pred_check
          %p241 = pneg %p44
        $region46: #{tpu_custom_call.1} parent=43 // pred_check_branch
          %243 = sbr.rel (%p241) target = $region48
        $region47: #{tpu_custom_call.1} parent=43 // pred_region
          %245 = dma.done %s237, 1024
        $region48: #{tpu_custom_call.1} parent=43 // pred_fallthru
          _
        %s246 = sand.u32 %s31, 1
        %s247 = scalar_lea.sflag [#allocation3], %s246
        %s248 = sand.u32 %s31, 1
        %s249 = smul.addr %s248, 64
        %s250 = scalar_lea.vmem [#allocation2], %s249
        %p251 = pneg %p44
        %p252 = pneg %p41
        %p253 = pneg %p65
        %p254 = pneg %p62
        %p255 = pneg %p86
        %p256 = pneg %p83
        %p257 = pneg %p107
        %p258 = pneg %p104
        %p259 = pneg %p128
        %p260 = pneg %p125
        %p261 = pneg %p149
        %p262 = pneg %p146
        %p263 = pneg %p175
        %p264 = pneg %p172
        %s265 = sand.u32 %s162, 1
        %s266 = scalar_lea.sflag [#allocation4], %s265
        %s267 = sand.u32 %s162, 1
        %s268 = smul.addr %s267, 64
        %s269 = scalar_lea.vmem [#allocation5], %s268
        %s270 = smul.u32 16, %s23
        %s271 = smul.u32 16, %s23
        %v273 = vld [vmem:[%s240] sm:$0x77]
        %v274 = vld [vmem:[%s240 + $0x8] sm:$0x77]
        %v275 = vld [vmem:[%s240 + $0x10] sm:$0x77]
        %v276 = vld [vmem:[%s240 + $0x18] sm:$0x77]
        %v277 = vld [vmem:[%s240 + $0x20] sm:$0x77]
        %v278 = vld [vmem:[%s240 + $0x28] sm:$0x77]
        %v279 = vld [vmem:[%s240 + $0x30] sm:$0x77]
        %v280 = vld [vmem:[%s240 + $0x38] sm:$0x77]
        %v281 = vld [vmem:[%s1] sm:$0xff]
        %v282 = vld [vmem:[%s1 + $0x8] sm:$0xff]
        %v283 = vld [vmem:[%s1 + $0x10] sm:$0xff]
        %v284 = vld [vmem:[%s1 + $0x18] sm:$0xff]
        %286 = vset.pattern.permute.xlu0 0
        %287 = vperm.xlu0 %286, %v281
        %v288 = vpop.permute.xlu0 %287
        %291 = vset.pattern.permute.xlu0 0
        %292 = vperm.xlu0 %291, %v282
        %v293 = vpop.permute.xlu0 %292
        %296 = vset.pattern.permute.xlu0 0
        %297 = vperm.xlu0 %296, %v283
        %v298 = vpop.permute.xlu0 %297
        %301 = vset.pattern.permute.xlu0 0
        %302 = vperm.xlu0 %301, %v284
        %v303 = vpop.permute.xlu0 %302
        %v313 = vperm.slane %v273, 0
        %v314 = vperm.slane %v273, 4
        %v315 = vperm.slane %v274, 0
        %v316 = vperm.slane %v274, 4
        %v317 = vperm.slane %v275, 0
        %v318 = vperm.slane %v275, 4
        %v319 = vperm.slane %v276, 0
        %v320 = vperm.slane %v276, 4
        %v321 = vperm.slane %v277, 0
        %v322 = vperm.slane %v277, 4
        %v323 = vperm.slane %v278, 0
        %v324 = vperm.slane %v278, 4
        %v325 = vperm.slane %v279, 0
        %v326 = vperm.slane %v279, 4
        %v327 = vperm.slane %v280, 0
        %v328 = vperm.slane %v280, 4
        %v345 = vperm.slane %v313, 0
        %v346 = vperm.slane %v314, 0
        %v347 = vperm.slane %v315, 0
        %v348 = vperm.slane %v316, 0
        %v349 = vperm.slane %v317, 0
        %v350 = vperm.slane %v318, 0
        %v351 = vperm.slane %v319, 0
        %v352 = vperm.slane %v320, 0
        %v353 = vperm.slane %v321, 0
        %v354 = vperm.slane %v322, 0
        %v355 = vperm.slane %v323, 0
        %v356 = vperm.slane %v324, 0
        %v357 = vperm.slane %v325, 0
        %v358 = vperm.slane %v326, 0
        %v359 = vperm.slane %v327, 0
        %v360 = vperm.slane %v328, 0
        %v361 = vmul.f32 %v288, %v345
        %v362 = vmul.f32 %v288, %v346
        %v363 = vmul.f32 %v288, %v347
        %v364 = vmul.f32 %v288, %v348
        %v365 = vmul.f32 %v288, %v349
        %v366 = vmul.f32 %v288, %v350
        %v367 = vmul.f32 %v288, %v351
        %v368 = vmul.f32 %v288, %v352
        %v369 = vmul.f32 %v288, %v353
        %v370 = vmul.f32 %v288, %v354
        %v371 = vmul.f32 %v288, %v355
        %v372 = vmul.f32 %v288, %v356
        %v373 = vmul.f32 %v288, %v357
        %v374 = vmul.f32 %v288, %v358
        %v375 = vmul.f32 %v288, %v359
        %v376 = vmul.f32 %v288, %v360
        %v377 = vmul.f32 %v293, %v345
        %v378 = vmul.f32 %v293, %v346
        %v379 = vmul.f32 %v293, %v347
        %v380 = vmul.f32 %v293, %v348
        %v381 = vmul.f32 %v293, %v349
        %v382 = vmul.f32 %v293, %v350
        %v383 = vmul.f32 %v293, %v351
        %v384 = vmul.f32 %v293, %v352
        %v385 = vmul.f32 %v293, %v353
        %v386 = vmul.f32 %v293, %v354
        %v387 = vmul.f32 %v293, %v355
        %v388 = vmul.f32 %v293, %v356
        %v389 = vmul.f32 %v293, %v357
        %v390 = vmul.f32 %v293, %v358
        %v391 = vmul.f32 %v293, %v359
        %v392 = vmul.f32 %v293, %v360
        %v393 = vmul.f32 %v298, %v345
        %v394 = vmul.f32 %v298, %v346
        %v395 = vmul.f32 %v298, %v347
        %v396 = vmul.f32 %v298, %v348
        %v397 = vmul.f32 %v298, %v349
        %v398 = vmul.f32 %v298, %v350
        %v399 = vmul.f32 %v298, %v351
        %v400 = vmul.f32 %v298, %v352
        %v401 = vmul.f32 %v298, %v353
        %v402 = vmul.f32 %v298, %v354
        %v403 = vmul.f32 %v298, %v355
        %v404 = vmul.f32 %v298, %v356
        %v405 = vmul.f32 %v298, %v357
        %v406 = vmul.f32 %v298, %v358
        %v407 = vmul.f32 %v298, %v359
        %v408 = vmul.f32 %v298, %v360
        %v409 = vmul.f32 %v303, %v345
        %v410 = vmul.f32 %v303, %v346
        %v411 = vmul.f32 %v303, %v347
        %v412 = vmul.f32 %v303, %v348
        %v413 = vmul.f32 %v303, %v349
        %v414 = vmul.f32 %v303, %v350
        %v415 = vmul.f32 %v303, %v351
        %v416 = vmul.f32 %v303, %v352
        %v417 = vmul.f32 %v303, %v353
        %v418 = vmul.f32 %v303, %v354
        %v419 = vmul.f32 %v303, %v355
        %v420 = vmul.f32 %v303, %v356
        %v421 = vmul.f32 %v303, %v357
        %v422 = vmul.f32 %v303, %v358
        %v423 = vmul.f32 %v303, %v359
        %v424 = vmul.f32 %v303, %v360
        %425 = vset.pattern.permute.xlu0 1
        %426 = vperm.xlu0 %425, %v281
        %v427 = vpop.permute.xlu0 %426
        %429 = vset.pattern.permute.xlu0 1
        %430 = vperm.xlu0 %429, %v282
        %v431 = vpop.permute.xlu0 %430
        %433 = vset.pattern.permute.xlu0 1
        %434 = vperm.xlu0 %433, %v283
        %v435 = vpop.permute.xlu0 %434
        %437 = vset.pattern.permute.xlu0 1
        %438 = vperm.xlu0 %437, %v284
        %v439 = vpop.permute.xlu0 %438
        %v441 = vperm.slane %v273, 1
        %v442 = vperm.slane %v273, 5
        %v443 = vperm.slane %v274, 1
        %v444 = vperm.slane %v274, 5
        %v445 = vperm.slane %v275, 1
        %v446 = vperm.slane %v275, 5
        %v447 = vperm.slane %v276, 1
        %v448 = vperm.slane %v276, 5
        %v449 = vperm.slane %v277, 1
        %v450 = vperm.slane %v277, 5
        %v451 = vperm.slane %v278, 1
        %v452 = vperm.slane %v278, 5
        %v453 = vperm.slane %v279, 1
        %v454 = vperm.slane %v279, 5
        %v455 = vperm.slane %v280, 1
        %v456 = vperm.slane %v280, 5
        %v473 = vperm.slane %v441, 1
        %v474 = vperm.slane %v442, 1
        %v475 = vperm.slane %v443, 1
        %v476 = vperm.slane %v444, 1
        %v477 = vperm.slane %v445, 1
        %v478 = vperm.slane %v446, 1
        %v479 = vperm.slane %v447, 1
        %v480 = vperm.slane %v448, 1
        %v481 = vperm.slane %v449, 1
        %v482 = vperm.slane %v450, 1
        %v483 = vperm.slane %v451, 1
        %v484 = vperm.slane %v452, 1
        %v485 = vperm.slane %v453, 1
        %v486 = vperm.slane %v454, 1
        %v487 = vperm.slane %v455, 1
        %v488 = vperm.slane %v456, 1
        %v489 = vmul.f32 %v427, %v473
        %v490 = vmul.f32 %v427, %v474
        %v491 = vmul.f32 %v427, %v475
        %v492 = vmul.f32 %v427, %v476
        %v493 = vmul.f32 %v427, %v477
        %v494 = vmul.f32 %v427, %v478
        %v495 = vmul.f32 %v427, %v479
        %v496 = vmul.f32 %v427, %v480
        %v497 = vmul.f32 %v427, %v481
        %v498 = vmul.f32 %v427, %v482
        %v499 = vmul.f32 %v427, %v483
        %v500 = vmul.f32 %v427, %v484
        %v501 = vmul.f32 %v427, %v485
        %v502 = vmul.f32 %v427, %v486
        %v503 = vmul.f32 %v427, %v487
        %v504 = vmul.f32 %v427, %v488
        %v505 = vmul.f32 %v431, %v473
        %v506 = vmul.f32 %v431, %v474
        %v507 = vmul.f32 %v431, %v475
        %v508 = vmul.f32 %v431, %v476
        %v509 = vmul.f32 %v431, %v477
        %v510 = vmul.f32 %v431, %v478
        %v511 = vmul.f32 %v431, %v479
        %v512 = vmul.f32 %v431, %v480
        %v513 = vmul.f32 %v431, %v481
        %v514 = vmul.f32 %v431, %v482
        %v515 = vmul.f32 %v431, %v483
        %v516 = vmul.f32 %v431, %v484
        %v517 = vmul.f32 %v431, %v485
        %v518 = vmul.f32 %v431, %v486
        %v519 = vmul.f32 %v431, %v487
        %v520 = vmul.f32 %v431, %v488
        %v521 = vmul.f32 %v435, %v473
        %v522 = vmul.f32 %v435, %v474
        %v523 = vmul.f32 %v435, %v475
        %v524 = vmul.f32 %v435, %v476
        %v525 = vmul.f32 %v435, %v477
        %v526 = vmul.f32 %v435, %v478
        %v527 = vmul.f32 %v435, %v479
        %v528 = vmul.f32 %v435, %v480
        %v529 = vmul.f32 %v435, %v481
        %v530 = vmul.f32 %v435, %v482
        %v531 = vmul.f32 %v435, %v483
        %v532 = vmul.f32 %v435, %v484
        %v533 = vmul.f32 %v435, %v485
        %v534 = vmul.f32 %v435, %v486
        %v535 = vmul.f32 %v435, %v487
        %v536 = vmul.f32 %v435, %v488
        %v537 = vmul.f32 %v439, %v473
        %v538 = vmul.f32 %v439, %v474
        %v539 = vmul.f32 %v439, %v475
        %v540 = vmul.f32 %v439, %v476
        %v541 = vmul.f32 %v439, %v477
        %v542 = vmul.f32 %v439, %v478
        %v543 = vmul.f32 %v439, %v479
        %v544 = vmul.f32 %v439, %v480
        %v545 = vmul.f32 %v439, %v481
        %v546 = vmul.f32 %v439, %v482
        %v547 = vmul.f32 %v439, %v483
        %v548 = vmul.f32 %v439, %v484
        %v549 = vmul.f32 %v439, %v485
        %v550 = vmul.f32 %v439, %v486
        %v551 = vmul.f32 %v439, %v487
        %v552 = vmul.f32 %v439, %v488
        %v553 = vadd.f32 %v361, %v489
        %v554 = vadd.f32 %v362, %v490
        %v555 = vadd.f32 %v363, %v491
        %v556 = vadd.f32 %v364, %v492
        %v557 = vadd.f32 %v365, %v493
        %v558 = vadd.f32 %v366, %v494
        %v559 = vadd.f32 %v367, %v495
        %v560 = vadd.f32 %v368, %v496
        %v561 = vadd.f32 %v369, %v497
        %v562 = vadd.f32 %v370, %v498
        %v563 = vadd.f32 %v371, %v499
        %v564 = vadd.f32 %v372, %v500
        %v565 = vadd.f32 %v373, %v501
        %v566 = vadd.f32 %v374, %v502
        %v567 = vadd.f32 %v375, %v503
        %v568 = vadd.f32 %v376, %v504
        %v569 = vadd.f32 %v377, %v505
        %v570 = vadd.f32 %v378, %v506
        %v571 = vadd.f32 %v379, %v507
        %v572 = vadd.f32 %v380, %v508
        %v573 = vadd.f32 %v381, %v509
        %v574 = vadd.f32 %v382, %v510
        %v575 = vadd.f32 %v383, %v511
        %v576 = vadd.f32 %v384, %v512
        %v577 = vadd.f32 %v385, %v513
        %v578 = vadd.f32 %v386, %v514
        %v579 = vadd.f32 %v387, %v515
        %v580 = vadd.f32 %v388, %v516
        %v581 = vadd.f32 %v389, %v517
        %v582 = vadd.f32 %v390, %v518
        %v583 = vadd.f32 %v391, %v519
        %v584 = vadd.f32 %v392, %v520
        %v585 = vadd.f32 %v393, %v521
        %v586 = vadd.f32 %v394, %v522
        %v587 = vadd.f32 %v395, %v523
        %v588 = vadd.f32 %v396, %v524
        %v589 = vadd.f32 %v397, %v525
        %v590 = vadd.f32 %v398, %v526
        %v591 = vadd.f32 %v399, %v527
        %v592 = vadd.f32 %v400, %v528
        %v593 = vadd.f32 %v401, %v529
        %v594 = vadd.f32 %v402, %v530
        %v595 = vadd.f32 %v403, %v531
        %v596 = vadd.f32 %v404, %v532
        %v597 = vadd.f32 %v405, %v533
        %v598 = vadd.f32 %v406, %v534
        %v599 = vadd.f32 %v407, %v535
        %v600 = vadd.f32 %v408, %v536
        %v601 = vadd.f32 %v409, %v537
        %v602 = vadd.f32 %v410, %v538
        %v603 = vadd.f32 %v411, %v539
        %v604 = vadd.f32 %v412, %v540
        %v605 = vadd.f32 %v413, %v541
        %v606 = vadd.f32 %v414, %v542
        %v607 = vadd.f32 %v415, %v543
        %v608 = vadd.f32 %v416, %v544
        %v609 = vadd.f32 %v417, %v545
        %v610 = vadd.f32 %v418, %v546
        %v611 = vadd.f32 %v419, %v547
        %v612 = vadd.f32 %v420, %v548
        %v613 = vadd.f32 %v421, %v549
        %v614 = vadd.f32 %v422, %v550
        %v615 = vadd.f32 %v423, %v551
        %v616 = vadd.f32 %v424, %v552
        %617 = vset.pattern.permute.xlu0 2
        %618 = vperm.xlu0 %617, %v281
        %v619 = vpop.permute.xlu0 %618
        %621 = vset.pattern.permute.xlu0 2
        %622 = vperm.xlu0 %621, %v282
        %v623 = vpop.permute.xlu0 %622
        %625 = vset.pattern.permute.xlu0 2
        %626 = vperm.xlu0 %625, %v283
        %v627 = vpop.permute.xlu0 %626
        %629 = vset.pattern.permute.xlu0 2
        %630 = vperm.xlu0 %629, %v284
        %v631 = vpop.permute.xlu0 %630
        %v633 = vperm.slane %v273, 2
        %v634 = vperm.slane %v273, 6
        %v635 = vperm.slane %v274, 2
        %v636 = vperm.slane %v274, 6
        %v637 = vperm.slane %v275, 2
        %v638 = vperm.slane %v275, 6
        %v639 = vperm.slane %v276, 2
        %v640 = vperm.slane %v276, 6
        %v641 = vperm.slane %v277, 2
        %v642 = vperm.slane %v277, 6
        %v643 = vperm.slane %v278, 2
        %v644 = vperm.slane %v278, 6
        %v645 = vperm.slane %v279, 2
        %v646 = vperm.slane %v279, 6
        %v647 = vperm.slane %v280, 2
        %v648 = vperm.slane %v280, 6
        %v665 = vperm.slane %v633, 2
        %v666 = vperm.slane %v634, 2
        %v667 = vperm.slane %v635, 2
        %v668 = vperm.slane %v636, 2
        %v669 = vperm.slane %v637, 2
        %v670 = vperm.slane %v638, 2
        %v671 = vperm.slane %v639, 2
        %v672 = vperm.slane %v640, 2
        %v673 = vperm.slane %v641, 2
        %v674 = vperm.slane %v642, 2
        %v675 = vperm.slane %v643, 2
        %v676 = vperm.slane %v644, 2
        %v677 = vperm.slane %v645, 2
        %v678 = vperm.slane %v646, 2
        %v679 = vperm.slane %v647, 2
        %v680 = vperm.slane %v648, 2
        %v681 = vmul.f32 %v619, %v665
        %v682 = vmul.f32 %v619, %v666
        %v683 = vmul.f32 %v619, %v667
        %v684 = vmul.f32 %v619, %v668
        %v685 = vmul.f32 %v619, %v669
        %v686 = vmul.f32 %v619, %v670
        %v687 = vmul.f32 %v619, %v671
        %v688 = vmul.f32 %v619, %v672
        %v689 = vmul.f32 %v619, %v673
        %v690 = vmul.f32 %v619, %v674
        %v691 = vmul.f32 %v619, %v675
        %v692 = vmul.f32 %v619, %v676
        %v693 = vmul.f32 %v619, %v677
        %v694 = vmul.f32 %v619, %v678
        %v695 = vmul.f32 %v619, %v679
        %v696 = vmul.f32 %v619, %v680
        %v697 = vmul.f32 %v623, %v665
        %v698 = vmul.f32 %v623, %v666
        %v699 = vmul.f32 %v623, %v667
        %v700 = vmul.f32 %v623, %v668
        %v701 = vmul.f32 %v623, %v669
        %v702 = vmul.f32 %v623, %v670
        %v703 = vmul.f32 %v623, %v671
        %v704 = vmul.f32 %v623, %v672
        %v705 = vmul.f32 %v623, %v673
        %v706 = vmul.f32 %v623, %v674
        %v707 = vmul.f32 %v623, %v675
        %v708 = vmul.f32 %v623, %v676
        %v709 = vmul.f32 %v623, %v677
        %v710 = vmul.f32 %v623, %v678
        %v711 = vmul.f32 %v623, %v679
        %v712 = vmul.f32 %v623, %v680
        %v713 = vmul.f32 %v627, %v665
        %v714 = vmul.f32 %v627, %v666
        %v715 = vmul.f32 %v627, %v667
        %v716 = vmul.f32 %v627, %v668
        %v717 = vmul.f32 %v627, %v669
        %v718 = vmul.f32 %v627, %v670
        %v719 = vmul.f32 %v627, %v671
        %v720 = vmul.f32 %v627, %v672
        %v721 = vmul.f32 %v627, %v673
        %v722 = vmul.f32 %v627, %v674
        %v723 = vmul.f32 %v627, %v675
        %v724 = vmul.f32 %v627, %v676
        %v725 = vmul.f32 %v627, %v677
        %v726 = vmul.f32 %v627, %v678
        %v727 = vmul.f32 %v627, %v679
        %v728 = vmul.f32 %v627, %v680
        %v729 = vmul.f32 %v631, %v665
        %v730 = vmul.f32 %v631, %v666
        %v731 = vmul.f32 %v631, %v667
        %v732 = vmul.f32 %v631, %v668
        %v733 = vmul.f32 %v631, %v669
        %v734 = vmul.f32 %v631, %v670
        %v735 = vmul.f32 %v631, %v671
        %v736 = vmul.f32 %v631, %v672
        %v737 = vmul.f32 %v631, %v673
        %v738 = vmul.f32 %v631, %v674
        %v739 = vmul.f32 %v631, %v675
        %v740 = vmul.f32 %v631, %v676
        %v741 = vmul.f32 %v631, %v677
        %v742 = vmul.f32 %v631, %v678
        %v743 = vmul.f32 %v631, %v679
        %v744 = vmul.f32 %v631, %v680
        %v745 = vadd.f32 %v553, %v681
        %v746 = vadd.f32 %v554, %v682
        %v747 = vadd.f32 %v555, %v683
        %v748 = vadd.f32 %v556, %v684
        %v749 = vadd.f32 %v557, %v685
        %v750 = vadd.f32 %v558, %v686
        %v751 = vadd.f32 %v559, %v687
        %v752 = vadd.f32 %v560, %v688
        %v753 = vadd.f32 %v561, %v689
        %v754 = vadd.f32 %v562, %v690
        %v755 = vadd.f32 %v563, %v691
        %v756 = vadd.f32 %v564, %v692
        %v757 = vadd.f32 %v565, %v693
        %v758 = vadd.f32 %v566, %v694
        %v759 = vadd.f32 %v567, %v695
        %v760 = vadd.f32 %v568, %v696
        %v761 = vadd.f32 %v569, %v697
        %v762 = vadd.f32 %v570, %v698
        %v763 = vadd.f32 %v571, %v699
        %v764 = vadd.f32 %v572, %v700
        %v765 = vadd.f32 %v573, %v701
        %v766 = vadd.f32 %v574, %v702
        %v767 = vadd.f32 %v575, %v703
        %v768 = vadd.f32 %v576, %v704
        %v769 = vadd.f32 %v577, %v705
        %v770 = vadd.f32 %v578, %v706
        %v771 = vadd.f32 %v579, %v707
        %v772 = vadd.f32 %v580, %v708
        %v773 = vadd.f32 %v581, %v709
        %v774 = vadd.f32 %v582, %v710
        %v775 = vadd.f32 %v583, %v711
        %v776 = vadd.f32 %v584, %v712
        %v777 = vadd.f32 %v585, %v713
        %v778 = vadd.f32 %v586, %v714
        %v779 = vadd.f32 %v587, %v715
        %v780 = vadd.f32 %v588, %v716
        %v781 = vadd.f32 %v589, %v717
        %v782 = vadd.f32 %v590, %v718
        %v783 = vadd.f32 %v591, %v719
        %v784 = vadd.f32 %v592, %v720
        %v785 = vadd.f32 %v593, %v721
        %v786 = vadd.f32 %v594, %v722
        %v787 = vadd.f32 %v595, %v723
        %v788 = vadd.f32 %v596, %v724
        %v789 = vadd.f32 %v597, %v725
        %v790 = vadd.f32 %v598, %v726
        %v791 = vadd.f32 %v599, %v727
        %v792 = vadd.f32 %v600, %v728
        %v793 = vadd.f32 %v601, %v729
        %v794 = vadd.f32 %v602, %v730
        %v795 = vadd.f32 %v603, %v731
        %v796 = vadd.f32 %v604, %v732
        %v797 = vadd.f32 %v605, %v733
        %v798 = vadd.f32 %v606, %v734
        %v799 = vadd.f32 %v607, %v735
        %v800 = vadd.f32 %v608, %v736
        %v801 = vadd.f32 %v609, %v737
        %v802 = vadd.f32 %v610, %v738
        %v803 = vadd.f32 %v611, %v739
        %v804 = vadd.f32 %v612, %v740
        %v805 = vadd.f32 %v613, %v741
        %v806 = vadd.f32 %v614, %v742
        %v807 = vadd.f32 %v615, %v743
        %v808 = vadd.f32 %v616, %v744
        %v809 = vld [vmem:[%s3] sm:$0xff]
        %v810 = vld [vmem:[%s3 + $0x8] sm:$0xff]
        %v811 = vld [vmem:[%s3 + $0x10] sm:$0xff]
        %v812 = vld [vmem:[%s3 + $0x18] sm:$0xff]
        %814 = vset.pattern.permute.xlu0 0
        %815 = vperm.xlu0 %814, %v809
        %v816 = vpop.permute.xlu0 %815
        %819 = vset.pattern.permute.xlu0 0
        %820 = vperm.xlu0 %819, %v810
        %v821 = vpop.permute.xlu0 %820
        %824 = vset.pattern.permute.xlu0 0
        %825 = vperm.xlu0 %824, %v811
        %v826 = vpop.permute.xlu0 %825
        %829 = vset.pattern.permute.xlu0 0
        %830 = vperm.xlu0 %829, %v812
        %v831 = vpop.permute.xlu0 %830
        %v833 = vadd.f32 %v745, %v816
        %v834 = vadd.f32 %v746, %v816
        %v835 = vadd.f32 %v747, %v816
        %v836 = vadd.f32 %v748, %v816
        %v837 = vadd.f32 %v749, %v816
        %v838 = vadd.f32 %v750, %v816
        %v839 = vadd.f32 %v751, %v816
        %v840 = vadd.f32 %v752, %v816
        %v841 = vadd.f32 %v753, %v816
        %v842 = vadd.f32 %v754, %v816
        %v843 = vadd.f32 %v755, %v816
        %v844 = vadd.f32 %v756, %v816
        %v845 = vadd.f32 %v757, %v816
        %v846 = vadd.f32 %v758, %v816
        %v847 = vadd.f32 %v759, %v816
        %v848 = vadd.f32 %v760, %v816
        %v849 = vadd.f32 %v761, %v821
        %v850 = vadd.f32 %v762, %v821
        %v851 = vadd.f32 %v763, %v821
        %v852 = vadd.f32 %v764, %v821
        %v853 = vadd.f32 %v765, %v821
        %v854 = vadd.f32 %v766, %v821
        %v855 = vadd.f32 %v767, %v821
        %v856 = vadd.f32 %v768, %v821
        %v857 = vadd.f32 %v769, %v821
        %v858 = vadd.f32 %v770, %v821
        %v859 = vadd.f32 %v771, %v821
        %v860 = vadd.f32 %v772, %v821
        %v861 = vadd.f32 %v773, %v821
        %v862 = vadd.f32 %v774, %v821
        %v863 = vadd.f32 %v775, %v821
        %v864 = vadd.f32 %v776, %v821
        %v865 = vadd.f32 %v777, %v826
        %v866 = vadd.f32 %v778, %v826
        %v867 = vadd.f32 %v779, %v826
        %v868 = vadd.f32 %v780, %v826
        %v869 = vadd.f32 %v781, %v826
        %v870 = vadd.f32 %v782, %v826
        %v871 = vadd.f32 %v783, %v826
        %v872 = vadd.f32 %v784, %v826
        %v873 = vadd.f32 %v785, %v826
        %v874 = vadd.f32 %v786, %v826
        %v875 = vadd.f32 %v787, %v826
        %v876 = vadd.f32 %v788, %v826
        %v877 = vadd.f32 %v789, %v826
        %v878 = vadd.f32 %v790, %v826
        %v879 = vadd.f32 %v791, %v826
        %v880 = vadd.f32 %v792, %v826
        %v881 = vadd.f32 %v793, %v831
        %v882 = vadd.f32 %v794, %v831
        %v883 = vadd.f32 %v795, %v831
        %v884 = vadd.f32 %v796, %v831
        %v885 = vadd.f32 %v797, %v831
        %v886 = vadd.f32 %v798, %v831
        %v887 = vadd.f32 %v799, %v831
        %v888 = vadd.f32 %v800, %v831
        %v889 = vadd.f32 %v801, %v831
        %v890 = vadd.f32 %v802, %v831
        %v891 = vadd.f32 %v803, %v831
        %v892 = vadd.f32 %v804, %v831
        %v893 = vadd.f32 %v805, %v831
        %v894 = vadd.f32 %v806, %v831
        %v895 = vadd.f32 %v807, %v831
        %v896 = vadd.f32 %v808, %v831
        %v897 = vmax.f32 %v833, 0.0
        %v898 = vmax.f32 %v834, 0.0
        %v899 = vmax.f32 %v835, 0.0
        %v900 = vmax.f32 %v836, 0.0
        %v901 = vmax.f32 %v837, 0.0
        %v902 = vmax.f32 %v838, 0.0
        %v903 = vmax.f32 %v839, 0.0
        %v904 = vmax.f32 %v840, 0.0
        %v905 = vmax.f32 %v841, 0.0
        %v906 = vmax.f32 %v842, 0.0
        %v907 = vmax.f32 %v843, 0.0
        %v908 = vmax.f32 %v844, 0.0
        %v909 = vmax.f32 %v845, 0.0
        %v910 = vmax.f32 %v846, 0.0
        %v911 = vmax.f32 %v847, 0.0
        %v912 = vmax.f32 %v848, 0.0
        %v913 = vmax.f32 %v849, 0.0
        %v914 = vmax.f32 %v850, 0.0
        %v915 = vmax.f32 %v851, 0.0
        %v916 = vmax.f32 %v852, 0.0
        %v917 = vmax.f32 %v853, 0.0
        %v918 = vmax.f32 %v854, 0.0
        %v919 = vmax.f32 %v855, 0.0
        %v920 = vmax.f32 %v856, 0.0
        %v921 = vmax.f32 %v857, 0.0
        %v922 = vmax.f32 %v858, 0.0
        %v923 = vmax.f32 %v859, 0.0
        %v924 = vmax.f32 %v860, 0.0
        %v925 = vmax.f32 %v861, 0.0
        %v926 = vmax.f32 %v862, 0.0
        %v927 = vmax.f32 %v863, 0.0
        %v928 = vmax.f32 %v864, 0.0
        %v929 = vmax.f32 %v865, 0.0
        %v930 = vmax.f32 %v866, 0.0
        %v931 = vmax.f32 %v867, 0.0
        %v932 = vmax.f32 %v868, 0.0
        %v933 = vmax.f32 %v869, 0.0
        %v934 = vmax.f32 %v870, 0.0
        %v935 = vmax.f32 %v871, 0.0
        %v936 = vmax.f32 %v872, 0.0
        %v937 = vmax.f32 %v873, 0.0
        %v938 = vmax.f32 %v874, 0.0
        %v939 = vmax.f32 %v875, 0.0
        %v940 = vmax.f32 %v876, 0.0
        %v941 = vmax.f32 %v877, 0.0
        %v942 = vmax.f32 %v878, 0.0
        %v943 = vmax.f32 %v879, 0.0
        %v944 = vmax.f32 %v880, 0.0
        %v945 = vmax.f32 %v881, 0.0
        %v946 = vmax.f32 %v882, 0.0
        %v947 = vmax.f32 %v883, 0.0
        %v948 = vmax.f32 %v884, 0.0
        %v949 = vmax.f32 %v885, 0.0
        %v950 = vmax.f32 %v886, 0.0
        %v951 = vmax.f32 %v887, 0.0
        %v952 = vmax.f32 %v888, 0.0
        %v953 = vmax.f32 %v889, 0.0
        %v954 = vmax.f32 %v890, 0.0
        %v955 = vmax.f32 %v891, 0.0
        %v956 = vmax.f32 %v892, 0.0
        %v957 = vmax.f32 %v893, 0.0
        %v958 = vmax.f32 %v894, 0.0
        %v959 = vmax.f32 %v895, 0.0
        %v960 = vmax.f32 %v896, 0.0
        %v961 = vld [vmem:[%s2] sm:$0xf]
        %v962 = vld [vmem:[%s2 + $0x4] sm:$0xf]
        %v963 = vld [vmem:[%s2 + $0x8] sm:$0xf]
        %v964 = vld [vmem:[%s2 + $0xc] sm:$0xf]
        %v965 = vpack.c.bf16 %v913, %v897
        %v966 = vpack.c.bf16 %v914, %v898
        %v967 = vpack.c.bf16 %v915, %v899
        %v968 = vpack.c.bf16 %v916, %v900
        %v969 = vpack.c.bf16 %v917, %v901
        %v970 = vpack.c.bf16 %v918, %v902
        %v971 = vpack.c.bf16 %v919, %v903
        %v972 = vpack.c.bf16 %v920, %v904
        %v973 = vpack.c.bf16 %v921, %v905
        %v974 = vpack.c.bf16 %v922, %v906
        %v975 = vpack.c.bf16 %v923, %v907
        %v976 = vpack.c.bf16 %v924, %v908
        %v977 = vpack.c.bf16 %v925, %v909
        %v978 = vpack.c.bf16 %v926, %v910
        %v979 = vpack.c.bf16 %v927, %v911
        %v980 = vpack.c.bf16 %v928, %v912
        %v981 = vpack.c.bf16 %v945, %v929
        %v982 = vpack.c.bf16 %v946, %v930
        %v983 = vpack.c.bf16 %v947, %v931
        %v984 = vpack.c.bf16 %v948, %v932
        %v985 = vpack.c.bf16 %v949, %v933
        %v986 = vpack.c.bf16 %v950, %v934
        %v987 = vpack.c.bf16 %v951, %v935
        %v988 = vpack.c.bf16 %v952, %v936
        %v989 = vpack.c.bf16 %v953, %v937
        %v990 = vpack.c.bf16 %v954, %v938
        %v991 = vpack.c.bf16 %v955, %v939
        %v992 = vpack.c.bf16 %v956, %v940
        %v993 = vpack.c.bf16 %v957, %v941
        %v994 = vpack.c.bf16 %v958, %v942
        %v995 = vpack.c.bf16 %v959, %v943
        %v996 = vpack.c.bf16 %v960, %v944
        %s997 = scalar_lea.vmem %s3, 32
        %v998 = vld [vmem:[%s997] sm:$0xff]
        %v999 = vld [vmem:[%s997 + $0x8] sm:$0xff]
        %v1000 = vld [vmem:[%s997 + $0x10] sm:$0xff]
        %v1001 = vld [vmem:[%s997 + $0x18] sm:$0xff]
        %1003 = vset.pattern.permute.xlu0 0
        %1004 = vperm.xlu0 %1003, %v998
        %v1005 = vpop.permute.xlu0 %1004
        %1008 = vset.pattern.permute.xlu0 0
        %1009 = vperm.xlu0 %1008, %v999
        %v1010 = vpop.permute.xlu0 %1009
        %1013 = vset.pattern.permute.xlu0 0
        %1014 = vperm.xlu0 %1013, %v1000
        %v1015 = vpop.permute.xlu0 %1014
        %1018 = vset.pattern.permute.xlu0 0
        %1019 = vperm.xlu0 %1018, %v1001
        %v1020 = vpop.permute.xlu0 %1019
        %v1026 = vunpack.c.l.b16 %v961
        %v1027 = vunpack.c.l.b16 %v962
        %v1028 = vunpack.c.l.b16 %v963
        %v1029 = vunpack.c.l.b16 %v964
        %v1030 = vpack.c.b16 %v1027, %v1026
        %v1031 = vpack.c.b16 %v1029, %v1028
        %vm1032 = vcmask 261120
        %v1034 = vsel %vm1032, %v1030, 0
        %v1037 = vsel %vm1032, %v1031, 0
        %1039 = vmatpush.bf16.msra.mxu0 0
        %1040 = vmatpush.bf16.msra.mxu0 0
        %1041 = vmatpush.bf16.msra.mxu0 0
        %1042 = vmatpush.bf16.msra.mxu0 0
        %1043 = vmatpush.bf16.msra.mxu0 0
        %1044 = vmatpush.bf16.msra.mxu0 0
        %1045 = vmatpush.bf16.msra.mxu0 %v981
        %1046 = vmatpush.bf16.msra.mxu0 %v965
        %1047 = vmatmul.bf16.gmra.mxu0 %v1034
        %v1048 = vpop.f32.mrf.mxu0
        %v1049 = vadd.f32 %v1005, %v1048
        %v1050 = vpop.f32.mrf.mxu0
        %v1051 = vadd.f32 %v1010, %v1050
        %1052 = vmatmul.bf16.gmra.mxu0 %v1037
        %v1053 = vpop.f32.mrf.mxu0
        %v1054 = vadd.f32 %v1015, %v1053
        %v1055 = vpop.f32.mrf.mxu0
        %v1056 = vadd.f32 %v1020, %v1055
        %1057 = vdwg.mxu0
        %1058 = vmatpush.bf16.msra.mxu0 0
        %1059 = vmatpush.bf16.msra.mxu0 0
        %1060 = vmatpush.bf16.msra.mxu0 0
        %1061 = vmatpush.bf16.msra.mxu0 0
        %1062 = vmatpush.bf16.msra.mxu0 0
        %1063 = vmatpush.bf16.msra.mxu0 0
        %1064 = vmatpush.bf16.msra.mxu0 %v982
        %1065 = vmatpush.bf16.msra.mxu0 %v966
        %1066 = vmatmul.bf16.gmra.mxu0 %v1034
        %v1067 = vpop.f32.mrf.mxu0
        %v1068 = vadd.f32 %v1005, %v1067
        %v1069 = vpop.f32.mrf.mxu0
        %v1070 = vadd.f32 %v1010, %v1069
        %1071 = vmatmul.bf16.gmra.mxu0 %v1037
        %v1072 = vpop.f32.mrf.mxu0
        %v1073 = vadd.f32 %v1015, %v1072
        %v1074 = vpop.f32.mrf.mxu0
        %v1075 = vadd.f32 %v1020, %v1074
        %1076 = vdwg.mxu0
        %1077 = vmatpush.bf16.msra.mxu0 0
        %1078 = vmatpush.bf16.msra.mxu0 0
        %1079 = vmatpush.bf16.msra.mxu0 0
        %1080 = vmatpush.bf16.msra.mxu0 0
        %1081 = vmatpush.bf16.msra.mxu0 0
        %1082 = vmatpush.bf16.msra.mxu0 0
        %1083 = vmatpush.bf16.msra.mxu0 %v983
        %1084 = vmatpush.bf16.msra.mxu0 %v967
        %1085 = vmatmul.bf16.gmra.mxu0 %v1034
        %v1086 = vpop.f32.mrf.mxu0
        %v1087 = vadd.f32 %v1005, %v1086
        %v1088 = vpop.f32.mrf.mxu0
        %v1089 = vadd.f32 %v1010, %v1088
        %1090 = vmatmul.bf16.gmra.mxu0 %v1037
        %v1091 = vpop.f32.mrf.mxu0
        %v1092 = vadd.f32 %v1015, %v1091
        %v1093 = vpop.f32.mrf.mxu0
        %v1094 = vadd.f32 %v1020, %v1093
        %1095 = vdwg.mxu0
        %1096 = vmatpush.bf16.msra.mxu0 0
        %1097 = vmatpush.bf16.msra.mxu0 0
        %1098 = vmatpush.bf16.msra.mxu0 0
        %1099 = vmatpush.bf16.msra.mxu0 0
        %1100 = vmatpush.bf16.msra.mxu0 0
        %1101 = vmatpush.bf16.msra.mxu0 0
        %1102 = vmatpush.bf16.msra.mxu0 %v984
        %1103 = vmatpush.bf16.msra.mxu0 %v968
        %1104 = vmatmul.bf16.gmra.mxu0 %v1034
        %v1105 = vpop.f32.mrf.mxu0
        %v1106 = vadd.f32 %v1005, %v1105
        %v1107 = vpop.f32.mrf.mxu0
        %v1108 = vadd.f32 %v1010, %v1107
        %1109 = vmatmul.bf16.gmra.mxu0 %v1037
        %v1110 = vpop.f32.mrf.mxu0
        %v1111 = vadd.f32 %v1015, %v1110
        %v1112 = vpop.f32.mrf.mxu0
        %v1113 = vadd.f32 %v1020, %v1112
        %1114 = vdwg.mxu0
        %1115 = vmatpush.bf16.msra.mxu0 0
        %1116 = vmatpush.bf16.msra.mxu0 0
        %1117 = vmatpush.bf16.msra.mxu0 0
        %1118 = vmatpush.bf16.msra.mxu0 0
        %1119 = vmatpush.bf16.msra.mxu0 0
        %1120 = vmatpush.bf16.msra.mxu0 0
        %1121 = vmatpush.bf16.msra.mxu0 %v985
        %1122 = vmatpush.bf16.msra.mxu0 %v969
        %1123 = vmatmul.bf16.gmra.mxu0 %v1034
        %v1124 = vpop.f32.mrf.mxu0
        %v1125 = vadd.f32 %v1005, %v1124
        %v1126 = vpop.f32.mrf.mxu0
        %v1127 = vadd.f32 %v1010, %v1126
        %1128 = vmatmul.bf16.gmra.mxu0 %v1037
        %v1129 = vpop.f32.mrf.mxu0
        %v1130 = vadd.f32 %v1015, %v1129
        %v1131 = vpop.f32.mrf.mxu0
        %v1132 = vadd.f32 %v1020, %v1131
        %1133 = vdwg.mxu0
        %1134 = vmatpush.bf16.msra.mxu0 0
        %1135 = vmatpush.bf16.msra.mxu0 0
        %1136 = vmatpush.bf16.msra.mxu0 0
        %1137 = vmatpush.bf16.msra.mxu0 0
        %1138 = vmatpush.bf16.msra.mxu0 0
        %1139 = vmatpush.bf16.msra.mxu0 0
        %1140 = vmatpush.bf16.msra.mxu0 %v986
        %1141 = vmatpush.bf16.msra.mxu0 %v970
        %1142 = vmatmul.bf16.gmra.mxu0 %v1034
        %v1143 = vpop.f32.mrf.mxu0
        %v1144 = vadd.f32 %v1005, %v1143
        %v1145 = vpop.f32.mrf.mxu0
        %v1146 = vadd.f32 %v1010, %v1145
        %1147 = vmatmul.bf16.gmra.mxu0 %v1037
        %v1148 = vpop.f32.mrf.mxu0
        %v1149 = vadd.f32 %v1015, %v1148
        %v1150 = vpop.f32.mrf.mxu0
        %v1151 = vadd.f32 %v1020, %v1150
        %1152 = vdwg.mxu0
        %1153 = vmatpush.bf16.msra.mxu0 0
        %1154 = vmatpush.bf16.msra.mxu0 0
        %1155 = vmatpush.bf16.msra.mxu0 0
        %1156 = vmatpush.bf16.msra.mxu0 0
        %1157 = vmatpush.bf16.msra.mxu0 0
        %1158 = vmatpush.bf16.msra.mxu0 0
        %1159 = vmatpush.bf16.msra.mxu0 %v987
        %1160 = vmatpush.bf16.msra.mxu0 %v971
        %1161 = vmatmul.bf16.gmra.mxu0 %v1034
        %v1162 = vpop.f32.mrf.mxu0
        %v1163 = vadd.f32 %v1005, %v1162
        %v1164 = vpop.f32.mrf.mxu0
        %v1165 = vadd.f32 %v1010, %v1164
        %1166 = vmatmul.bf16.gmra.mxu0 %v1037
        %v1167 = vpop.f32.mrf.mxu0
        %v1168 = vadd.f32 %v1015, %v1167
        %v1169 = vpop.f32.mrf.mxu0
        %v1170 = vadd.f32 %v1020, %v1169
        %1171 = vdwg.mxu0
        %1172 = vmatpush.bf16.msra.mxu0 0
        %1173 = vmatpush.bf16.msra.mxu0 0
        %1174 = vmatpush.bf16.msra.mxu0 0
        %1175 = vmatpush.bf16.msra.mxu0 0
        %1176 = vmatpush.bf16.msra.mxu0 0
        %1177 = vmatpush.bf16.msra.mxu0 0
        %1178 = vmatpush.bf16.msra.mxu0 %v988
        %1179 = vmatpush.bf16.msra.mxu0 %v972
        %1180 = vmatmul.bf16.gmra.mxu0 %v1034
        %v1181 = vpop.f32.mrf.mxu0
        %v1182 = vadd.f32 %v1005, %v1181
        %v1183 = vpop.f32.mrf.mxu0
        %v1184 = vadd.f32 %v1010, %v1183
        %1185 = vmatmul.bf16.gmra.mxu0 %v1037
        %v1186 = vpop.f32.mrf.mxu0
        %v1187 = vadd.f32 %v1015, %v1186
        %v1188 = vpop.f32.mrf.mxu0
        %v1189 = vadd.f32 %v1020, %v1188
        %1190 = vdwg.mxu0
        %1191 = vmatpush.bf16.msra.mxu0 0
        %1192 = vmatpush.bf16.msra.mxu0 0
        %1193 = vmatpush.bf16.msra.mxu0 0
        %1194 = vmatpush.bf16.msra.mxu0 0
        %1195 = vmatpush.bf16.msra.mxu0 0
        %1196 = vmatpush.bf16.msra.mxu0 0
        %1197 = vmatpush.bf16.msra.mxu0 %v989
        %1198 = vmatpush.bf16.msra.mxu0 %v973
        %1199 = vmatmul.bf16.gmra.mxu0 %v1034
        %v1200 = vpop.f32.mrf.mxu0
        %v1201 = vadd.f32 %v1005, %v1200
        %v1202 = vpop.f32.mrf.mxu0
        %v1203 = vadd.f32 %v1010, %v1202
        %1204 = vmatmul.bf16.gmra.mxu0 %v1037
        %v1205 = vpop.f32.mrf.mxu0
        %v1206 = vadd.f32 %v1015, %v1205
        %v1207 = vpop.f32.mrf.mxu0
        %v1208 = vadd.f32 %v1020, %v1207
        %1209 = vdwg.mxu0
        %1210 = vmatpush.bf16.msra.mxu0 0
        %1211 = vmatpush.bf16.msra.mxu0 0
        %1212 = vmatpush.bf16.msra.mxu0 0
        %1213 = vmatpush.bf16.msra.mxu0 0
        %1214 = vmatpush.bf16.msra.mxu0 0
        %1215 = vmatpush.bf16.msra.mxu0 0
        %1216 = vmatpush.bf16.msra.mxu0 %v990
        %1217 = vmatpush.bf16.msra.mxu0 %v974
        %1218 = vmatmul.bf16.gmra.mxu0 %v1034
        %v1219 = vpop.f32.mrf.mxu0
        %v1220 = vadd.f32 %v1005, %v1219
        %v1221 = vpop.f32.mrf.mxu0
        %v1222 = vadd.f32 %v1010, %v1221
        %1223 = vmatmul.bf16.gmra.mxu0 %v1037
        %v1224 = vpop.f32.mrf.mxu0
        %v1225 = vadd.f32 %v1015, %v1224
        %v1226 = vpop.f32.mrf.mxu0
        %v1227 = vadd.f32 %v1020, %v1226
        %1228 = vdwg.mxu0
        %1229 = vmatpush.bf16.msra.mxu0 0
        %1230 = vmatpush.bf16.msra.mxu0 0
        %1231 = vmatpush.bf16.msra.mxu0 0
        %1232 = vmatpush.bf16.msra.mxu0 0
        %1233 = vmatpush.bf16.msra.mxu0 0
        %1234 = vmatpush.bf16.msra.mxu0 0
        %1235 = vmatpush.bf16.msra.mxu0 %v991
        %1236 = vmatpush.bf16.msra.mxu0 %v975
        %1237 = vmatmul.bf16.gmra.mxu0 %v1034
        %v1238 = vpop.f32.mrf.mxu0
        %v1239 = vadd.f32 %v1005, %v1238
        %v1240 = vpop.f32.mrf.mxu0
        %v1241 = vadd.f32 %v1010, %v1240
        %1242 = vmatmul.bf16.gmra.mxu0 %v1037
        %v1243 = vpop.f32.mrf.mxu0
        %v1244 = vadd.f32 %v1015, %v1243
        %v1245 = vpop.f32.mrf.mxu0
        %v1246 = vadd.f32 %v1020, %v1245
        %1247 = vdwg.mxu0
        %1248 = vmatpush.bf16.msra.mxu0 0
        %1249 = vmatpush.bf16.msra.mxu0 0
        %1250 = vmatpush.bf16.msra.mxu0 0
        %1251 = vmatpush.bf16.msra.mxu0 0
        %1252 = vmatpush.bf16.msra.mxu0 0
        %1253 = vmatpush.bf16.msra.mxu0 0
        %1254 = vmatpush.bf16.msra.mxu0 %v992
        %1255 = vmatpush.bf16.msra.mxu0 %v976
        %1256 = vmatmul.bf16.gmra.mxu0 %v1034
        %v1257 = vpop.f32.mrf.mxu0
        %v1258 = vadd.f32 %v1005, %v1257
        %v1259 = vpop.f32.mrf.mxu0
        %v1260 = vadd.f32 %v1010, %v1259
        %1261 = vmatmul.bf16.gmra.mxu0 %v1037
        %v1262 = vpop.f32.mrf.mxu0
        %v1263 = vadd.f32 %v1015, %v1262
        %v1264 = vpop.f32.mrf.mxu0
        %v1265 = vadd.f32 %v1020, %v1264
        %1266 = vdwg.mxu0
        %1267 = vmatpush.bf16.msra.mxu0 0
        %1268 = vmatpush.bf16.msra.mxu0 0
        %1269 = vmatpush.bf16.msra.mxu0 0
        %1270 = vmatpush.bf16.msra.mxu0 0
        %1271 = vmatpush.bf16.msra.mxu0 0
        %1272 = vmatpush.bf16.msra.mxu0 0
        %1273 = vmatpush.bf16.msra.mxu0 %v993
        %1274 = vmatpush.bf16.msra.mxu0 %v977
        %1275 = vmatmul.bf16.gmra.mxu0 %v1034
        %v1276 = vpop.f32.mrf.mxu0
        %v1277 = vadd.f32 %v1005, %v1276
        %v1278 = vpop.f32.mrf.mxu0
        %v1279 = vadd.f32 %v1010, %v1278
        %1280 = vmatmul.bf16.gmra.mxu0 %v1037
        %v1281 = vpop.f32.mrf.mxu0
        %v1282 = vadd.f32 %v1015, %v1281
        %v1283 = vpop.f32.mrf.mxu0
        %v1284 = vadd.f32 %v1020, %v1283
        %1285 = vdwg.mxu0
        %1286 = vmatpush.bf16.msra.mxu0 0
        %1287 = vmatpush.bf16.msra.mxu0 0
        %1288 = vmatpush.bf16.msra.mxu0 0
        %1289 = vmatpush.bf16.msra.mxu0 0
        %1290 = vmatpush.bf16.msra.mxu0 0
        %1291 = vmatpush.bf16.msra.mxu0 0
        %1292 = vmatpush.bf16.msra.mxu0 %v994
        %1293 = vmatpush.bf16.msra.mxu0 %v978
        %1294 = vmatmul.bf16.gmra.mxu0 %v1034
        %v1295 = vpop.f32.mrf.mxu0
        %v1296 = vadd.f32 %v1005, %v1295
        %v1297 = vpop.f32.mrf.mxu0
        %v1298 = vadd.f32 %v1010, %v1297
        %1299 = vmatmul.bf16.gmra.mxu0 %v1037
        %v1300 = vpop.f32.mrf.mxu0
        %v1301 = vadd.f32 %v1015, %v1300
        %v1302 = vpop.f32.mrf.mxu0
        %v1303 = vadd.f32 %v1020, %v1302
        %1304 = vdwg.mxu0
        %1305 = vmatpush.bf16.msra.mxu0 0
        %1306 = vmatpush.bf16.msra.mxu0 0
        %1307 = vmatpush.bf16.msra.mxu0 0
        %1308 = vmatpush.bf16.msra.mxu0 0
        %1309 = vmatpush.bf16.msra.mxu0 0
        %1310 = vmatpush.bf16.msra.mxu0 0
        %1311 = vmatpush.bf16.msra.mxu0 %v995
        %1312 = vmatpush.bf16.msra.mxu0 %v979
        %1313 = vmatmul.bf16.gmra.mxu0 %v1034
        %v1314 = vpop.f32.mrf.mxu0
        %v1315 = vadd.f32 %v1005, %v1314
        %v1316 = vpop.f32.mrf.mxu0
        %v1317 = vadd.f32 %v1010, %v1316
        %1318 = vmatmul.bf16.gmra.mxu0 %v1037
        %v1319 = vpop.f32.mrf.mxu0
        %v1320 = vadd.f32 %v1015, %v1319
        %v1321 = vpop.f32.mrf.mxu0
        %v1322 = vadd.f32 %v1020, %v1321
        %1323 = vdwg.mxu0
        %1324 = vmatpush.bf16.msra.mxu0 0
        %1325 = vmatpush.bf16.msra.mxu0 0
        %1326 = vmatpush.bf16.msra.mxu0 0
        %1327 = vmatpush.bf16.msra.mxu0 0
        %1328 = vmatpush.bf16.msra.mxu0 0
        %1329 = vmatpush.bf16.msra.mxu0 0
        %1330 = vmatpush.bf16.msra.mxu0 %v996
        %1331 = vmatpush.bf16.msra.mxu0 %v980
        %1332 = vmatmul.bf16.gmra.mxu0 %v1034
        %v1333 = vpop.f32.mrf.mxu0
        %v1334 = vadd.f32 %v1005, %v1333
        %v1335 = vpop.f32.mrf.mxu0
        %v1336 = vadd.f32 %v1010, %v1335
        %1337 = vmatmul.bf16.gmra.mxu0 %v1037
        %v1338 = vpop.f32.mrf.mxu0
        %v1339 = vadd.f32 %v1015, %v1338
        %v1340 = vpop.f32.mrf.mxu0
        %v1341 = vadd.f32 %v1020, %v1340
        %1342 = vdwg.mxu0
        %v1343 = vmax.f32 %v1049, 0.0
        %v1344 = vmax.f32 %v1068, 0.0
        %v1345 = vmax.f32 %v1087, 0.0
        %v1346 = vmax.f32 %v1106, 0.0
        %v1347 = vmax.f32 %v1125, 0.0
        %v1348 = vmax.f32 %v1144, 0.0
        %v1349 = vmax.f32 %v1163, 0.0
        %v1350 = vmax.f32 %v1182, 0.0
        %v1351 = vmax.f32 %v1201, 0.0
        %v1352 = vmax.f32 %v1220, 0.0
        %v1353 = vmax.f32 %v1239, 0.0
        %v1354 = vmax.f32 %v1258, 0.0
        %v1355 = vmax.f32 %v1277, 0.0
        %v1356 = vmax.f32 %v1296, 0.0
        %v1357 = vmax.f32 %v1315, 0.0
        %v1358 = vmax.f32 %v1334, 0.0
        %v1359 = vmax.f32 %v1051, 0.0
        %v1360 = vmax.f32 %v1070, 0.0
        %v1361 = vmax.f32 %v1089, 0.0
        %v1362 = vmax.f32 %v1108, 0.0
        %v1363 = vmax.f32 %v1127, 0.0
        %v1364 = vmax.f32 %v1146, 0.0
        %v1365 = vmax.f32 %v1165, 0.0
        %v1366 = vmax.f32 %v1184, 0.0
        %v1367 = vmax.f32 %v1203, 0.0
        %v1368 = vmax.f32 %v1222, 0.0
        %v1369 = vmax.f32 %v1241, 0.0
        %v1370 = vmax.f32 %v1260, 0.0
        %v1371 = vmax.f32 %v1279, 0.0
        %v1372 = vmax.f32 %v1298, 0.0
        %v1373 = vmax.f32 %v1317, 0.0
        %v1374 = vmax.f32 %v1336, 0.0
        %v1375 = vmax.f32 %v1054, 0.0
        %v1376 = vmax.f32 %v1073, 0.0
        %v1377 = vmax.f32 %v1092, 0.0
        %v1378 = vmax.f32 %v1111, 0.0
        %v1379 = vmax.f32 %v1130, 0.0
        %v1380 = vmax.f32 %v1149, 0.0
        %v1381 = vmax.f32 %v1168, 0.0
        %v1382 = vmax.f32 %v1187, 0.0
        %v1383 = vmax.f32 %v1206, 0.0
        %v1384 = vmax.f32 %v1225, 0.0
        %v1385 = vmax.f32 %v1244, 0.0
        %v1386 = vmax.f32 %v1263, 0.0
        %v1387 = vmax.f32 %v1282, 0.0
        %v1388 = vmax.f32 %v1301, 0.0
        %v1389 = vmax.f32 %v1320, 0.0
        %v1390 = vmax.f32 %v1339, 0.0
        %v1391 = vmax.f32 %v1056, 0.0
        %v1392 = vmax.f32 %v1075, 0.0
        %v1393 = vmax.f32 %v1094, 0.0
        %v1394 = vmax.f32 %v1113, 0.0
        %v1395 = vmax.f32 %v1132, 0.0
        %v1396 = vmax.f32 %v1151, 0.0
        %v1397 = vmax.f32 %v1170, 0.0
        %v1398 = vmax.f32 %v1189, 0.0
        %v1399 = vmax.f32 %v1208, 0.0
        %v1400 = vmax.f32 %v1227, 0.0
        %v1401 = vmax.f32 %v1246, 0.0
        %v1402 = vmax.f32 %v1265, 0.0
        %v1403 = vmax.f32 %v1284, 0.0
        %v1404 = vmax.f32 %v1303, 0.0
        %v1405 = vmax.f32 %v1322, 0.0
        %v1406 = vmax.f32 %v1341, 0.0
        %s1407 = scalar_lea.vmem %s2, 16
        %v1408 = vld [vmem:[%s1407] sm:$0xf]
        %v1409 = vld [vmem:[%s1407 + $0x4] sm:$0xf]
        %v1410 = vld [vmem:[%s1407 + $0x8] sm:$0xf]
        %v1411 = vld [vmem:[%s1407 + $0xc] sm:$0xf]
        %v1412 = vpack.c.bf16 %v1359, %v1343
        %v1413 = vpack.c.bf16 %v1360, %v1344
        %v1414 = vpack.c.bf16 %v1361, %v1345
        %v1415 = vpack.c.bf16 %v1362, %v1346
        %v1416 = vpack.c.bf16 %v1363, %v1347
        %v1417 = vpack.c.bf16 %v1364, %v1348
        %v1418 = vpack.c.bf16 %v1365, %v1349
        %v1419 = vpack.c.bf16 %v1366, %v1350
        %v1420 = vpack.c.bf16 %v1367, %v1351
        %v1421 = vpack.c.bf16 %v1368, %v1352
        %v1422 = vpack.c.bf16 %v1369, %v1353
        %v1423 = vpack.c.bf16 %v1370, %v1354
        %v1424 = vpack.c.bf16 %v1371, %v1355
        %v1425 = vpack.c.bf16 %v1372, %v1356
        %v1426 = vpack.c.bf16 %v1373, %v1357
        %v1427 = vpack.c.bf16 %v1374, %v1358
        %v1428 = vpack.c.bf16 %v1391, %v1375
        %v1429 = vpack.c.bf16 %v1392, %v1376
        %v1430 = vpack.c.bf16 %v1393, %v1377
        %v1431 = vpack.c.bf16 %v1394, %v1378
        %v1432 = vpack.c.bf16 %v1395, %v1379
        %v1433 = vpack.c.bf16 %v1396, %v1380
        %v1434 = vpack.c.bf16 %v1397, %v1381
        %v1435 = vpack.c.bf16 %v1398, %v1382
        %v1436 = vpack.c.bf16 %v1399, %v1383
        %v1437 = vpack.c.bf16 %v1400, %v1384
        %v1438 = vpack.c.bf16 %v1401, %v1385
        %v1439 = vpack.c.bf16 %v1402, %v1386
        %v1440 = vpack.c.bf16 %v1403, %v1387
        %v1441 = vpack.c.bf16 %v1404, %v1388
        %v1442 = vpack.c.bf16 %v1405, %v1389
        %v1443 = vpack.c.bf16 %v1406, %v1390
        %s1444 = scalar_lea.vmem %s3, 64
        %v1445 = vld [vmem:[%s1444] sm:$0xff]
        %v1446 = vld [vmem:[%s1444 + $0x8] sm:$0xff]
        %v1447 = vld [vmem:[%s1444 + $0x10] sm:$0xff]
        %v1448 = vld [vmem:[%s1444 + $0x18] sm:$0xff]
        %1450 = vset.pattern.permute.xlu0 0
        %1451 = vperm.xlu0 %1450, %v1445
        %v1452 = vpop.permute.xlu0 %1451
        %1455 = vset.pattern.permute.xlu0 0
        %1456 = vperm.xlu0 %1455, %v1446
        %v1457 = vpop.permute.xlu0 %1456
        %1460 = vset.pattern.permute.xlu0 0
        %1461 = vperm.xlu0 %1460, %v1447
        %v1462 = vpop.permute.xlu0 %1461
        %1465 = vset.pattern.permute.xlu0 0
        %1466 = vperm.xlu0 %1465, %v1448
        %v1467 = vpop.permute.xlu0 %1466
        %v1473 = vunpack.c.l.b16 %v1408
        %v1474 = vunpack.c.l.b16 %v1409
        %v1475 = vunpack.c.l.b16 %v1410
        %v1476 = vunpack.c.l.b16 %v1411
        %v1477 = vpack.c.b16 %v1474, %v1473
        %v1478 = vpack.c.b16 %v1476, %v1475
        %v1480 = vsel %vm1032, %v1477, 0
        %v1483 = vsel %vm1032, %v1478, 0
        %1485 = vmatpush.bf16.msra.mxu0 0
        %1486 = vmatpush.bf16.msra.mxu0 0
        %1487 = vmatpush.bf16.msra.mxu0 0
        %1488 = vmatpush.bf16.msra.mxu0 0
        %1489 = vmatpush.bf16.msra.mxu0 0
        %1490 = vmatpush.bf16.msra.mxu0 0
        %1491 = vmatpush.bf16.msra.mxu0 %v1428
        %1492 = vmatpush.bf16.msra.mxu0 %v1412
        %1493 = vmatmul.bf16.gmra.mxu0 %v1480
        %v1494 = vpop.f32.mrf.mxu0
        %v1495 = vadd.f32 %v1452, %v1494
        %v1496 = vpop.f32.mrf.mxu0
        %v1497 = vadd.f32 %v1457, %v1496
        %1498 = vmatmul.bf16.gmra.mxu0 %v1483
        %v1499 = vpop.f32.mrf.mxu0
        %v1500 = vadd.f32 %v1462, %v1499
        %v1501 = vpop.f32.mrf.mxu0
        %v1502 = vadd.f32 %v1467, %v1501
        %1503 = vdwg.mxu0
        %1504 = vmatpush.bf16.msra.mxu0 0
        %1505 = vmatpush.bf16.msra.mxu0 0
        %1506 = vmatpush.bf16.msra.mxu0 0
        %1507 = vmatpush.bf16.msra.mxu0 0
        %1508 = vmatpush.bf16.msra.mxu0 0
        %1509 = vmatpush.bf16.msra.mxu0 0
        %1510 = vmatpush.bf16.msra.mxu0 %v1429
        %1511 = vmatpush.bf16.msra.mxu0 %v1413
        %1512 = vmatmul.bf16.gmra.mxu0 %v1480
        %v1513 = vpop.f32.mrf.mxu0
        %v1514 = vadd.f32 %v1452, %v1513
        %v1515 = vpop.f32.mrf.mxu0
        %v1516 = vadd.f32 %v1457, %v1515
        %1517 = vmatmul.bf16.gmra.mxu0 %v1483
        %v1518 = vpop.f32.mrf.mxu0
        %v1519 = vadd.f32 %v1462, %v1518
        %v1520 = vpop.f32.mrf.mxu0
        %v1521 = vadd.f32 %v1467, %v1520
        %1522 = vdwg.mxu0
        %1523 = vmatpush.bf16.msra.mxu0 0
        %1524 = vmatpush.bf16.msra.mxu0 0
        %1525 = vmatpush.bf16.msra.mxu0 0
        %1526 = vmatpush.bf16.msra.mxu0 0
        %1527 = vmatpush.bf16.msra.mxu0 0
        %1528 = vmatpush.bf16.msra.mxu0 0
        %1529 = vmatpush.bf16.msra.mxu0 %v1430
        %1530 = vmatpush.bf16.msra.mxu0 %v1414
        %1531 = vmatmul.bf16.gmra.mxu0 %v1480
        %v1532 = vpop.f32.mrf.mxu0
        %v1533 = vadd.f32 %v1452, %v1532
        %v1534 = vpop.f32.mrf.mxu0
        %v1535 = vadd.f32 %v1457, %v1534
        %1536 = vmatmul.bf16.gmra.mxu0 %v1483
        %v1537 = vpop.f32.mrf.mxu0
        %v1538 = vadd.f32 %v1462, %v1537
        %v1539 = vpop.f32.mrf.mxu0
        %v1540 = vadd.f32 %v1467, %v1539
        %1541 = vdwg.mxu0
        %1542 = vmatpush.bf16.msra.mxu0 0
        %1543 = vmatpush.bf16.msra.mxu0 0
        %1544 = vmatpush.bf16.msra.mxu0 0
        %1545 = vmatpush.bf16.msra.mxu0 0
        %1546 = vmatpush.bf16.msra.mxu0 0
        %1547 = vmatpush.bf16.msra.mxu0 0
        %1548 = vmatpush.bf16.msra.mxu0 %v1431
        %1549 = vmatpush.bf16.msra.mxu0 %v1415
        %1550 = vmatmul.bf16.gmra.mxu0 %v1480
        %v1551 = vpop.f32.mrf.mxu0
        %v1552 = vadd.f32 %v1452, %v1551
        %v1553 = vpop.f32.mrf.mxu0
        %v1554 = vadd.f32 %v1457, %v1553
        %1555 = vmatmul.bf16.gmra.mxu0 %v1483
        %v1556 = vpop.f32.mrf.mxu0
        %v1557 = vadd.f32 %v1462, %v1556
        %v1558 = vpop.f32.mrf.mxu0
        %v1559 = vadd.f32 %v1467, %v1558
        %1560 = vdwg.mxu0
        %1561 = vmatpush.bf16.msra.mxu0 0
        %1562 = vmatpush.bf16.msra.mxu0 0
        %1563 = vmatpush.bf16.msra.mxu0 0
        %1564 = vmatpush.bf16.msra.mxu0 0
        %1565 = vmatpush.bf16.msra.mxu0 0
        %1566 = vmatpush.bf16.msra.mxu0 0
        %1567 = vmatpush.bf16.msra.mxu0 %v1432
        %1568 = vmatpush.bf16.msra.mxu0 %v1416
        %1569 = vmatmul.bf16.gmra.mxu0 %v1480
        %v1570 = vpop.f32.mrf.mxu0
        %v1571 = vadd.f32 %v1452, %v1570
        %v1572 = vpop.f32.mrf.mxu0
        %v1573 = vadd.f32 %v1457, %v1572
        %1574 = vmatmul.bf16.gmra.mxu0 %v1483
        %v1575 = vpop.f32.mrf.mxu0
        %v1576 = vadd.f32 %v1462, %v1575
        %v1577 = vpop.f32.mrf.mxu0
        %v1578 = vadd.f32 %v1467, %v1577
        %1579 = vdwg.mxu0
        %1580 = vmatpush.bf16.msra.mxu0 0
        %1581 = vmatpush.bf16.msra.mxu0 0
        %1582 = vmatpush.bf16.msra.mxu0 0
        %1583 = vmatpush.bf16.msra.mxu0 0
        %1584 = vmatpush.bf16.msra.mxu0 0
        %1585 = vmatpush.bf16.msra.mxu0 0
        %1586 = vmatpush.bf16.msra.mxu0 %v1433
        %1587 = vmatpush.bf16.msra.mxu0 %v1417
        %1588 = vmatmul.bf16.gmra.mxu0 %v1480
        %v1589 = vpop.f32.mrf.mxu0
        %v1590 = vadd.f32 %v1452, %v1589
        %v1591 = vpop.f32.mrf.mxu0
        %v1592 = vadd.f32 %v1457, %v1591
        %1593 = vmatmul.bf16.gmra.mxu0 %v1483
        %v1594 = vpop.f32.mrf.mxu0
        %v1595 = vadd.f32 %v1462, %v1594
        %v1596 = vpop.f32.mrf.mxu0
        %v1597 = vadd.f32 %v1467, %v1596
        %1598 = vdwg.mxu0
        %1599 = vmatpush.bf16.msra.mxu0 0
        %1600 = vmatpush.bf16.msra.mxu0 0
        %1601 = vmatpush.bf16.msra.mxu0 0
        %1602 = vmatpush.bf16.msra.mxu0 0
        %1603 = vmatpush.bf16.msra.mxu0 0
        %1604 = vmatpush.bf16.msra.mxu0 0
        %1605 = vmatpush.bf16.msra.mxu0 %v1434
        %1606 = vmatpush.bf16.msra.mxu0 %v1418
        %1607 = vmatmul.bf16.gmra.mxu0 %v1480
        %v1608 = vpop.f32.mrf.mxu0
        %v1609 = vadd.f32 %v1452, %v1608
        %v1610 = vpop.f32.mrf.mxu0
        %v1611 = vadd.f32 %v1457, %v1610
        %1612 = vmatmul.bf16.gmra.mxu0 %v1483
        %v1613 = vpop.f32.mrf.mxu0
        %v1614 = vadd.f32 %v1462, %v1613
        %v1615 = vpop.f32.mrf.mxu0
        %v1616 = vadd.f32 %v1467, %v1615
        %1617 = vdwg.mxu0
        %1618 = vmatpush.bf16.msra.mxu0 0
        %1619 = vmatpush.bf16.msra.mxu0 0
        %1620 = vmatpush.bf16.msra.mxu0 0
        %1621 = vmatpush.bf16.msra.mxu0 0
        %1622 = vmatpush.bf16.msra.mxu0 0
        %1623 = vmatpush.bf16.msra.mxu0 0
        %1624 = vmatpush.bf16.msra.mxu0 %v1435
        %1625 = vmatpush.bf16.msra.mxu0 %v1419
        %1626 = vmatmul.bf16.gmra.mxu0 %v1480
        %v1627 = vpop.f32.mrf.mxu0
        %v1628 = vadd.f32 %v1452, %v1627
        %v1629 = vpop.f32.mrf.mxu0
        %v1630 = vadd.f32 %v1457, %v1629
        %1631 = vmatmul.bf16.gmra.mxu0 %v1483
        %v1632 = vpop.f32.mrf.mxu0
        %v1633 = vadd.f32 %v1462, %v1632
        %v1634 = vpop.f32.mrf.mxu0
        %v1635 = vadd.f32 %v1467, %v1634
        %1636 = vdwg.mxu0
        %1637 = vmatpush.bf16.msra.mxu0 0
        %1638 = vmatpush.bf16.msra.mxu0 0
        %1639 = vmatpush.bf16.msra.mxu0 0
        %1640 = vmatpush.bf16.msra.mxu0 0
        %1641 = vmatpush.bf16.msra.mxu0 0
        %1642 = vmatpush.bf16.msra.mxu0 0
        %1643 = vmatpush.bf16.msra.mxu0 %v1436
        %1644 = vmatpush.bf16.msra.mxu0 %v1420
        %1645 = vmatmul.bf16.gmra.mxu0 %v1480
        %v1646 = vpop.f32.mrf.mxu0
        %v1647 = vadd.f32 %v1452, %v1646
        %v1648 = vpop.f32.mrf.mxu0
        %v1649 = vadd.f32 %v1457, %v1648
        %1650 = vmatmul.bf16.gmra.mxu0 %v1483
        %v1651 = vpop.f32.mrf.mxu0
        %v1652 = vadd.f32 %v1462, %v1651
        %v1653 = vpop.f32.mrf.mxu0
        %v1654 = vadd.f32 %v1467, %v1653
        %1655 = vdwg.mxu0
        %1656 = vmatpush.bf16.msra.mxu0 0
        %1657 = vmatpush.bf16.msra.mxu0 0
        %1658 = vmatpush.bf16.msra.mxu0 0
        %1659 = vmatpush.bf16.msra.mxu0 0
        %1660 = vmatpush.bf16.msra.mxu0 0
        %1661 = vmatpush.bf16.msra.mxu0 0
        %1662 = vmatpush.bf16.msra.mxu0 %v1437
        %1663 = vmatpush.bf16.msra.mxu0 %v1421
        %1664 = vmatmul.bf16.gmra.mxu0 %v1480
        %v1665 = vpop.f32.mrf.mxu0
        %v1666 = vadd.f32 %v1452, %v1665
        %v1667 = vpop.f32.mrf.mxu0
        %v1668 = vadd.f32 %v1457, %v1667
        %1669 = vmatmul.bf16.gmra.mxu0 %v1483
        %v1670 = vpop.f32.mrf.mxu0
        %v1671 = vadd.f32 %v1462, %v1670
        %v1672 = vpop.f32.mrf.mxu0
        %v1673 = vadd.f32 %v1467, %v1672
        %1674 = vdwg.mxu0
        %1675 = vmatpush.bf16.msra.mxu0 0
        %1676 = vmatpush.bf16.msra.mxu0 0
        %1677 = vmatpush.bf16.msra.mxu0 0
        %1678 = vmatpush.bf16.msra.mxu0 0
        %1679 = vmatpush.bf16.msra.mxu0 0
        %1680 = vmatpush.bf16.msra.mxu0 0
        %1681 = vmatpush.bf16.msra.mxu0 %v1438
        %1682 = vmatpush.bf16.msra.mxu0 %v1422
        %1683 = vmatmul.bf16.gmra.mxu0 %v1480
        %v1684 = vpop.f32.mrf.mxu0
        %v1685 = vadd.f32 %v1452, %v1684
        %v1686 = vpop.f32.mrf.mxu0
        %v1687 = vadd.f32 %v1457, %v1686
        %1688 = vmatmul.bf16.gmra.mxu0 %v1483
        %v1689 = vpop.f32.mrf.mxu0
        %v1690 = vadd.f32 %v1462, %v1689
        %v1691 = vpop.f32.mrf.mxu0
        %v1692 = vadd.f32 %v1467, %v1691
        %1693 = vdwg.mxu0
        %1694 = vmatpush.bf16.msra.mxu0 0
        %1695 = vmatpush.bf16.msra.mxu0 0
        %1696 = vmatpush.bf16.msra.mxu0 0
        %1697 = vmatpush.bf16.msra.mxu0 0
        %1698 = vmatpush.bf16.msra.mxu0 0
        %1699 = vmatpush.bf16.msra.mxu0 0
        %1700 = vmatpush.bf16.msra.mxu0 %v1439
        %1701 = vmatpush.bf16.msra.mxu0 %v1423
        %1702 = vmatmul.bf16.gmra.mxu0 %v1480
        %v1703 = vpop.f32.mrf.mxu0
        %v1704 = vadd.f32 %v1452, %v1703
        %v1705 = vpop.f32.mrf.mxu0
        %v1706 = vadd.f32 %v1457, %v1705
        %1707 = vmatmul.bf16.gmra.mxu0 %v1483
        %v1708 = vpop.f32.mrf.mxu0
        %v1709 = vadd.f32 %v1462, %v1708
        %v1710 = vpop.f32.mrf.mxu0
        %v1711 = vadd.f32 %v1467, %v1710
        %1712 = vdwg.mxu0
        %1713 = vmatpush.bf16.msra.mxu0 0
        %1714 = vmatpush.bf16.msra.mxu0 0
        %1715 = vmatpush.bf16.msra.mxu0 0
        %1716 = vmatpush.bf16.msra.mxu0 0
        %1717 = vmatpush.bf16.msra.mxu0 0
        %1718 = vmatpush.bf16.msra.mxu0 0
        %1719 = vmatpush.bf16.msra.mxu0 %v1440
        %1720 = vmatpush.bf16.msra.mxu0 %v1424
        %1721 = vmatmul.bf16.gmra.mxu0 %v1480
        %v1722 = vpop.f32.mrf.mxu0
        %v1723 = vadd.f32 %v1452, %v1722
        %v1724 = vpop.f32.mrf.mxu0
        %v1725 = vadd.f32 %v1457, %v1724
        %1726 = vmatmul.bf16.gmra.mxu0 %v1483
        %v1727 = vpop.f32.mrf.mxu0
        %v1728 = vadd.f32 %v1462, %v1727
        %v1729 = vpop.f32.mrf.mxu0
        %v1730 = vadd.f32 %v1467, %v1729
        %1731 = vdwg.mxu0
        %1732 = vmatpush.bf16.msra.mxu0 0
        %1733 = vmatpush.bf16.msra.mxu0 0
        %1734 = vmatpush.bf16.msra.mxu0 0
        %1735 = vmatpush.bf16.msra.mxu0 0
        %1736 = vmatpush.bf16.msra.mxu0 0
        %1737 = vmatpush.bf16.msra.mxu0 0
        %1738 = vmatpush.bf16.msra.mxu0 %v1441
        %1739 = vmatpush.bf16.msra.mxu0 %v1425
        %1740 = vmatmul.bf16.gmra.mxu0 %v1480
        %v1741 = vpop.f32.mrf.mxu0
        %v1742 = vadd.f32 %v1452, %v1741
        %v1743 = vpop.f32.mrf.mxu0
        %v1744 = vadd.f32 %v1457, %v1743
        %1745 = vmatmul.bf16.gmra.mxu0 %v1483
        %v1746 = vpop.f32.mrf.mxu0
        %v1747 = vadd.f32 %v1462, %v1746
        %v1748 = vpop.f32.mrf.mxu0
        %v1749 = vadd.f32 %v1467, %v1748
        %1750 = vdwg.mxu0
        %1751 = vmatpush.bf16.msra.mxu0 0
        %1752 = vmatpush.bf16.msra.mxu0 0
        %1753 = vmatpush.bf16.msra.mxu0 0
        %1754 = vmatpush.bf16.msra.mxu0 0
        %1755 = vmatpush.bf16.msra.mxu0 0
        %1756 = vmatpush.bf16.msra.mxu0 0
        %1757 = vmatpush.bf16.msra.mxu0 %v1442
        %1758 = vmatpush.bf16.msra.mxu0 %v1426
        %1759 = vmatmul.bf16.gmra.mxu0 %v1480
        %v1760 = vpop.f32.mrf.mxu0
        %v1761 = vadd.f32 %v1452, %v1760
        %v1762 = vpop.f32.mrf.mxu0
        %v1763 = vadd.f32 %v1457, %v1762
        %1764 = vmatmul.bf16.gmra.mxu0 %v1483
        %v1765 = vpop.f32.mrf.mxu0
        %v1766 = vadd.f32 %v1462, %v1765
        %v1767 = vpop.f32.mrf.mxu0
        %v1768 = vadd.f32 %v1467, %v1767
        %1769 = vdwg.mxu0
        %1770 = vmatpush.bf16.msra.mxu0 0
        %1771 = vmatpush.bf16.msra.mxu0 0
        %1772 = vmatpush.bf16.msra.mxu0 0
        %1773 = vmatpush.bf16.msra.mxu0 0
        %1774 = vmatpush.bf16.msra.mxu0 0
        %1775 = vmatpush.bf16.msra.mxu0 0
        %1776 = vmatpush.bf16.msra.mxu0 %v1443
        %1777 = vmatpush.bf16.msra.mxu0 %v1427
        %1778 = vmatmul.bf16.gmra.mxu0 %v1480
        %v1779 = vpop.f32.mrf.mxu0
        %v1780 = vadd.f32 %v1452, %v1779
        %v1781 = vpop.f32.mrf.mxu0
        %v1782 = vadd.f32 %v1457, %v1781
        %1783 = vmatmul.bf16.gmra.mxu0 %v1483
        %v1784 = vpop.f32.mrf.mxu0
        %v1785 = vadd.f32 %v1462, %v1784
        %v1786 = vpop.f32.mrf.mxu0
        %v1787 = vadd.f32 %v1467, %v1786
        %1788 = vdwg.mxu0
        %v1789 = vmax.f32 %v1495, 0.0
        %v1790 = vmax.f32 %v1514, 0.0
        %v1791 = vmax.f32 %v1533, 0.0
        %v1792 = vmax.f32 %v1552, 0.0
        %v1793 = vmax.f32 %v1571, 0.0
        %v1794 = vmax.f32 %v1590, 0.0
        %v1795 = vmax.f32 %v1609, 0.0
        %v1796 = vmax.f32 %v1628, 0.0
        %v1797 = vmax.f32 %v1647, 0.0
        %v1798 = vmax.f32 %v1666, 0.0
        %v1799 = vmax.f32 %v1685, 0.0
        %v1800 = vmax.f32 %v1704, 0.0
        %v1801 = vmax.f32 %v1723, 0.0
        %v1802 = vmax.f32 %v1742, 0.0
        %v1803 = vmax.f32 %v1761, 0.0
        %v1804 = vmax.f32 %v1780, 0.0
        %v1805 = vmax.f32 %v1497, 0.0
        %v1806 = vmax.f32 %v1516, 0.0
        %v1807 = vmax.f32 %v1535, 0.0
        %v1808 = vmax.f32 %v1554, 0.0
        %v1809 = vmax.f32 %v1573, 0.0
        %v1810 = vmax.f32 %v1592, 0.0
        %v1811 = vmax.f32 %v1611, 0.0
        %v1812 = vmax.f32 %v1630, 0.0
        %v1813 = vmax.f32 %v1649, 0.0
        %v1814 = vmax.f32 %v1668, 0.0
        %v1815 = vmax.f32 %v1687, 0.0
        %v1816 = vmax.f32 %v1706, 0.0
        %v1817 = vmax.f32 %v1725, 0.0
        %v1818 = vmax.f32 %v1744, 0.0
        %v1819 = vmax.f32 %v1763, 0.0
        %v1820 = vmax.f32 %v1782, 0.0
        %v1821 = vmax.f32 %v1500, 0.0
        %v1822 = vmax.f32 %v1519, 0.0
        %v1823 = vmax.f32 %v1538, 0.0
        %v1824 = vmax.f32 %v1557, 0.0
        %v1825 = vmax.f32 %v1576, 0.0
        %v1826 = vmax.f32 %v1595, 0.0
        %v1827 = vmax.f32 %v1614, 0.0
        %v1828 = vmax.f32 %v1633, 0.0
        %v1829 = vmax.f32 %v1652, 0.0
        %v1830 = vmax.f32 %v1671, 0.0
        %v1831 = vmax.f32 %v1690, 0.0
        %v1832 = vmax.f32 %v1709, 0.0
        %v1833 = vmax.f32 %v1728, 0.0
        %v1834 = vmax.f32 %v1747, 0.0
        %v1835 = vmax.f32 %v1766, 0.0
        %v1836 = vmax.f32 %v1785, 0.0
        %v1837 = vmax.f32 %v1502, 0.0
        %v1838 = vmax.f32 %v1521, 0.0
        %v1839 = vmax.f32 %v1540, 0.0
        %v1840 = vmax.f32 %v1559, 0.0
        %v1841 = vmax.f32 %v1578, 0.0
        %v1842 = vmax.f32 %v1597, 0.0
        %v1843 = vmax.f32 %v1616, 0.0
        %v1844 = vmax.f32 %v1635, 0.0
        %v1845 = vmax.f32 %v1654, 0.0
        %v1846 = vmax.f32 %v1673, 0.0
        %v1847 = vmax.f32 %v1692, 0.0
        %v1848 = vmax.f32 %v1711, 0.0
        %v1849 = vmax.f32 %v1730, 0.0
        %v1850 = vmax.f32 %v1749, 0.0
        %v1851 = vmax.f32 %v1768, 0.0
        %v1852 = vmax.f32 %v1787, 0.0
        %s1853 = scalar_lea.vmem %s2, 32
        %v1854 = vld [vmem:[%s1853] sm:$0xf]
        %v1855 = vld [vmem:[%s1853 + $0x4] sm:$0xf]
        %v1856 = vld [vmem:[%s1853 + $0x8] sm:$0xf]
        %v1857 = vld [vmem:[%s1853 + $0xc] sm:$0xf]
        %v1858 = vpack.c.bf16 %v1805, %v1789
        %v1859 = vpack.c.bf16 %v1806, %v1790
        %v1860 = vpack.c.bf16 %v1807, %v1791
        %v1861 = vpack.c.bf16 %v1808, %v1792
        %v1862 = vpack.c.bf16 %v1809, %v1793
        %v1863 = vpack.c.bf16 %v1810, %v1794
        %v1864 = vpack.c.bf16 %v1811, %v1795
        %v1865 = vpack.c.bf16 %v1812, %v1796
        %v1866 = vpack.c.bf16 %v1813, %v1797
        %v1867 = vpack.c.bf16 %v1814, %v1798
        %v1868 = vpack.c.bf16 %v1815, %v1799
        %v1869 = vpack.c.bf16 %v1816, %v1800
        %v1870 = vpack.c.bf16 %v1817, %v1801
        %v1871 = vpack.c.bf16 %v1818, %v1802
        %v1872 = vpack.c.bf16 %v1819, %v1803
        %v1873 = vpack.c.bf16 %v1820, %v1804
        %v1874 = vpack.c.bf16 %v1837, %v1821
        %v1875 = vpack.c.bf16 %v1838, %v1822
        %v1876 = vpack.c.bf16 %v1839, %v1823
        %v1877 = vpack.c.bf16 %v1840, %v1824
        %v1878 = vpack.c.bf16 %v1841, %v1825
        %v1879 = vpack.c.bf16 %v1842, %v1826
        %v1880 = vpack.c.bf16 %v1843, %v1827
        %v1881 = vpack.c.bf16 %v1844, %v1828
        %v1882 = vpack.c.bf16 %v1845, %v1829
        %v1883 = vpack.c.bf16 %v1846, %v1830
        %v1884 = vpack.c.bf16 %v1847, %v1831
        %v1885 = vpack.c.bf16 %v1848, %v1832
        %v1886 = vpack.c.bf16 %v1849, %v1833
        %v1887 = vpack.c.bf16 %v1850, %v1834
        %v1888 = vpack.c.bf16 %v1851, %v1835
        %v1889 = vpack.c.bf16 %v1852, %v1836
        %s1890 = scalar_lea.vmem %s3, 96
        %v1891 = vld [vmem:[%s1890] sm:$0xff]
        %v1892 = vld [vmem:[%s1890 + $0x8] sm:$0xff]
        %v1893 = vld [vmem:[%s1890 + $0x10] sm:$0xff]
        %v1894 = vld [vmem:[%s1890 + $0x18] sm:$0xff]
        %1896 = vset.pattern.permute.xlu0 0
        %1897 = vperm.xlu0 %1896, %v1891
        %v1898 = vpop.permute.xlu0 %1897
        %1901 = vset.pattern.permute.xlu0 0
        %1902 = vperm.xlu0 %1901, %v1892
        %v1903 = vpop.permute.xlu0 %1902
        %1906 = vset.pattern.permute.xlu0 0
        %1907 = vperm.xlu0 %1906, %v1893
        %v1908 = vpop.permute.xlu0 %1907
        %1911 = vset.pattern.permute.xlu0 0
        %1912 = vperm.xlu0 %1911, %v1894
        %v1913 = vpop.permute.xlu0 %1912
        %v1919 = vunpack.c.l.b16 %v1854
        %v1920 = vunpack.c.l.b16 %v1855
        %v1921 = vunpack.c.l.b16 %v1856
        %v1922 = vunpack.c.l.b16 %v1857
        %v1923 = vpack.c.b16 %v1920, %v1919
        %v1924 = vpack.c.b16 %v1922, %v1921
        %v1926 = vsel %vm1032, %v1923, 0
        %v1929 = vsel %vm1032, %v1924, 0
        %1931 = vmatpush.bf16.msra.mxu0 0
        %1932 = vmatpush.bf16.msra.mxu0 0
        %1933 = vmatpush.bf16.msra.mxu0 0
        %1934 = vmatpush.bf16.msra.mxu0 0
        %1935 = vmatpush.bf16.msra.mxu0 0
        %1936 = vmatpush.bf16.msra.mxu0 0
        %1937 = vmatpush.bf16.msra.mxu0 %v1874
        %1938 = vmatpush.bf16.msra.mxu0 %v1858
        %1939 = vmatmul.bf16.gmra.mxu0 %v1926
        %v1940 = vpop.f32.mrf.mxu0
        %v1941 = vadd.f32 %v1898, %v1940
        %v1942 = vpop.f32.mrf.mxu0
        %v1943 = vadd.f32 %v1903, %v1942
        %1944 = vmatmul.bf16.gmra.mxu0 %v1929
        %v1945 = vpop.f32.mrf.mxu0
        %v1946 = vadd.f32 %v1908, %v1945
        %v1947 = vpop.f32.mrf.mxu0
        %v1948 = vadd.f32 %v1913, %v1947
        %1949 = vdwg.mxu0
        %1950 = vmatpush.bf16.msra.mxu0 0
        %1951 = vmatpush.bf16.msra.mxu0 0
        %1952 = vmatpush.bf16.msra.mxu0 0
        %1953 = vmatpush.bf16.msra.mxu0 0
        %1954 = vmatpush.bf16.msra.mxu0 0
        %1955 = vmatpush.bf16.msra.mxu0 0
        %1956 = vmatpush.bf16.msra.mxu0 %v1875
        %1957 = vmatpush.bf16.msra.mxu0 %v1859
        %1958 = vmatmul.bf16.gmra.mxu0 %v1926
        %v1959 = vpop.f32.mrf.mxu0
        %v1960 = vadd.f32 %v1898, %v1959
        %v1961 = vpop.f32.mrf.mxu0
        %v1962 = vadd.f32 %v1903, %v1961
        %1963 = vmatmul.bf16.gmra.mxu0 %v1929
        %v1964 = vpop.f32.mrf.mxu0
        %v1965 = vadd.f32 %v1908, %v1964
        %v1966 = vpop.f32.mrf.mxu0
        %v1967 = vadd.f32 %v1913, %v1966
        %1968 = vdwg.mxu0
        %1969 = vmatpush.bf16.msra.mxu0 0
        %1970 = vmatpush.bf16.msra.mxu0 0
        %1971 = vmatpush.bf16.msra.mxu0 0
        %1972 = vmatpush.bf16.msra.mxu0 0
        %1973 = vmatpush.bf16.msra.mxu0 0
        %1974 = vmatpush.bf16.msra.mxu0 0
        %1975 = vmatpush.bf16.msra.mxu0 %v1876
        %1976 = vmatpush.bf16.msra.mxu0 %v1860
        %1977 = vmatmul.bf16.gmra.mxu0 %v1926
        %v1978 = vpop.f32.mrf.mxu0
        %v1979 = vadd.f32 %v1898, %v1978
        %v1980 = vpop.f32.mrf.mxu0
        %v1981 = vadd.f32 %v1903, %v1980
        %1982 = vmatmul.bf16.gmra.mxu0 %v1929
        %v1983 = vpop.f32.mrf.mxu0
        %v1984 = vadd.f32 %v1908, %v1983
        %v1985 = vpop.f32.mrf.mxu0
        %v1986 = vadd.f32 %v1913, %v1985
        %1987 = vdwg.mxu0
        %1988 = vmatpush.bf16.msra.mxu0 0
        %1989 = vmatpush.bf16.msra.mxu0 0
        %1990 = vmatpush.bf16.msra.mxu0 0
        %1991 = vmatpush.bf16.msra.mxu0 0
        %1992 = vmatpush.bf16.msra.mxu0 0
        %1993 = vmatpush.bf16.msra.mxu0 0
        %1994 = vmatpush.bf16.msra.mxu0 %v1877
        %1995 = vmatpush.bf16.msra.mxu0 %v1861
        %1996 = vmatmul.bf16.gmra.mxu0 %v1926
        %v1997 = vpop.f32.mrf.mxu0
        %v1998 = vadd.f32 %v1898, %v1997
        %v1999 = vpop.f32.mrf.mxu0
        %v2000 = vadd.f32 %v1903, %v1999
        %2001 = vmatmul.bf16.gmra.mxu0 %v1929
        %v2002 = vpop.f32.mrf.mxu0
        %v2003 = vadd.f32 %v1908, %v2002
        %v2004 = vpop.f32.mrf.mxu0
        %v2005 = vadd.f32 %v1913, %v2004
        %2006 = vdwg.mxu0
        %2007 = vmatpush.bf16.msra.mxu0 0
        %2008 = vmatpush.bf16.msra.mxu0 0
        %2009 = vmatpush.bf16.msra.mxu0 0
        %2010 = vmatpush.bf16.msra.mxu0 0
        %2011 = vmatpush.bf16.msra.mxu0 0
        %2012 = vmatpush.bf16.msra.mxu0 0
        %2013 = vmatpush.bf16.msra.mxu0 %v1878
        %2014 = vmatpush.bf16.msra.mxu0 %v1862
        %2015 = vmatmul.bf16.gmra.mxu0 %v1926
        %v2016 = vpop.f32.mrf.mxu0
        %v2017 = vadd.f32 %v1898, %v2016
        %v2018 = vpop.f32.mrf.mxu0
        %v2019 = vadd.f32 %v1903, %v2018
        %2020 = vmatmul.bf16.gmra.mxu0 %v1929
        %v2021 = vpop.f32.mrf.mxu0
        %v2022 = vadd.f32 %v1908, %v2021
        %v2023 = vpop.f32.mrf.mxu0
        %v2024 = vadd.f32 %v1913, %v2023
        %2025 = vdwg.mxu0
        %2026 = vmatpush.bf16.msra.mxu0 0
        %2027 = vmatpush.bf16.msra.mxu0 0
        %2028 = vmatpush.bf16.msra.mxu0 0
        %2029 = vmatpush.bf16.msra.mxu0 0
        %2030 = vmatpush.bf16.msra.mxu0 0
        %2031 = vmatpush.bf16.msra.mxu0 0
        %2032 = vmatpush.bf16.msra.mxu0 %v1879
        %2033 = vmatpush.bf16.msra.mxu0 %v1863
        %2034 = vmatmul.bf16.gmra.mxu0 %v1926
        %v2035 = vpop.f32.mrf.mxu0
        %v2036 = vadd.f32 %v1898, %v2035
        %v2037 = vpop.f32.mrf.mxu0
        %v2038 = vadd.f32 %v1903, %v2037
        %2039 = vmatmul.bf16.gmra.mxu0 %v1929
        %v2040 = vpop.f32.mrf.mxu0
        %v2041 = vadd.f32 %v1908, %v2040
        %v2042 = vpop.f32.mrf.mxu0
        %v2043 = vadd.f32 %v1913, %v2042
        %2044 = vdwg.mxu0
        %2045 = vmatpush.bf16.msra.mxu0 0
        %2046 = vmatpush.bf16.msra.mxu0 0
        %2047 = vmatpush.bf16.msra.mxu0 0
        %2048 = vmatpush.bf16.msra.mxu0 0
        %2049 = vmatpush.bf16.msra.mxu0 0
        %2050 = vmatpush.bf16.msra.mxu0 0
        %2051 = vmatpush.bf16.msra.mxu0 %v1880
        %2052 = vmatpush.bf16.msra.mxu0 %v1864
        %2053 = vmatmul.bf16.gmra.mxu0 %v1926
        %v2054 = vpop.f32.mrf.mxu0
        %v2055 = vadd.f32 %v1898, %v2054
        %v2056 = vpop.f32.mrf.mxu0
        %v2057 = vadd.f32 %v1903, %v2056
        %2058 = vmatmul.bf16.gmra.mxu0 %v1929
        %v2059 = vpop.f32.mrf.mxu0
        %v2060 = vadd.f32 %v1908, %v2059
        %v2061 = vpop.f32.mrf.mxu0
        %v2062 = vadd.f32 %v1913, %v2061
        %2063 = vdwg.mxu0
        %2064 = vmatpush.bf16.msra.mxu0 0
        %2065 = vmatpush.bf16.msra.mxu0 0
        %2066 = vmatpush.bf16.msra.mxu0 0
        %2067 = vmatpush.bf16.msra.mxu0 0
        %2068 = vmatpush.bf16.msra.mxu0 0
        %2069 = vmatpush.bf16.msra.mxu0 0
        %2070 = vmatpush.bf16.msra.mxu0 %v1881
        %2071 = vmatpush.bf16.msra.mxu0 %v1865
        %2072 = vmatmul.bf16.gmra.mxu0 %v1926
        %v2073 = vpop.f32.mrf.mxu0
        %v2074 = vadd.f32 %v1898, %v2073
        %v2075 = vpop.f32.mrf.mxu0
        %v2076 = vadd.f32 %v1903, %v2075
        %2077 = vmatmul.bf16.gmra.mxu0 %v1929
        %v2078 = vpop.f32.mrf.mxu0
        %v2079 = vadd.f32 %v1908, %v2078
        %v2080 = vpop.f32.mrf.mxu0
        %v2081 = vadd.f32 %v1913, %v2080
        %2082 = vdwg.mxu0
        %2083 = vmatpush.bf16.msra.mxu0 0
        %2084 = vmatpush.bf16.msra.mxu0 0
        %2085 = vmatpush.bf16.msra.mxu0 0
        %2086 = vmatpush.bf16.msra.mxu0 0
        %2087 = vmatpush.bf16.msra.mxu0 0
        %2088 = vmatpush.bf16.msra.mxu0 0
        %2089 = vmatpush.bf16.msra.mxu0 %v1882
        %2090 = vmatpush.bf16.msra.mxu0 %v1866
        %2091 = vmatmul.bf16.gmra.mxu0 %v1926
        %v2092 = vpop.f32.mrf.mxu0
        %v2093 = vadd.f32 %v1898, %v2092
        %v2094 = vpop.f32.mrf.mxu0
        %v2095 = vadd.f32 %v1903, %v2094
        %2096 = vmatmul.bf16.gmra.mxu0 %v1929
        %v2097 = vpop.f32.mrf.mxu0
        %v2098 = vadd.f32 %v1908, %v2097
        %v2099 = vpop.f32.mrf.mxu0
        %v2100 = vadd.f32 %v1913, %v2099
        %2101 = vdwg.mxu0
        %2102 = vmatpush.bf16.msra.mxu0 0
        %2103 = vmatpush.bf16.msra.mxu0 0
        %2104 = vmatpush.bf16.msra.mxu0 0
        %2105 = vmatpush.bf16.msra.mxu0 0
        %2106 = vmatpush.bf16.msra.mxu0 0
        %2107 = vmatpush.bf16.msra.mxu0 0
        %2108 = vmatpush.bf16.msra.mxu0 %v1883
        %2109 = vmatpush.bf16.msra.mxu0 %v1867
        %2110 = vmatmul.bf16.gmra.mxu0 %v1926
        %v2111 = vpop.f32.mrf.mxu0
        %v2112 = vadd.f32 %v1898, %v2111
        %v2113 = vpop.f32.mrf.mxu0
        %v2114 = vadd.f32 %v1903, %v2113
        %2115 = vmatmul.bf16.gmra.mxu0 %v1929
        %v2116 = vpop.f32.mrf.mxu0
        %v2117 = vadd.f32 %v1908, %v2116
        %v2118 = vpop.f32.mrf.mxu0
        %v2119 = vadd.f32 %v1913, %v2118
        %2120 = vdwg.mxu0
        %2121 = vmatpush.bf16.msra.mxu0 0
        %2122 = vmatpush.bf16.msra.mxu0 0
        %2123 = vmatpush.bf16.msra.mxu0 0
        %2124 = vmatpush.bf16.msra.mxu0 0
        %2125 = vmatpush.bf16.msra.mxu0 0
        %2126 = vmatpush.bf16.msra.mxu0 0
        %2127 = vmatpush.bf16.msra.mxu0 %v1884
        %2128 = vmatpush.bf16.msra.mxu0 %v1868
        %2129 = vmatmul.bf16.gmra.mxu0 %v1926
        %v2130 = vpop.f32.mrf.mxu0
        %v2131 = vadd.f32 %v1898, %v2130
        %v2132 = vpop.f32.mrf.mxu0
        %v2133 = vadd.f32 %v1903, %v2132
        %2134 = vmatmul.bf16.gmra.mxu0 %v1929
        %v2135 = vpop.f32.mrf.mxu0
        %v2136 = vadd.f32 %v1908, %v2135
        %v2137 = vpop.f32.mrf.mxu0
        %v2138 = vadd.f32 %v1913, %v2137
        %2139 = vdwg.mxu0
        %2140 = vmatpush.bf16.msra.mxu0 0
        %2141 = vmatpush.bf16.msra.mxu0 0
        %2142 = vmatpush.bf16.msra.mxu0 0
        %2143 = vmatpush.bf16.msra.mxu0 0
        %2144 = vmatpush.bf16.msra.mxu0 0
        %2145 = vmatpush.bf16.msra.mxu0 0
        %2146 = vmatpush.bf16.msra.mxu0 %v1885
        %2147 = vmatpush.bf16.msra.mxu0 %v1869
        %2148 = vmatmul.bf16.gmra.mxu0 %v1926
        %v2149 = vpop.f32.mrf.mxu0
        %v2150 = vadd.f32 %v1898, %v2149
        %v2151 = vpop.f32.mrf.mxu0
        %v2152 = vadd.f32 %v1903, %v2151
        %2153 = vmatmul.bf16.gmra.mxu0 %v1929
        %v2154 = vpop.f32.mrf.mxu0
        %v2155 = vadd.f32 %v1908, %v2154
        %v2156 = vpop.f32.mrf.mxu0
        %v2157 = vadd.f32 %v1913, %v2156
        %2158 = vdwg.mxu0
        %2159 = vmatpush.bf16.msra.mxu0 0
        %2160 = vmatpush.bf16.msra.mxu0 0
        %2161 = vmatpush.bf16.msra.mxu0 0
        %2162 = vmatpush.bf16.msra.mxu0 0
        %2163 = vmatpush.bf16.msra.mxu0 0
        %2164 = vmatpush.bf16.msra.mxu0 0
        %2165 = vmatpush.bf16.msra.mxu0 %v1886
        %2166 = vmatpush.bf16.msra.mxu0 %v1870
        %2167 = vmatmul.bf16.gmra.mxu0 %v1926
        %v2168 = vpop.f32.mrf.mxu0
        %v2169 = vadd.f32 %v1898, %v2168
        %v2170 = vpop.f32.mrf.mxu0
        %v2171 = vadd.f32 %v1903, %v2170
        %2172 = vmatmul.bf16.gmra.mxu0 %v1929
        %v2173 = vpop.f32.mrf.mxu0
        %v2174 = vadd.f32 %v1908, %v2173
        %v2175 = vpop.f32.mrf.mxu0
        %v2176 = vadd.f32 %v1913, %v2175
        %2177 = vdwg.mxu0
        %2178 = vmatpush.bf16.msra.mxu0 0
        %2179 = vmatpush.bf16.msra.mxu0 0
        %2180 = vmatpush.bf16.msra.mxu0 0
        %2181 = vmatpush.bf16.msra.mxu0 0
        %2182 = vmatpush.bf16.msra.mxu0 0
        %2183 = vmatpush.bf16.msra.mxu0 0
        %2184 = vmatpush.bf16.msra.mxu0 %v1887
        %2185 = vmatpush.bf16.msra.mxu0 %v1871
        %2186 = vmatmul.bf16.gmra.mxu0 %v1926
        %v2187 = vpop.f32.mrf.mxu0
        %v2188 = vadd.f32 %v1898, %v2187
        %v2189 = vpop.f32.mrf.mxu0
        %v2190 = vadd.f32 %v1903, %v2189
        %2191 = vmatmul.bf16.gmra.mxu0 %v1929
        %v2192 = vpop.f32.mrf.mxu0
        %v2193 = vadd.f32 %v1908, %v2192
        %v2194 = vpop.f32.mrf.mxu0
        %v2195 = vadd.f32 %v1913, %v2194
        %2196 = vdwg.mxu0
        %2197 = vmatpush.bf16.msra.mxu0 0
        %2198 = vmatpush.bf16.msra.mxu0 0
        %2199 = vmatpush.bf16.msra.mxu0 0
        %2200 = vmatpush.bf16.msra.mxu0 0
        %2201 = vmatpush.bf16.msra.mxu0 0
        %2202 = vmatpush.bf16.msra.mxu0 0
        %2203 = vmatpush.bf16.msra.mxu0 %v1888
        %2204 = vmatpush.bf16.msra.mxu0 %v1872
        %2205 = vmatmul.bf16.gmra.mxu0 %v1926
        %v2206 = vpop.f32.mrf.mxu0
        %v2207 = vadd.f32 %v1898, %v2206
        %v2208 = vpop.f32.mrf.mxu0
        %v2209 = vadd.f32 %v1903, %v2208
        %2210 = vmatmul.bf16.gmra.mxu0 %v1929
        %v2211 = vpop.f32.mrf.mxu0
        %v2212 = vadd.f32 %v1908, %v2211
        %v2213 = vpop.f32.mrf.mxu0
        %v2214 = vadd.f32 %v1913, %v2213
        %2215 = vdwg.mxu0
        %2216 = vmatpush.bf16.msra.mxu0 0
        %2217 = vmatpush.bf16.msra.mxu0 0
        %2218 = vmatpush.bf16.msra.mxu0 0
        %2219 = vmatpush.bf16.msra.mxu0 0
        %2220 = vmatpush.bf16.msra.mxu0 0
        %2221 = vmatpush.bf16.msra.mxu0 0
        %2222 = vmatpush.bf16.msra.mxu0 %v1889
        %2223 = vmatpush.bf16.msra.mxu0 %v1873
        %2224 = vmatmul.bf16.gmra.mxu0 %v1926
        %v2225 = vpop.f32.mrf.mxu0
        %v2226 = vadd.f32 %v1898, %v2225
        %v2227 = vpop.f32.mrf.mxu0
        %v2228 = vadd.f32 %v1903, %v2227
        %2229 = vmatmul.bf16.gmra.mxu0 %v1929
        %v2230 = vpop.f32.mrf.mxu0
        %v2231 = vadd.f32 %v1908, %v2230
        %v2232 = vpop.f32.mrf.mxu0
        %v2233 = vadd.f32 %v1913, %v2232
        %2234 = vdwg.mxu0
        %v2235 = vmax.f32 %v1941, 0.0
        %v2236 = vmax.f32 %v1960, 0.0
        %v2237 = vmax.f32 %v1979, 0.0
        %v2238 = vmax.f32 %v1998, 0.0
        %v2239 = vmax.f32 %v2017, 0.0
        %v2240 = vmax.f32 %v2036, 0.0
        %v2241 = vmax.f32 %v2055, 0.0
        %v2242 = vmax.f32 %v2074, 0.0
        %v2243 = vmax.f32 %v2093, 0.0
        %v2244 = vmax.f32 %v2112, 0.0
        %v2245 = vmax.f32 %v2131, 0.0
        %v2246 = vmax.f32 %v2150, 0.0
        %v2247 = vmax.f32 %v2169, 0.0
        %v2248 = vmax.f32 %v2188, 0.0
        %v2249 = vmax.f32 %v2207, 0.0
        %v2250 = vmax.f32 %v2226, 0.0
        %v2251 = vmax.f32 %v1943, 0.0
        %v2252 = vmax.f32 %v1962, 0.0
        %v2253 = vmax.f32 %v1981, 0.0
        %v2254 = vmax.f32 %v2000, 0.0
        %v2255 = vmax.f32 %v2019, 0.0
        %v2256 = vmax.f32 %v2038, 0.0
        %v2257 = vmax.f32 %v2057, 0.0
        %v2258 = vmax.f32 %v2076, 0.0
        %v2259 = vmax.f32 %v2095, 0.0
        %v2260 = vmax.f32 %v2114, 0.0
        %v2261 = vmax.f32 %v2133, 0.0
        %v2262 = vmax.f32 %v2152, 0.0
        %v2263 = vmax.f32 %v2171, 0.0
        %v2264 = vmax.f32 %v2190, 0.0
        %v2265 = vmax.f32 %v2209, 0.0
        %v2266 = vmax.f32 %v2228, 0.0
        %v2267 = vmax.f32 %v1946, 0.0
        %v2268 = vmax.f32 %v1965, 0.0
        %v2269 = vmax.f32 %v1984, 0.0
        %v2270 = vmax.f32 %v2003, 0.0
        %v2271 = vmax.f32 %v2022, 0.0
        %v2272 = vmax.f32 %v2041, 0.0
        %v2273 = vmax.f32 %v2060, 0.0
        %v2274 = vmax.f32 %v2079, 0.0
        %v2275 = vmax.f32 %v2098, 0.0
        %v2276 = vmax.f32 %v2117, 0.0
        %v2277 = vmax.f32 %v2136, 0.0
        %v2278 = vmax.f32 %v2155, 0.0
        %v2279 = vmax.f32 %v2174, 0.0
        %v2280 = vmax.f32 %v2193, 0.0
        %v2281 = vmax.f32 %v2212, 0.0
        %v2282 = vmax.f32 %v2231, 0.0
        %v2283 = vmax.f32 %v1948, 0.0
        %v2284 = vmax.f32 %v1967, 0.0
        %v2285 = vmax.f32 %v1986, 0.0
        %v2286 = vmax.f32 %v2005, 0.0
        %v2287 = vmax.f32 %v2024, 0.0
        %v2288 = vmax.f32 %v2043, 0.0
        %v2289 = vmax.f32 %v2062, 0.0
        %v2290 = vmax.f32 %v2081, 0.0
        %v2291 = vmax.f32 %v2100, 0.0
        %v2292 = vmax.f32 %v2119, 0.0
        %v2293 = vmax.f32 %v2138, 0.0
        %v2294 = vmax.f32 %v2157, 0.0
        %v2295 = vmax.f32 %v2176, 0.0
        %v2296 = vmax.f32 %v2195, 0.0
        %v2297 = vmax.f32 %v2214, 0.0
        %v2298 = vmax.f32 %v2233, 0.0
        %s2299 = scalar_lea.vmem %s2, 48
        %v2300 = vld [vmem:[%s2299] sm:$0xf]
        %v2301 = vld [vmem:[%s2299 + $0x4] sm:$0xf]
        %v2302 = vld [vmem:[%s2299 + $0x8] sm:$0xf]
        %v2303 = vld [vmem:[%s2299 + $0xc] sm:$0xf]
        %v2304 = vpack.c.bf16 %v2251, %v2235
        %v2305 = vpack.c.bf16 %v2252, %v2236
        %v2306 = vpack.c.bf16 %v2253, %v2237
        %v2307 = vpack.c.bf16 %v2254, %v2238
        %v2308 = vpack.c.bf16 %v2255, %v2239
        %v2309 = vpack.c.bf16 %v2256, %v2240
        %v2310 = vpack.c.bf16 %v2257, %v2241
        %v2311 = vpack.c.bf16 %v2258, %v2242
        %v2312 = vpack.c.bf16 %v2259, %v2243
        %v2313 = vpack.c.bf16 %v2260, %v2244
        %v2314 = vpack.c.bf16 %v2261, %v2245
        %v2315 = vpack.c.bf16 %v2262, %v2246
        %v2316 = vpack.c.bf16 %v2263, %v2247
        %v2317 = vpack.c.bf16 %v2264, %v2248
        %v2318 = vpack.c.bf16 %v2265, %v2249
        %v2319 = vpack.c.bf16 %v2266, %v2250
        %v2320 = vpack.c.bf16 %v2283, %v2267
        %v2321 = vpack.c.bf16 %v2284, %v2268
        %v2322 = vpack.c.bf16 %v2285, %v2269
        %v2323 = vpack.c.bf16 %v2286, %v2270
        %v2324 = vpack.c.bf16 %v2287, %v2271
        %v2325 = vpack.c.bf16 %v2288, %v2272
        %v2326 = vpack.c.bf16 %v2289, %v2273
        %v2327 = vpack.c.bf16 %v2290, %v2274
        %v2328 = vpack.c.bf16 %v2291, %v2275
        %v2329 = vpack.c.bf16 %v2292, %v2276
        %v2330 = vpack.c.bf16 %v2293, %v2277
        %v2331 = vpack.c.bf16 %v2294, %v2278
        %v2332 = vpack.c.bf16 %v2295, %v2279
        %v2333 = vpack.c.bf16 %v2296, %v2280
        %v2334 = vpack.c.bf16 %v2297, %v2281
        %v2335 = vpack.c.bf16 %v2298, %v2282
        %s2336 = scalar_lea.vmem %s3, 128
        %v2337 = vld [vmem:[%s2336] sm:$0xff]
        %v2338 = vld [vmem:[%s2336 + $0x8] sm:$0xff]
        %v2339 = vld [vmem:[%s2336 + $0x10] sm:$0xff]
        %v2340 = vld [vmem:[%s2336 + $0x18] sm:$0xff]
        %2342 = vset.pattern.permute.xlu0 0
        %2343 = vperm.xlu0 %2342, %v2337
        %v2344 = vpop.permute.xlu0 %2343
        %2347 = vset.pattern.permute.xlu0 0
        %2348 = vperm.xlu0 %2347, %v2338
        %v2349 = vpop.permute.xlu0 %2348
        %2352 = vset.pattern.permute.xlu0 0
        %2353 = vperm.xlu0 %2352, %v2339
        %v2354 = vpop.permute.xlu0 %2353
        %2357 = vset.pattern.permute.xlu0 0
        %2358 = vperm.xlu0 %2357, %v2340
        %v2359 = vpop.permute.xlu0 %2358
        %v2365 = vunpack.c.l.b16 %v2300
        %v2366 = vunpack.c.l.b16 %v2301
        %v2367 = vunpack.c.l.b16 %v2302
        %v2368 = vunpack.c.l.b16 %v2303
        %v2369 = vpack.c.b16 %v2366, %v2365
        %v2370 = vpack.c.b16 %v2368, %v2367
        %v2372 = vsel %vm1032, %v2369, 0
        %v2375 = vsel %vm1032, %v2370, 0
        %2377 = vmatpush.bf16.msra.mxu0 0
        %2378 = vmatpush.bf16.msra.mxu0 0
        %2379 = vmatpush.bf16.msra.mxu0 0
        %2380 = vmatpush.bf16.msra.mxu0 0
        %2381 = vmatpush.bf16.msra.mxu0 0
        %2382 = vmatpush.bf16.msra.mxu0 0
        %2383 = vmatpush.bf16.msra.mxu0 %v2320
        %2384 = vmatpush.bf16.msra.mxu0 %v2304
        %2385 = vmatmul.bf16.gmra.mxu0 %v2372
        %v2386 = vpop.f32.mrf.mxu0
        %v2387 = vadd.f32 %v2344, %v2386
        %v2388 = vpop.f32.mrf.mxu0
        %v2389 = vadd.f32 %v2349, %v2388
        %2390 = vmatmul.bf16.gmra.mxu0 %v2375
        %v2391 = vpop.f32.mrf.mxu0
        %v2392 = vadd.f32 %v2354, %v2391
        %v2393 = vpop.f32.mrf.mxu0
        %v2394 = vadd.f32 %v2359, %v2393
        %2395 = vdwg.mxu0
        %2396 = vmatpush.bf16.msra.mxu0 0
        %2397 = vmatpush.bf16.msra.mxu0 0
        %2398 = vmatpush.bf16.msra.mxu0 0
        %2399 = vmatpush.bf16.msra.mxu0 0
        %2400 = vmatpush.bf16.msra.mxu0 0
        %2401 = vmatpush.bf16.msra.mxu0 0
        %2402 = vmatpush.bf16.msra.mxu0 %v2321
        %2403 = vmatpush.bf16.msra.mxu0 %v2305
        %2404 = vmatmul.bf16.gmra.mxu0 %v2372
        %v2405 = vpop.f32.mrf.mxu0
        %v2406 = vadd.f32 %v2344, %v2405
        %v2407 = vpop.f32.mrf.mxu0
        %v2408 = vadd.f32 %v2349, %v2407
        %2409 = vmatmul.bf16.gmra.mxu0 %v2375
        %v2410 = vpop.f32.mrf.mxu0
        %v2411 = vadd.f32 %v2354, %v2410
        %v2412 = vpop.f32.mrf.mxu0
        %v2413 = vadd.f32 %v2359, %v2412
        %2414 = vdwg.mxu0
        %2415 = vmatpush.bf16.msra.mxu0 0
        %2416 = vmatpush.bf16.msra.mxu0 0
        %2417 = vmatpush.bf16.msra.mxu0 0
        %2418 = vmatpush.bf16.msra.mxu0 0
        %2419 = vmatpush.bf16.msra.mxu0 0
        %2420 = vmatpush.bf16.msra.mxu0 0
        %2421 = vmatpush.bf16.msra.mxu0 %v2322
        %2422 = vmatpush.bf16.msra.mxu0 %v2306
        %2423 = vmatmul.bf16.gmra.mxu0 %v2372
        %v2424 = vpop.f32.mrf.mxu0
        %v2425 = vadd.f32 %v2344, %v2424
        %v2426 = vpop.f32.mrf.mxu0
        %v2427 = vadd.f32 %v2349, %v2426
        %2428 = vmatmul.bf16.gmra.mxu0 %v2375
        %v2429 = vpop.f32.mrf.mxu0
        %v2430 = vadd.f32 %v2354, %v2429
        %v2431 = vpop.f32.mrf.mxu0
        %v2432 = vadd.f32 %v2359, %v2431
        %2433 = vdwg.mxu0
        %2434 = vmatpush.bf16.msra.mxu0 0
        %2435 = vmatpush.bf16.msra.mxu0 0
        %2436 = vmatpush.bf16.msra.mxu0 0
        %2437 = vmatpush.bf16.msra.mxu0 0
        %2438 = vmatpush.bf16.msra.mxu0 0
        %2439 = vmatpush.bf16.msra.mxu0 0
        %2440 = vmatpush.bf16.msra.mxu0 %v2323
        %2441 = vmatpush.bf16.msra.mxu0 %v2307
        %2442 = vmatmul.bf16.gmra.mxu0 %v2372
        %v2443 = vpop.f32.mrf.mxu0
        %v2444 = vadd.f32 %v2344, %v2443
        %v2445 = vpop.f32.mrf.mxu0
        %v2446 = vadd.f32 %v2349, %v2445
        %2447 = vmatmul.bf16.gmra.mxu0 %v2375
        %v2448 = vpop.f32.mrf.mxu0
        %v2449 = vadd.f32 %v2354, %v2448
        %v2450 = vpop.f32.mrf.mxu0
        %v2451 = vadd.f32 %v2359, %v2450
        %2452 = vdwg.mxu0
        %2453 = vmatpush.bf16.msra.mxu0 0
        %2454 = vmatpush.bf16.msra.mxu0 0
        %2455 = vmatpush.bf16.msra.mxu0 0
        %2456 = vmatpush.bf16.msra.mxu0 0
        %2457 = vmatpush.bf16.msra.mxu0 0
        %2458 = vmatpush.bf16.msra.mxu0 0
        %2459 = vmatpush.bf16.msra.mxu0 %v2324
        %2460 = vmatpush.bf16.msra.mxu0 %v2308
        %2461 = vmatmul.bf16.gmra.mxu0 %v2372
        %v2462 = vpop.f32.mrf.mxu0
        %v2463 = vadd.f32 %v2344, %v2462
        %v2464 = vpop.f32.mrf.mxu0
        %v2465 = vadd.f32 %v2349, %v2464
        %2466 = vmatmul.bf16.gmra.mxu0 %v2375
        %v2467 = vpop.f32.mrf.mxu0
        %v2468 = vadd.f32 %v2354, %v2467
        %v2469 = vpop.f32.mrf.mxu0
        %v2470 = vadd.f32 %v2359, %v2469
        %2471 = vdwg.mxu0
        %2472 = vmatpush.bf16.msra.mxu0 0
        %2473 = vmatpush.bf16.msra.mxu0 0
        %2474 = vmatpush.bf16.msra.mxu0 0
        %2475 = vmatpush.bf16.msra.mxu0 0
        %2476 = vmatpush.bf16.msra.mxu0 0
        %2477 = vmatpush.bf16.msra.mxu0 0
        %2478 = vmatpush.bf16.msra.mxu0 %v2325
        %2479 = vmatpush.bf16.msra.mxu0 %v2309
        %2480 = vmatmul.bf16.gmra.mxu0 %v2372
        %v2481 = vpop.f32.mrf.mxu0
        %v2482 = vadd.f32 %v2344, %v2481
        %v2483 = vpop.f32.mrf.mxu0
        %v2484 = vadd.f32 %v2349, %v2483
        %2485 = vmatmul.bf16.gmra.mxu0 %v2375
        %v2486 = vpop.f32.mrf.mxu0
        %v2487 = vadd.f32 %v2354, %v2486
        %v2488 = vpop.f32.mrf.mxu0
        %v2489 = vadd.f32 %v2359, %v2488
        %2490 = vdwg.mxu0
        %2491 = vmatpush.bf16.msra.mxu0 0
        %2492 = vmatpush.bf16.msra.mxu0 0
        %2493 = vmatpush.bf16.msra.mxu0 0
        %2494 = vmatpush.bf16.msra.mxu0 0
        %2495 = vmatpush.bf16.msra.mxu0 0
        %2496 = vmatpush.bf16.msra.mxu0 0
        %2497 = vmatpush.bf16.msra.mxu0 %v2326
        %2498 = vmatpush.bf16.msra.mxu0 %v2310
        %2499 = vmatmul.bf16.gmra.mxu0 %v2372
        %v2500 = vpop.f32.mrf.mxu0
        %v2501 = vadd.f32 %v2344, %v2500
        %v2502 = vpop.f32.mrf.mxu0
        %v2503 = vadd.f32 %v2349, %v2502
        %2504 = vmatmul.bf16.gmra.mxu0 %v2375
        %v2505 = vpop.f32.mrf.mxu0
        %v2506 = vadd.f32 %v2354, %v2505
        %v2507 = vpop.f32.mrf.mxu0
        %v2508 = vadd.f32 %v2359, %v2507
        %2509 = vdwg.mxu0
        %2510 = vmatpush.bf16.msra.mxu0 0
        %2511 = vmatpush.bf16.msra.mxu0 0
        %2512 = vmatpush.bf16.msra.mxu0 0
        %2513 = vmatpush.bf16.msra.mxu0 0
        %2514 = vmatpush.bf16.msra.mxu0 0
        %2515 = vmatpush.bf16.msra.mxu0 0
        %2516 = vmatpush.bf16.msra.mxu0 %v2327
        %2517 = vmatpush.bf16.msra.mxu0 %v2311
        %2518 = vmatmul.bf16.gmra.mxu0 %v2372
        %v2519 = vpop.f32.mrf.mxu0
        %v2520 = vadd.f32 %v2344, %v2519
        %v2521 = vpop.f32.mrf.mxu0
        %v2522 = vadd.f32 %v2349, %v2521
        %2523 = vmatmul.bf16.gmra.mxu0 %v2375
        %v2524 = vpop.f32.mrf.mxu0
        %v2525 = vadd.f32 %v2354, %v2524
        %v2526 = vpop.f32.mrf.mxu0
        %v2527 = vadd.f32 %v2359, %v2526
        %2528 = vdwg.mxu0
        %2529 = vmatpush.bf16.msra.mxu0 0
        %2530 = vmatpush.bf16.msra.mxu0 0
        %2531 = vmatpush.bf16.msra.mxu0 0
        %2532 = vmatpush.bf16.msra.mxu0 0
        %2533 = vmatpush.bf16.msra.mxu0 0
        %2534 = vmatpush.bf16.msra.mxu0 0
        %2535 = vmatpush.bf16.msra.mxu0 %v2328
        %2536 = vmatpush.bf16.msra.mxu0 %v2312
        %2537 = vmatmul.bf16.gmra.mxu0 %v2372
        %v2538 = vpop.f32.mrf.mxu0
        %v2539 = vadd.f32 %v2344, %v2538
        %v2540 = vpop.f32.mrf.mxu0
        %v2541 = vadd.f32 %v2349, %v2540
        %2542 = vmatmul.bf16.gmra.mxu0 %v2375
        %v2543 = vpop.f32.mrf.mxu0
        %v2544 = vadd.f32 %v2354, %v2543
        %v2545 = vpop.f32.mrf.mxu0
        %v2546 = vadd.f32 %v2359, %v2545
        %2547 = vdwg.mxu0
        %2548 = vmatpush.bf16.msra.mxu0 0
        %2549 = vmatpush.bf16.msra.mxu0 0
        %2550 = vmatpush.bf16.msra.mxu0 0
        %2551 = vmatpush.bf16.msra.mxu0 0
        %2552 = vmatpush.bf16.msra.mxu0 0
        %2553 = vmatpush.bf16.msra.mxu0 0
        %2554 = vmatpush.bf16.msra.mxu0 %v2329
        %2555 = vmatpush.bf16.msra.mxu0 %v2313
        %2556 = vmatmul.bf16.gmra.mxu0 %v2372
        %v2557 = vpop.f32.mrf.mxu0
        %v2558 = vadd.f32 %v2344, %v2557
        %v2559 = vpop.f32.mrf.mxu0
        %v2560 = vadd.f32 %v2349, %v2559
        %2561 = vmatmul.bf16.gmra.mxu0 %v2375
        %v2562 = vpop.f32.mrf.mxu0
        %v2563 = vadd.f32 %v2354, %v2562
        %v2564 = vpop.f32.mrf.mxu0
        %v2565 = vadd.f32 %v2359, %v2564
        %2566 = vdwg.mxu0
        %2567 = vmatpush.bf16.msra.mxu0 0
        %2568 = vmatpush.bf16.msra.mxu0 0
        %2569 = vmatpush.bf16.msra.mxu0 0
        %2570 = vmatpush.bf16.msra.mxu0 0
        %2571 = vmatpush.bf16.msra.mxu0 0
        %2572 = vmatpush.bf16.msra.mxu0 0
        %2573 = vmatpush.bf16.msra.mxu0 %v2330
        %2574 = vmatpush.bf16.msra.mxu0 %v2314
        %2575 = vmatmul.bf16.gmra.mxu0 %v2372
        %v2576 = vpop.f32.mrf.mxu0
        %v2577 = vadd.f32 %v2344, %v2576
        %v2578 = vpop.f32.mrf.mxu0
        %v2579 = vadd.f32 %v2349, %v2578
        %2580 = vmatmul.bf16.gmra.mxu0 %v2375
        %v2581 = vpop.f32.mrf.mxu0
        %v2582 = vadd.f32 %v2354, %v2581
        %v2583 = vpop.f32.mrf.mxu0
        %v2584 = vadd.f32 %v2359, %v2583
        %2585 = vdwg.mxu0
        %2586 = vmatpush.bf16.msra.mxu0 0
        %2587 = vmatpush.bf16.msra.mxu0 0
        %2588 = vmatpush.bf16.msra.mxu0 0
        %2589 = vmatpush.bf16.msra.mxu0 0
        %2590 = vmatpush.bf16.msra.mxu0 0
        %2591 = vmatpush.bf16.msra.mxu0 0
        %2592 = vmatpush.bf16.msra.mxu0 %v2331
        %2593 = vmatpush.bf16.msra.mxu0 %v2315
        %2594 = vmatmul.bf16.gmra.mxu0 %v2372
        %v2595 = vpop.f32.mrf.mxu0
        %v2596 = vadd.f32 %v2344, %v2595
        %v2597 = vpop.f32.mrf.mxu0
        %v2598 = vadd.f32 %v2349, %v2597
        %2599 = vmatmul.bf16.gmra.mxu0 %v2375
        %v2600 = vpop.f32.mrf.mxu0
        %v2601 = vadd.f32 %v2354, %v2600
        %v2602 = vpop.f32.mrf.mxu0
        %v2603 = vadd.f32 %v2359, %v2602
        %2604 = vdwg.mxu0
        %2605 = vmatpush.bf16.msra.mxu0 0
        %2606 = vmatpush.bf16.msra.mxu0 0
        %2607 = vmatpush.bf16.msra.mxu0 0
        %2608 = vmatpush.bf16.msra.mxu0 0
        %2609 = vmatpush.bf16.msra.mxu0 0
        %2610 = vmatpush.bf16.msra.mxu0 0
        %2611 = vmatpush.bf16.msra.mxu0 %v2332
        %2612 = vmatpush.bf16.msra.mxu0 %v2316
        %2613 = vmatmul.bf16.gmra.mxu0 %v2372
        %v2614 = vpop.f32.mrf.mxu0
        %v2615 = vadd.f32 %v2344, %v2614
        %v2616 = vpop.f32.mrf.mxu0
        %v2617 = vadd.f32 %v2349, %v2616
        %2618 = vmatmul.bf16.gmra.mxu0 %v2375
        %v2619 = vpop.f32.mrf.mxu0
        %v2620 = vadd.f32 %v2354, %v2619
        %v2621 = vpop.f32.mrf.mxu0
        %v2622 = vadd.f32 %v2359, %v2621
        %2623 = vdwg.mxu0
        %2624 = vmatpush.bf16.msra.mxu0 0
        %2625 = vmatpush.bf16.msra.mxu0 0
        %2626 = vmatpush.bf16.msra.mxu0 0
        %2627 = vmatpush.bf16.msra.mxu0 0
        %2628 = vmatpush.bf16.msra.mxu0 0
        %2629 = vmatpush.bf16.msra.mxu0 0
        %2630 = vmatpush.bf16.msra.mxu0 %v2333
        %2631 = vmatpush.bf16.msra.mxu0 %v2317
        %2632 = vmatmul.bf16.gmra.mxu0 %v2372
        %v2633 = vpop.f32.mrf.mxu0
        %v2634 = vadd.f32 %v2344, %v2633
        %v2635 = vpop.f32.mrf.mxu0
        %v2636 = vadd.f32 %v2349, %v2635
        %2637 = vmatmul.bf16.gmra.mxu0 %v2375
        %v2638 = vpop.f32.mrf.mxu0
        %v2639 = vadd.f32 %v2354, %v2638
        %v2640 = vpop.f32.mrf.mxu0
        %v2641 = vadd.f32 %v2359, %v2640
        %2642 = vdwg.mxu0
        %2643 = vmatpush.bf16.msra.mxu0 0
        %2644 = vmatpush.bf16.msra.mxu0 0
        %2645 = vmatpush.bf16.msra.mxu0 0
        %2646 = vmatpush.bf16.msra.mxu0 0
        %2647 = vmatpush.bf16.msra.mxu0 0
        %2648 = vmatpush.bf16.msra.mxu0 0
        %2649 = vmatpush.bf16.msra.mxu0 %v2334
        %2650 = vmatpush.bf16.msra.mxu0 %v2318
        %2651 = vmatmul.bf16.gmra.mxu0 %v2372
        %v2652 = vpop.f32.mrf.mxu0
        %v2653 = vadd.f32 %v2344, %v2652
        %v2654 = vpop.f32.mrf.mxu0
        %v2655 = vadd.f32 %v2349, %v2654
        %2656 = vmatmul.bf16.gmra.mxu0 %v2375
        %v2657 = vpop.f32.mrf.mxu0
        %v2658 = vadd.f32 %v2354, %v2657
        %v2659 = vpop.f32.mrf.mxu0
        %v2660 = vadd.f32 %v2359, %v2659
        %2661 = vdwg.mxu0
        %2662 = vmatpush.bf16.msra.mxu0 0
        %2663 = vmatpush.bf16.msra.mxu0 0
        %2664 = vmatpush.bf16.msra.mxu0 0
        %2665 = vmatpush.bf16.msra.mxu0 0
        %2666 = vmatpush.bf16.msra.mxu0 0
        %2667 = vmatpush.bf16.msra.mxu0 0
        %2668 = vmatpush.bf16.msra.mxu0 %v2335
        %2669 = vmatpush.bf16.msra.mxu0 %v2319
        %2670 = vmatmul.bf16.gmra.mxu0 %v2372
        %v2671 = vpop.f32.mrf.mxu0
        %v2672 = vadd.f32 %v2344, %v2671
        %v2673 = vpop.f32.mrf.mxu0
        %v2674 = vadd.f32 %v2349, %v2673
        %2675 = vmatmul.bf16.gmra.mxu0 %v2375
        %v2676 = vpop.f32.mrf.mxu0
        %v2677 = vadd.f32 %v2354, %v2676
        %v2678 = vpop.f32.mrf.mxu0
        %v2679 = vadd.f32 %v2359, %v2678
        %2680 = vdwg.mxu0
        %v2681 = vmax.f32 %v2387, 0.0
        %v2682 = vmax.f32 %v2406, 0.0
        %v2683 = vmax.f32 %v2425, 0.0
        %v2684 = vmax.f32 %v2444, 0.0
        %v2685 = vmax.f32 %v2463, 0.0
        %v2686 = vmax.f32 %v2482, 0.0
        %v2687 = vmax.f32 %v2501, 0.0
        %v2688 = vmax.f32 %v2520, 0.0
        %v2689 = vmax.f32 %v2539, 0.0
        %v2690 = vmax.f32 %v2558, 0.0
        %v2691 = vmax.f32 %v2577, 0.0
        %v2692 = vmax.f32 %v2596, 0.0
        %v2693 = vmax.f32 %v2615, 0.0
        %v2694 = vmax.f32 %v2634, 0.0
        %v2695 = vmax.f32 %v2653, 0.0
        %v2696 = vmax.f32 %v2672, 0.0
        %v2697 = vmax.f32 %v2389, 0.0
        %v2698 = vmax.f32 %v2408, 0.0
        %v2699 = vmax.f32 %v2427, 0.0
        %v2700 = vmax.f32 %v2446, 0.0
        %v2701 = vmax.f32 %v2465, 0.0
        %v2702 = vmax.f32 %v2484, 0.0
        %v2703 = vmax.f32 %v2503, 0.0
        %v2704 = vmax.f32 %v2522, 0.0
        %v2705 = vmax.f32 %v2541, 0.0
        %v2706 = vmax.f32 %v2560, 0.0
        %v2707 = vmax.f32 %v2579, 0.0
        %v2708 = vmax.f32 %v2598, 0.0
        %v2709 = vmax.f32 %v2617, 0.0
        %v2710 = vmax.f32 %v2636, 0.0
        %v2711 = vmax.f32 %v2655, 0.0
        %v2712 = vmax.f32 %v2674, 0.0
        %v2713 = vmax.f32 %v2392, 0.0
        %v2714 = vmax.f32 %v2411, 0.0
        %v2715 = vmax.f32 %v2430, 0.0
        %v2716 = vmax.f32 %v2449, 0.0
        %v2717 = vmax.f32 %v2468, 0.0
        %v2718 = vmax.f32 %v2487, 0.0
        %v2719 = vmax.f32 %v2506, 0.0
        %v2720 = vmax.f32 %v2525, 0.0
        %v2721 = vmax.f32 %v2544, 0.0
        %v2722 = vmax.f32 %v2563, 0.0
        %v2723 = vmax.f32 %v2582, 0.0
        %v2724 = vmax.f32 %v2601, 0.0
        %v2725 = vmax.f32 %v2620, 0.0
        %v2726 = vmax.f32 %v2639, 0.0
        %v2727 = vmax.f32 %v2658, 0.0
        %v2728 = vmax.f32 %v2677, 0.0
        %v2729 = vmax.f32 %v2394, 0.0
        %v2730 = vmax.f32 %v2413, 0.0
        %v2731 = vmax.f32 %v2432, 0.0
        %v2732 = vmax.f32 %v2451, 0.0
        %v2733 = vmax.f32 %v2470, 0.0
        %v2734 = vmax.f32 %v2489, 0.0
        %v2735 = vmax.f32 %v2508, 0.0
        %v2736 = vmax.f32 %v2527, 0.0
        %v2737 = vmax.f32 %v2546, 0.0
        %v2738 = vmax.f32 %v2565, 0.0
        %v2739 = vmax.f32 %v2584, 0.0
        %v2740 = vmax.f32 %v2603, 0.0
        %v2741 = vmax.f32 %v2622, 0.0
        %v2742 = vmax.f32 %v2641, 0.0
        %v2743 = vmax.f32 %v2660, 0.0
        %v2744 = vmax.f32 %v2679, 0.0
        %v2745 = vld [vmem:[%s4] sm:$0xf]
        %v2746 = vld [vmem:[%s5] sm:$0xf]
        %v2747 = vperm.slane %v2745, 0
        %v2748 = vlaneseq
        %v2749 = vshrl.u32 %v2748, 7
        %2751 = vset.pattern.permute.xlu0 %v2749
        %2752 = vperm.xlu0 %2751, %v2747
        %v2753 = vpop.permute.xlu0 %2752
        %v2754 = vlaneseq
        %v2755 = vshrl.u32 %v2754, 7
        %v2756 = vadd.s32 %v2755, 8
        %2757 = vset.pattern.permute.xlu0 %v2756
        %2758 = vperm.xlu0 %2757, %v2747
        %v2759 = vpop.permute.xlu0 %2758
        %v2760 = vlaneseq
        %v2761 = vshrl.u32 %v2760, 7
        %v2762 = vadd.s32 %v2761, 16
        %2763 = vset.pattern.permute.xlu0 %v2762
        %2764 = vperm.xlu0 %2763, %v2747
        %v2765 = vpop.permute.xlu0 %2764
        %v2766 = vlaneseq
        %v2767 = vshrl.u32 %v2766, 7
        %v2768 = vadd.s32 %v2767, 24
        %2769 = vset.pattern.permute.xlu0 %v2768
        %2770 = vperm.xlu0 %2769, %v2747
        %v2771 = vpop.permute.xlu0 %2770
        %v2772 = vmul.f32 %v2753, %v2681
        %v2773 = vmul.f32 %v2753, %v2682
        %v2774 = vmul.f32 %v2753, %v2683
        %v2775 = vmul.f32 %v2753, %v2684
        %v2776 = vmul.f32 %v2753, %v2685
        %v2777 = vmul.f32 %v2753, %v2686
        %v2778 = vmul.f32 %v2753, %v2687
        %v2779 = vmul.f32 %v2753, %v2688
        %v2780 = vmul.f32 %v2753, %v2689
        %v2781 = vmul.f32 %v2753, %v2690
        %v2782 = vmul.f32 %v2753, %v2691
        %v2783 = vmul.f32 %v2753, %v2692
        %v2784 = vmul.f32 %v2753, %v2693
        %v2785 = vmul.f32 %v2753, %v2694
        %v2786 = vmul.f32 %v2753, %v2695
        %v2787 = vmul.f32 %v2753, %v2696
        %v2788 = vmul.f32 %v2759, %v2697
        %v2789 = vmul.f32 %v2759, %v2698
        %v2790 = vmul.f32 %v2759, %v2699
        %v2791 = vmul.f32 %v2759, %v2700
        %v2792 = vmul.f32 %v2759, %v2701
        %v2793 = vmul.f32 %v2759, %v2702
        %v2794 = vmul.f32 %v2759, %v2703
        %v2795 = vmul.f32 %v2759, %v2704
        %v2796 = vmul.f32 %v2759, %v2705
        %v2797 = vmul.f32 %v2759, %v2706
        %v2798 = vmul.f32 %v2759, %v2707
        %v2799 = vmul.f32 %v2759, %v2708
        %v2800 = vmul.f32 %v2759, %v2709
        %v2801 = vmul.f32 %v2759, %v2710
        %v2802 = vmul.f32 %v2759, %v2711
        %v2803 = vmul.f32 %v2759, %v2712
        %v2804 = vmul.f32 %v2765, %v2713
        %v2805 = vmul.f32 %v2765, %v2714
        %v2806 = vmul.f32 %v2765, %v2715
        %v2807 = vmul.f32 %v2765, %v2716
        %v2808 = vmul.f32 %v2765, %v2717
        %v2809 = vmul.f32 %v2765, %v2718
        %v2810 = vmul.f32 %v2765, %v2719
        %v2811 = vmul.f32 %v2765, %v2720
        %v2812 = vmul.f32 %v2765, %v2721
        %v2813 = vmul.f32 %v2765, %v2722
        %v2814 = vmul.f32 %v2765, %v2723
        %v2815 = vmul.f32 %v2765, %v2724
        %v2816 = vmul.f32 %v2765, %v2725
        %v2817 = vmul.f32 %v2765, %v2726
        %v2818 = vmul.f32 %v2765, %v2727
        %v2819 = vmul.f32 %v2765, %v2728
        %v2820 = vmul.f32 %v2771, %v2729
        %v2821 = vmul.f32 %v2771, %v2730
        %v2822 = vmul.f32 %v2771, %v2731
        %v2823 = vmul.f32 %v2771, %v2732
        %v2824 = vmul.f32 %v2771, %v2733
        %v2825 = vmul.f32 %v2771, %v2734
        %v2826 = vmul.f32 %v2771, %v2735
        %v2827 = vmul.f32 %v2771, %v2736
        %v2828 = vmul.f32 %v2771, %v2737
        %v2829 = vmul.f32 %v2771, %v2738
        %v2830 = vmul.f32 %v2771, %v2739
        %v2831 = vmul.f32 %v2771, %v2740
        %v2832 = vmul.f32 %v2771, %v2741
        %v2833 = vmul.f32 %v2771, %v2742
        %v2834 = vmul.f32 %v2771, %v2743
        %v2835 = vmul.f32 %v2771, %v2744
        %v2836 = vadd.f32 %v2772, %v2788
        %v2837 = vadd.f32 %v2836, %v2804
        %v2838 = vadd.f32 %v2837, %v2820
        %v2839 = vrot.slane %v2838, 4
        %v2840 = vadd.f32 %v2838, %v2839
        %v2841 = vrot.slane %v2840, 2
        %v2842 = vadd.f32 %v2840, %v2841
        %v2843 = vrot.slane %v2842, 1
        %v2844 = vadd.f32 %v2842, %v2843
        %v2845 = vadd.f32 %v2773, %v2789
        %v2846 = vadd.f32 %v2845, %v2805
        %v2847 = vadd.f32 %v2846, %v2821
        %v2848 = vrot.slane %v2847, 4
        %v2849 = vadd.f32 %v2847, %v2848
        %v2850 = vrot.slane %v2849, 2
        %v2851 = vadd.f32 %v2849, %v2850
        %v2852 = vrot.slane %v2851, 1
        %v2853 = vadd.f32 %v2851, %v2852
        %v2854 = vadd.f32 %v2774, %v2790
        %v2855 = vadd.f32 %v2854, %v2806
        %v2856 = vadd.f32 %v2855, %v2822
        %v2857 = vrot.slane %v2856, 4
        %v2858 = vadd.f32 %v2856, %v2857
        %v2859 = vrot.slane %v2858, 2
        %v2860 = vadd.f32 %v2858, %v2859
        %v2861 = vrot.slane %v2860, 1
        %v2862 = vadd.f32 %v2860, %v2861
        %v2863 = vadd.f32 %v2775, %v2791
        %v2864 = vadd.f32 %v2863, %v2807
        %v2865 = vadd.f32 %v2864, %v2823
        %v2866 = vrot.slane %v2865, 4
        %v2867 = vadd.f32 %v2865, %v2866
        %v2868 = vrot.slane %v2867, 2
        %v2869 = vadd.f32 %v2867, %v2868
        %v2870 = vrot.slane %v2869, 1
        %v2871 = vadd.f32 %v2869, %v2870
        %v2872 = vadd.f32 %v2776, %v2792
        %v2873 = vadd.f32 %v2872, %v2808
        %v2874 = vadd.f32 %v2873, %v2824
        %v2875 = vrot.slane %v2874, 4
        %v2876 = vadd.f32 %v2874, %v2875
        %v2877 = vrot.slane %v2876, 2
        %v2878 = vadd.f32 %v2876, %v2877
        %v2879 = vrot.slane %v2878, 1
        %v2880 = vadd.f32 %v2878, %v2879
        %v2881 = vadd.f32 %v2777, %v2793
        %v2882 = vadd.f32 %v2881, %v2809
        %v2883 = vadd.f32 %v2882, %v2825
        %v2884 = vrot.slane %v2883, 4
        %v2885 = vadd.f32 %v2883, %v2884
        %v2886 = vrot.slane %v2885, 2
        %v2887 = vadd.f32 %v2885, %v2886
        %v2888 = vrot.slane %v2887, 1
        %v2889 = vadd.f32 %v2887, %v2888
        %v2890 = vadd.f32 %v2778, %v2794
        %v2891 = vadd.f32 %v2890, %v2810
        %v2892 = vadd.f32 %v2891, %v2826
        %v2893 = vrot.slane %v2892, 4
        %v2894 = vadd.f32 %v2892, %v2893
        %v2895 = vrot.slane %v2894, 2
        %v2896 = vadd.f32 %v2894, %v2895
        %v2897 = vrot.slane %v2896, 1
        %v2898 = vadd.f32 %v2896, %v2897
        %v2899 = vadd.f32 %v2779, %v2795
        %v2900 = vadd.f32 %v2899, %v2811
        %v2901 = vadd.f32 %v2900, %v2827
        %v2902 = vrot.slane %v2901, 4
        %v2903 = vadd.f32 %v2901, %v2902
        %v2904 = vrot.slane %v2903, 2
        %v2905 = vadd.f32 %v2903, %v2904
        %v2906 = vrot.slane %v2905, 1
        %v2907 = vadd.f32 %v2905, %v2906
        %v2908 = vadd.f32 %v2780, %v2796
        %v2909 = vadd.f32 %v2908, %v2812
        %v2910 = vadd.f32 %v2909, %v2828
        %v2911 = vrot.slane %v2910, 4
        %v2912 = vadd.f32 %v2910, %v2911
        %v2913 = vrot.slane %v2912, 2
        %v2914 = vadd.f32 %v2912, %v2913
        %v2915 = vrot.slane %v2914, 1
        %v2916 = vadd.f32 %v2914, %v2915
        %v2917 = vadd.f32 %v2781, %v2797
        %v2918 = vadd.f32 %v2917, %v2813
        %v2919 = vadd.f32 %v2918, %v2829
        %v2920 = vrot.slane %v2919, 4
        %v2921 = vadd.f32 %v2919, %v2920
        %v2922 = vrot.slane %v2921, 2
        %v2923 = vadd.f32 %v2921, %v2922
        %v2924 = vrot.slane %v2923, 1
        %v2925 = vadd.f32 %v2923, %v2924
        %v2926 = vadd.f32 %v2782, %v2798
        %v2927 = vadd.f32 %v2926, %v2814
        %v2928 = vadd.f32 %v2927, %v2830
        %v2929 = vrot.slane %v2928, 4
        %v2930 = vadd.f32 %v2928, %v2929
        %v2931 = vrot.slane %v2930, 2
        %v2932 = vadd.f32 %v2930, %v2931
        %v2933 = vrot.slane %v2932, 1
        %v2934 = vadd.f32 %v2932, %v2933
        %v2935 = vadd.f32 %v2783, %v2799
        %v2936 = vadd.f32 %v2935, %v2815
        %v2937 = vadd.f32 %v2936, %v2831
        %v2938 = vrot.slane %v2937, 4
        %v2939 = vadd.f32 %v2937, %v2938
        %v2940 = vrot.slane %v2939, 2
        %v2941 = vadd.f32 %v2939, %v2940
        %v2942 = vrot.slane %v2941, 1
        %v2943 = vadd.f32 %v2941, %v2942
        %v2944 = vadd.f32 %v2784, %v2800
        %v2945 = vadd.f32 %v2944, %v2816
        %v2946 = vadd.f32 %v2945, %v2832
        %v2947 = vrot.slane %v2946, 4
        %v2948 = vadd.f32 %v2946, %v2947
        %v2949 = vrot.slane %v2948, 2
        %v2950 = vadd.f32 %v2948, %v2949
        %v2951 = vrot.slane %v2950, 1
        %v2952 = vadd.f32 %v2950, %v2951
        %v2953 = vadd.f32 %v2785, %v2801
        %v2954 = vadd.f32 %v2953, %v2817
        %v2955 = vadd.f32 %v2954, %v2833
        %v2956 = vrot.slane %v2955, 4
        %v2957 = vadd.f32 %v2955, %v2956
        %v2958 = vrot.slane %v2957, 2
        %v2959 = vadd.f32 %v2957, %v2958
        %v2960 = vrot.slane %v2959, 1
        %v2961 = vadd.f32 %v2959, %v2960
        %v2962 = vadd.f32 %v2786, %v2802
        %v2963 = vadd.f32 %v2962, %v2818
        %v2964 = vadd.f32 %v2963, %v2834
        %v2965 = vrot.slane %v2964, 4
        %v2966 = vadd.f32 %v2964, %v2965
        %v2967 = vrot.slane %v2966, 2
        %v2968 = vadd.f32 %v2966, %v2967
        %v2969 = vrot.slane %v2968, 1
        %v2970 = vadd.f32 %v2968, %v2969
        %v2971 = vadd.f32 %v2787, %v2803
        %v2972 = vadd.f32 %v2971, %v2819
        %v2973 = vadd.f32 %v2972, %v2835
        %v2974 = vrot.slane %v2973, 4
        %v2975 = vadd.f32 %v2973, %v2974
        %v2976 = vrot.slane %v2975, 2
        %v2977 = vadd.f32 %v2975, %v2976
        %v2978 = vrot.slane %v2977, 1
        %v2979 = vadd.f32 %v2977, %v2978
        %v2980 = vperm.slane %v2745, 1
        %v2981 = vlaneseq
        %v2982 = vshrl.u32 %v2981, 7
        %2984 = vset.pattern.permute.xlu0 %v2982
        %2985 = vperm.xlu0 %2984, %v2980
        %v2986 = vpop.permute.xlu0 %2985
        %v2987 = vlaneseq
        %v2988 = vshrl.u32 %v2987, 7
        %v2989 = vadd.s32 %v2988, 8
        %2990 = vset.pattern.permute.xlu0 %v2989
        %2991 = vperm.xlu0 %2990, %v2980
        %v2992 = vpop.permute.xlu0 %2991
        %v2993 = vlaneseq
        %v2994 = vshrl.u32 %v2993, 7
        %v2995 = vadd.s32 %v2994, 16
        %2996 = vset.pattern.permute.xlu0 %v2995
        %2997 = vperm.xlu0 %2996, %v2980
        %v2998 = vpop.permute.xlu0 %2997
        %v2999 = vlaneseq
        %v3000 = vshrl.u32 %v2999, 7
        %v3001 = vadd.s32 %v3000, 24
        %3002 = vset.pattern.permute.xlu0 %v3001
        %3003 = vperm.xlu0 %3002, %v2980
        %v3004 = vpop.permute.xlu0 %3003
        %v3005 = vmul.f32 %v2986, %v2681
        %v3006 = vmul.f32 %v2986, %v2682
        %v3007 = vmul.f32 %v2986, %v2683
        %v3008 = vmul.f32 %v2986, %v2684
        %v3009 = vmul.f32 %v2986, %v2685
        %v3010 = vmul.f32 %v2986, %v2686
        %v3011 = vmul.f32 %v2986, %v2687
        %v3012 = vmul.f32 %v2986, %v2688
        %v3013 = vmul.f32 %v2986, %v2689
        %v3014 = vmul.f32 %v2986, %v2690
        %v3015 = vmul.f32 %v2986, %v2691
        %v3016 = vmul.f32 %v2986, %v2692
        %v3017 = vmul.f32 %v2986, %v2693
        %v3018 = vmul.f32 %v2986, %v2694
        %v3019 = vmul.f32 %v2986, %v2695
        %v3020 = vmul.f32 %v2986, %v2696
        %v3021 = vmul.f32 %v2992, %v2697
        %v3022 = vmul.f32 %v2992, %v2698
        %v3023 = vmul.f32 %v2992, %v2699
        %v3024 = vmul.f32 %v2992, %v2700
        %v3025 = vmul.f32 %v2992, %v2701
        %v3026 = vmul.f32 %v2992, %v2702
        %v3027 = vmul.f32 %v2992, %v2703
        %v3028 = vmul.f32 %v2992, %v2704
        %v3029 = vmul.f32 %v2992, %v2705
        %v3030 = vmul.f32 %v2992, %v2706
        %v3031 = vmul.f32 %v2992, %v2707
        %v3032 = vmul.f32 %v2992, %v2708
        %v3033 = vmul.f32 %v2992, %v2709
        %v3034 = vmul.f32 %v2992, %v2710
        %v3035 = vmul.f32 %v2992, %v2711
        %v3036 = vmul.f32 %v2992, %v2712
        %v3037 = vmul.f32 %v2998, %v2713
        %v3038 = vmul.f32 %v2998, %v2714
        %v3039 = vmul.f32 %v2998, %v2715
        %v3040 = vmul.f32 %v2998, %v2716
        %v3041 = vmul.f32 %v2998, %v2717
        %v3042 = vmul.f32 %v2998, %v2718
        %v3043 = vmul.f32 %v2998, %v2719
        %v3044 = vmul.f32 %v2998, %v2720
        %v3045 = vmul.f32 %v2998, %v2721
        %v3046 = vmul.f32 %v2998, %v2722
        %v3047 = vmul.f32 %v2998, %v2723
        %v3048 = vmul.f32 %v2998, %v2724
        %v3049 = vmul.f32 %v2998, %v2725
        %v3050 = vmul.f32 %v2998, %v2726
        %v3051 = vmul.f32 %v2998, %v2727
        %v3052 = vmul.f32 %v2998, %v2728
        %v3053 = vmul.f32 %v3004, %v2729
        %v3054 = vmul.f32 %v3004, %v2730
        %v3055 = vmul.f32 %v3004, %v2731
        %v3056 = vmul.f32 %v3004, %v2732
        %v3057 = vmul.f32 %v3004, %v2733
        %v3058 = vmul.f32 %v3004, %v2734
        %v3059 = vmul.f32 %v3004, %v2735
        %v3060 = vmul.f32 %v3004, %v2736
        %v3061 = vmul.f32 %v3004, %v2737
        %v3062 = vmul.f32 %v3004, %v2738
        %v3063 = vmul.f32 %v3004, %v2739
        %v3064 = vmul.f32 %v3004, %v2740
        %v3065 = vmul.f32 %v3004, %v2741
        %v3066 = vmul.f32 %v3004, %v2742
        %v3067 = vmul.f32 %v3004, %v2743
        %v3068 = vmul.f32 %v3004, %v2744
        %v3069 = vadd.f32 %v3005, %v3021
        %v3070 = vadd.f32 %v3069, %v3037
        %v3071 = vadd.f32 %v3070, %v3053
        %v3072 = vrot.slane %v3071, 4
        %v3073 = vadd.f32 %v3071, %v3072
        %v3074 = vrot.slane %v3073, 2
        %v3075 = vadd.f32 %v3073, %v3074
        %v3076 = vrot.slane %v3075, 1
        %v3077 = vadd.f32 %v3075, %v3076
        %v3078 = vadd.f32 %v3006, %v3022
        %v3079 = vadd.f32 %v3078, %v3038
        %v3080 = vadd.f32 %v3079, %v3054
        %v3081 = vrot.slane %v3080, 4
        %v3082 = vadd.f32 %v3080, %v3081
        %v3083 = vrot.slane %v3082, 2
        %v3084 = vadd.f32 %v3082, %v3083
        %v3085 = vrot.slane %v3084, 1
        %v3086 = vadd.f32 %v3084, %v3085
        %v3087 = vadd.f32 %v3007, %v3023
        %v3088 = vadd.f32 %v3087, %v3039
        %v3089 = vadd.f32 %v3088, %v3055
        %v3090 = vrot.slane %v3089, 4
        %v3091 = vadd.f32 %v3089, %v3090
        %v3092 = vrot.slane %v3091, 2
        %v3093 = vadd.f32 %v3091, %v3092
        %v3094 = vrot.slane %v3093, 1
        %v3095 = vadd.f32 %v3093, %v3094
        %v3096 = vadd.f32 %v3008, %v3024
        %v3097 = vadd.f32 %v3096, %v3040
        %v3098 = vadd.f32 %v3097, %v3056
        %v3099 = vrot.slane %v3098, 4
        %v3100 = vadd.f32 %v3098, %v3099
        %v3101 = vrot.slane %v3100, 2
        %v3102 = vadd.f32 %v3100, %v3101
        %v3103 = vrot.slane %v3102, 1
        %v3104 = vadd.f32 %v3102, %v3103
        %v3105 = vadd.f32 %v3009, %v3025
        %v3106 = vadd.f32 %v3105, %v3041
        %v3107 = vadd.f32 %v3106, %v3057
        %v3108 = vrot.slane %v3107, 4
        %v3109 = vadd.f32 %v3107, %v3108
        %v3110 = vrot.slane %v3109, 2
        %v3111 = vadd.f32 %v3109, %v3110
        %v3112 = vrot.slane %v3111, 1
        %v3113 = vadd.f32 %v3111, %v3112
        %v3114 = vadd.f32 %v3010, %v3026
        %v3115 = vadd.f32 %v3114, %v3042
        %v3116 = vadd.f32 %v3115, %v3058
        %v3117 = vrot.slane %v3116, 4
        %v3118 = vadd.f32 %v3116, %v3117
        %v3119 = vrot.slane %v3118, 2
        %v3120 = vadd.f32 %v3118, %v3119
        %v3121 = vrot.slane %v3120, 1
        %v3122 = vadd.f32 %v3120, %v3121
        %v3123 = vadd.f32 %v3011, %v3027
        %v3124 = vadd.f32 %v3123, %v3043
        %v3125 = vadd.f32 %v3124, %v3059
        %v3126 = vrot.slane %v3125, 4
        %v3127 = vadd.f32 %v3125, %v3126
        %v3128 = vrot.slane %v3127, 2
        %v3129 = vadd.f32 %v3127, %v3128
        %v3130 = vrot.slane %v3129, 1
        %v3131 = vadd.f32 %v3129, %v3130
        %v3132 = vadd.f32 %v3012, %v3028
        %v3133 = vadd.f32 %v3132, %v3044
        %v3134 = vadd.f32 %v3133, %v3060
        %v3135 = vrot.slane %v3134, 4
        %v3136 = vadd.f32 %v3134, %v3135
        %v3137 = vrot.slane %v3136, 2
        %v3138 = vadd.f32 %v3136, %v3137
        %v3139 = vrot.slane %v3138, 1
        %v3140 = vadd.f32 %v3138, %v3139
        %v3141 = vadd.f32 %v3013, %v3029
        %v3142 = vadd.f32 %v3141, %v3045
        %v3143 = vadd.f32 %v3142, %v3061
        %v3144 = vrot.slane %v3143, 4
        %v3145 = vadd.f32 %v3143, %v3144
        %v3146 = vrot.slane %v3145, 2
        %v3147 = vadd.f32 %v3145, %v3146
        %v3148 = vrot.slane %v3147, 1
        %v3149 = vadd.f32 %v3147, %v3148
        %v3150 = vadd.f32 %v3014, %v3030
        %v3151 = vadd.f32 %v3150, %v3046
        %v3152 = vadd.f32 %v3151, %v3062
        %v3153 = vrot.slane %v3152, 4
        %v3154 = vadd.f32 %v3152, %v3153
        %v3155 = vrot.slane %v3154, 2
        %v3156 = vadd.f32 %v3154, %v3155
        %v3157 = vrot.slane %v3156, 1
        %v3158 = vadd.f32 %v3156, %v3157
        %v3159 = vadd.f32 %v3015, %v3031
        %v3160 = vadd.f32 %v3159, %v3047
        %v3161 = vadd.f32 %v3160, %v3063
        %v3162 = vrot.slane %v3161, 4
        %v3163 = vadd.f32 %v3161, %v3162
        %v3164 = vrot.slane %v3163, 2
        %v3165 = vadd.f32 %v3163, %v3164
        %v3166 = vrot.slane %v3165, 1
        %v3167 = vadd.f32 %v3165, %v3166
        %v3168 = vadd.f32 %v3016, %v3032
        %v3169 = vadd.f32 %v3168, %v3048
        %v3170 = vadd.f32 %v3169, %v3064
        %v3171 = vrot.slane %v3170, 4
        %v3172 = vadd.f32 %v3170, %v3171
        %v3173 = vrot.slane %v3172, 2
        %v3174 = vadd.f32 %v3172, %v3173
        %v3175 = vrot.slane %v3174, 1
        %v3176 = vadd.f32 %v3174, %v3175
        %v3177 = vadd.f32 %v3017, %v3033
        %v3178 = vadd.f32 %v3177, %v3049
        %v3179 = vadd.f32 %v3178, %v3065
        %v3180 = vrot.slane %v3179, 4
        %v3181 = vadd.f32 %v3179, %v3180
        %v3182 = vrot.slane %v3181, 2
        %v3183 = vadd.f32 %v3181, %v3182
        %v3184 = vrot.slane %v3183, 1
        %v3185 = vadd.f32 %v3183, %v3184
        %v3186 = vadd.f32 %v3018, %v3034
        %v3187 = vadd.f32 %v3186, %v3050
        %v3188 = vadd.f32 %v3187, %v3066
        %v3189 = vrot.slane %v3188, 4
        %v3190 = vadd.f32 %v3188, %v3189
        %v3191 = vrot.slane %v3190, 2
        %v3192 = vadd.f32 %v3190, %v3191
        %v3193 = vrot.slane %v3192, 1
        %v3194 = vadd.f32 %v3192, %v3193
        %v3195 = vadd.f32 %v3019, %v3035
        %v3196 = vadd.f32 %v3195, %v3051
        %v3197 = vadd.f32 %v3196, %v3067
        %v3198 = vrot.slane %v3197, 4
        %v3199 = vadd.f32 %v3197, %v3198
        %v3200 = vrot.slane %v3199, 2
        %v3201 = vadd.f32 %v3199, %v3200
        %v3202 = vrot.slane %v3201, 1
        %v3203 = vadd.f32 %v3201, %v3202
        %v3204 = vadd.f32 %v3020, %v3036
        %v3205 = vadd.f32 %v3204, %v3052
        %v3206 = vadd.f32 %v3205, %v3068
        %v3207 = vrot.slane %v3206, 4
        %v3208 = vadd.f32 %v3206, %v3207
        %v3209 = vrot.slane %v3208, 2
        %v3210 = vadd.f32 %v3208, %v3209
        %v3211 = vrot.slane %v3210, 1
        %v3212 = vadd.f32 %v3210, %v3211
        %v3213 = vperm.slane %v2745, 2
        %v3214 = vlaneseq
        %v3215 = vshrl.u32 %v3214, 7
        %3217 = vset.pattern.permute.xlu0 %v3215
        %3218 = vperm.xlu0 %3217, %v3213
        %v3219 = vpop.permute.xlu0 %3218
        %v3220 = vlaneseq
        %v3221 = vshrl.u32 %v3220, 7
        %v3222 = vadd.s32 %v3221, 8
        %3223 = vset.pattern.permute.xlu0 %v3222
        %3224 = vperm.xlu0 %3223, %v3213
        %v3225 = vpop.permute.xlu0 %3224
        %v3226 = vlaneseq
        %v3227 = vshrl.u32 %v3226, 7
        %v3228 = vadd.s32 %v3227, 16
        %3229 = vset.pattern.permute.xlu0 %v3228
        %3230 = vperm.xlu0 %3229, %v3213
        %v3231 = vpop.permute.xlu0 %3230
        %v3232 = vlaneseq
        %v3233 = vshrl.u32 %v3232, 7
        %v3234 = vadd.s32 %v3233, 24
        %3235 = vset.pattern.permute.xlu0 %v3234
        %3236 = vperm.xlu0 %3235, %v3213
        %v3237 = vpop.permute.xlu0 %3236
        %v3238 = vmul.f32 %v3219, %v2681
        %v3239 = vmul.f32 %v3219, %v2682
        %v3240 = vmul.f32 %v3219, %v2683
        %v3241 = vmul.f32 %v3219, %v2684
        %v3242 = vmul.f32 %v3219, %v2685
        %v3243 = vmul.f32 %v3219, %v2686
        %v3244 = vmul.f32 %v3219, %v2687
        %v3245 = vmul.f32 %v3219, %v2688
        %v3246 = vmul.f32 %v3219, %v2689
        %v3247 = vmul.f32 %v3219, %v2690
        %v3248 = vmul.f32 %v3219, %v2691
        %v3249 = vmul.f32 %v3219, %v2692
        %v3250 = vmul.f32 %v3219, %v2693
        %v3251 = vmul.f32 %v3219, %v2694
        %v3252 = vmul.f32 %v3219, %v2695
        %v3253 = vmul.f32 %v3219, %v2696
        %v3254 = vmul.f32 %v3225, %v2697
        %v3255 = vmul.f32 %v3225, %v2698
        %v3256 = vmul.f32 %v3225, %v2699
        %v3257 = vmul.f32 %v3225, %v2700
        %v3258 = vmul.f32 %v3225, %v2701
        %v3259 = vmul.f32 %v3225, %v2702
        %v3260 = vmul.f32 %v3225, %v2703
        %v3261 = vmul.f32 %v3225, %v2704
        %v3262 = vmul.f32 %v3225, %v2705
        %v3263 = vmul.f32 %v3225, %v2706
        %v3264 = vmul.f32 %v3225, %v2707
        %v3265 = vmul.f32 %v3225, %v2708
        %v3266 = vmul.f32 %v3225, %v2709
        %v3267 = vmul.f32 %v3225, %v2710
        %v3268 = vmul.f32 %v3225, %v2711
        %v3269 = vmul.f32 %v3225, %v2712
        %v3270 = vmul.f32 %v3231, %v2713
        %v3271 = vmul.f32 %v3231, %v2714
        %v3272 = vmul.f32 %v3231, %v2715
        %v3273 = vmul.f32 %v3231, %v2716
        %v3274 = vmul.f32 %v3231, %v2717
        %v3275 = vmul.f32 %v3231, %v2718
        %v3276 = vmul.f32 %v3231, %v2719
        %v3277 = vmul.f32 %v3231, %v2720
        %v3278 = vmul.f32 %v3231, %v2721
        %v3279 = vmul.f32 %v3231, %v2722
        %v3280 = vmul.f32 %v3231, %v2723
        %v3281 = vmul.f32 %v3231, %v2724
        %v3282 = vmul.f32 %v3231, %v2725
        %v3283 = vmul.f32 %v3231, %v2726
        %v3284 = vmul.f32 %v3231, %v2727
        %v3285 = vmul.f32 %v3231, %v2728
        %v3286 = vmul.f32 %v3237, %v2729
        %v3287 = vmul.f32 %v3237, %v2730
        %v3288 = vmul.f32 %v3237, %v2731
        %v3289 = vmul.f32 %v3237, %v2732
        %v3290 = vmul.f32 %v3237, %v2733
        %v3291 = vmul.f32 %v3237, %v2734
        %v3292 = vmul.f32 %v3237, %v2735
        %v3293 = vmul.f32 %v3237, %v2736
        %v3294 = vmul.f32 %v3237, %v2737
        %v3295 = vmul.f32 %v3237, %v2738
        %v3296 = vmul.f32 %v3237, %v2739
        %v3297 = vmul.f32 %v3237, %v2740
        %v3298 = vmul.f32 %v3237, %v2741
        %v3299 = vmul.f32 %v3237, %v2742
        %v3300 = vmul.f32 %v3237, %v2743
        %v3301 = vmul.f32 %v3237, %v2744
        %v3302 = vadd.f32 %v3238, %v3254
        %v3303 = vadd.f32 %v3302, %v3270
        %v3304 = vadd.f32 %v3303, %v3286
        %v3305 = vrot.slane %v3304, 4
        %v3306 = vadd.f32 %v3304, %v3305
        %v3307 = vrot.slane %v3306, 2
        %v3308 = vadd.f32 %v3306, %v3307
        %v3309 = vrot.slane %v3308, 1
        %v3310 = vadd.f32 %v3308, %v3309
        %v3311 = vadd.f32 %v3239, %v3255
        %v3312 = vadd.f32 %v3311, %v3271
        %v3313 = vadd.f32 %v3312, %v3287
        %v3314 = vrot.slane %v3313, 4
        %v3315 = vadd.f32 %v3313, %v3314
        %v3316 = vrot.slane %v3315, 2
        %v3317 = vadd.f32 %v3315, %v3316
        %v3318 = vrot.slane %v3317, 1
        %v3319 = vadd.f32 %v3317, %v3318
        %v3320 = vadd.f32 %v3240, %v3256
        %v3321 = vadd.f32 %v3320, %v3272
        %v3322 = vadd.f32 %v3321, %v3288
        %v3323 = vrot.slane %v3322, 4
        %v3324 = vadd.f32 %v3322, %v3323
        %v3325 = vrot.slane %v3324, 2
        %v3326 = vadd.f32 %v3324, %v3325
        %v3327 = vrot.slane %v3326, 1
        %v3328 = vadd.f32 %v3326, %v3327
        %v3329 = vadd.f32 %v3241, %v3257
        %v3330 = vadd.f32 %v3329, %v3273
        %v3331 = vadd.f32 %v3330, %v3289
        %v3332 = vrot.slane %v3331, 4
        %v3333 = vadd.f32 %v3331, %v3332
        %v3334 = vrot.slane %v3333, 2
        %v3335 = vadd.f32 %v3333, %v3334
        %v3336 = vrot.slane %v3335, 1
        %v3337 = vadd.f32 %v3335, %v3336
        %v3338 = vadd.f32 %v3242, %v3258
        %v3339 = vadd.f32 %v3338, %v3274
        %v3340 = vadd.f32 %v3339, %v3290
        %v3341 = vrot.slane %v3340, 4
        %v3342 = vadd.f32 %v3340, %v3341
        %v3343 = vrot.slane %v3342, 2
        %v3344 = vadd.f32 %v3342, %v3343
        %v3345 = vrot.slane %v3344, 1
        %v3346 = vadd.f32 %v3344, %v3345
        %v3347 = vadd.f32 %v3243, %v3259
        %v3348 = vadd.f32 %v3347, %v3275
        %v3349 = vadd.f32 %v3348, %v3291
        %v3350 = vrot.slane %v3349, 4
        %v3351 = vadd.f32 %v3349, %v3350
        %v3352 = vrot.slane %v3351, 2
        %v3353 = vadd.f32 %v3351, %v3352
        %v3354 = vrot.slane %v3353, 1
        %v3355 = vadd.f32 %v3353, %v3354
        %v3356 = vadd.f32 %v3244, %v3260
        %v3357 = vadd.f32 %v3356, %v3276
        %v3358 = vadd.f32 %v3357, %v3292
        %v3359 = vrot.slane %v3358, 4
        %v3360 = vadd.f32 %v3358, %v3359
        %v3361 = vrot.slane %v3360, 2
        %v3362 = vadd.f32 %v3360, %v3361
        %v3363 = vrot.slane %v3362, 1
        %v3364 = vadd.f32 %v3362, %v3363
        %v3365 = vadd.f32 %v3245, %v3261
        %v3366 = vadd.f32 %v3365, %v3277
        %v3367 = vadd.f32 %v3366, %v3293
        %v3368 = vrot.slane %v3367, 4
        %v3369 = vadd.f32 %v3367, %v3368
        %v3370 = vrot.slane %v3369, 2
        %v3371 = vadd.f32 %v3369, %v3370
        %v3372 = vrot.slane %v3371, 1
        %v3373 = vadd.f32 %v3371, %v3372
        %v3374 = vadd.f32 %v3246, %v3262
        %v3375 = vadd.f32 %v3374, %v3278
        %v3376 = vadd.f32 %v3375, %v3294
        %v3377 = vrot.slane %v3376, 4
        %v3378 = vadd.f32 %v3376, %v3377
        %v3379 = vrot.slane %v3378, 2
        %v3380 = vadd.f32 %v3378, %v3379
        %v3381 = vrot.slane %v3380, 1
        %v3382 = vadd.f32 %v3380, %v3381
        %v3383 = vadd.f32 %v3247, %v3263
        %v3384 = vadd.f32 %v3383, %v3279
        %v3385 = vadd.f32 %v3384, %v3295
        %v3386 = vrot.slane %v3385, 4
        %v3387 = vadd.f32 %v3385, %v3386
        %v3388 = vrot.slane %v3387, 2
        %v3389 = vadd.f32 %v3387, %v3388
        %v3390 = vrot.slane %v3389, 1
        %v3391 = vadd.f32 %v3389, %v3390
        %v3392 = vadd.f32 %v3248, %v3264
        %v3393 = vadd.f32 %v3392, %v3280
        %v3394 = vadd.f32 %v3393, %v3296
        %v3395 = vrot.slane %v3394, 4
        %v3396 = vadd.f32 %v3394, %v3395
        %v3397 = vrot.slane %v3396, 2
        %v3398 = vadd.f32 %v3396, %v3397
        %v3399 = vrot.slane %v3398, 1
        %v3400 = vadd.f32 %v3398, %v3399
        %v3401 = vadd.f32 %v3249, %v3265
        %v3402 = vadd.f32 %v3401, %v3281
        %v3403 = vadd.f32 %v3402, %v3297
        %v3404 = vrot.slane %v3403, 4
        %v3405 = vadd.f32 %v3403, %v3404
        %v3406 = vrot.slane %v3405, 2
        %v3407 = vadd.f32 %v3405, %v3406
        %v3408 = vrot.slane %v3407, 1
        %v3409 = vadd.f32 %v3407, %v3408
        %v3410 = vadd.f32 %v3250, %v3266
        %v3411 = vadd.f32 %v3410, %v3282
        %v3412 = vadd.f32 %v3411, %v3298
        %v3413 = vrot.slane %v3412, 4
        %v3414 = vadd.f32 %v3412, %v3413
        %v3415 = vrot.slane %v3414, 2
        %v3416 = vadd.f32 %v3414, %v3415
        %v3417 = vrot.slane %v3416, 1
        %v3418 = vadd.f32 %v3416, %v3417
        %v3419 = vadd.f32 %v3251, %v3267
        %v3420 = vadd.f32 %v3419, %v3283
        %v3421 = vadd.f32 %v3420, %v3299
        %v3422 = vrot.slane %v3421, 4
        %v3423 = vadd.f32 %v3421, %v3422
        %v3424 = vrot.slane %v3423, 2
        %v3425 = vadd.f32 %v3423, %v3424
        %v3426 = vrot.slane %v3425, 1
        %v3427 = vadd.f32 %v3425, %v3426
        %v3428 = vadd.f32 %v3252, %v3268
        %v3429 = vadd.f32 %v3428, %v3284
        %v3430 = vadd.f32 %v3429, %v3300
        %v3431 = vrot.slane %v3430, 4
        %v3432 = vadd.f32 %v3430, %v3431
        %v3433 = vrot.slane %v3432, 2
        %v3434 = vadd.f32 %v3432, %v3433
        %v3435 = vrot.slane %v3434, 1
        %v3436 = vadd.f32 %v3434, %v3435
        %v3437 = vadd.f32 %v3253, %v3269
        %v3438 = vadd.f32 %v3437, %v3285
        %v3439 = vadd.f32 %v3438, %v3301
        %v3440 = vrot.slane %v3439, 4
        %v3441 = vadd.f32 %v3439, %v3440
        %v3442 = vrot.slane %v3441, 2
        %v3443 = vadd.f32 %v3441, %v3442
        %v3444 = vrot.slane %v3443, 1
        %v3445 = vadd.f32 %v3443, %v3444
        %v3446 = vperm.slane %v2745, 3
        %v3447 = vlaneseq
        %v3448 = vshrl.u32 %v3447, 7
        %3450 = vset.pattern.permute.xlu0 %v3448
        %3451 = vperm.xlu0 %3450, %v3446
        %v3452 = vpop.permute.xlu0 %3451
        %v3453 = vlaneseq
        %v3454 = vshrl.u32 %v3453, 7
        %v3455 = vadd.s32 %v3454, 8
        %3456 = vset.pattern.permute.xlu0 %v3455
        %3457 = vperm.xlu0 %3456, %v3446
        %v3458 = vpop.permute.xlu0 %3457
        %v3459 = vlaneseq
        %v3460 = vshrl.u32 %v3459, 7
        %v3461 = vadd.s32 %v3460, 16
        %3462 = vset.pattern.permute.xlu0 %v3461
        %3463 = vperm.xlu0 %3462, %v3446
        %v3464 = vpop.permute.xlu0 %3463
        %v3465 = vlaneseq
        %v3466 = vshrl.u32 %v3465, 7
        %v3467 = vadd.s32 %v3466, 24
        %3468 = vset.pattern.permute.xlu0 %v3467
        %3469 = vperm.xlu0 %3468, %v3446
        %v3470 = vpop.permute.xlu0 %3469
        %v3471 = vmul.f32 %v3452, %v2681
        %v3472 = vmul.f32 %v3452, %v2682
        %v3473 = vmul.f32 %v3452, %v2683
        %v3474 = vmul.f32 %v3452, %v2684
        %v3475 = vmul.f32 %v3452, %v2685
        %v3476 = vmul.f32 %v3452, %v2686
        %v3477 = vmul.f32 %v3452, %v2687
        %v3478 = vmul.f32 %v3452, %v2688
        %v3479 = vmul.f32 %v3452, %v2689
        %v3480 = vmul.f32 %v3452, %v2690
        %v3481 = vmul.f32 %v3452, %v2691
        %v3482 = vmul.f32 %v3452, %v2692
        %v3483 = vmul.f32 %v3452, %v2693
        %v3484 = vmul.f32 %v3452, %v2694
        %v3485 = vmul.f32 %v3452, %v2695
        %v3486 = vmul.f32 %v3452, %v2696
        %v3487 = vmul.f32 %v3458, %v2697
        %v3488 = vmul.f32 %v3458, %v2698
        %v3489 = vmul.f32 %v3458, %v2699
        %v3490 = vmul.f32 %v3458, %v2700
        %v3491 = vmul.f32 %v3458, %v2701
        %v3492 = vmul.f32 %v3458, %v2702
        %v3493 = vmul.f32 %v3458, %v2703
        %v3494 = vmul.f32 %v3458, %v2704
        %v3495 = vmul.f32 %v3458, %v2705
        %v3496 = vmul.f32 %v3458, %v2706
        %v3497 = vmul.f32 %v3458, %v2707
        %v3498 = vmul.f32 %v3458, %v2708
        %v3499 = vmul.f32 %v3458, %v2709
        %v3500 = vmul.f32 %v3458, %v2710
        %v3501 = vmul.f32 %v3458, %v2711
        %v3502 = vmul.f32 %v3458, %v2712
        %v3503 = vmul.f32 %v3464, %v2713
        %v3504 = vmul.f32 %v3464, %v2714
        %v3505 = vmul.f32 %v3464, %v2715
        %v3506 = vmul.f32 %v3464, %v2716
        %v3507 = vmul.f32 %v3464, %v2717
        %v3508 = vmul.f32 %v3464, %v2718
        %v3509 = vmul.f32 %v3464, %v2719
        %v3510 = vmul.f32 %v3464, %v2720
        %v3511 = vmul.f32 %v3464, %v2721
        %v3512 = vmul.f32 %v3464, %v2722
        %v3513 = vmul.f32 %v3464, %v2723
        %v3514 = vmul.f32 %v3464, %v2724
        %v3515 = vmul.f32 %v3464, %v2725
        %v3516 = vmul.f32 %v3464, %v2726
        %v3517 = vmul.f32 %v3464, %v2727
        %v3518 = vmul.f32 %v3464, %v2728
        %v3519 = vmul.f32 %v3470, %v2729
        %v3520 = vmul.f32 %v3470, %v2730
        %v3521 = vmul.f32 %v3470, %v2731
        %v3522 = vmul.f32 %v3470, %v2732
        %v3523 = vmul.f32 %v3470, %v2733
        %v3524 = vmul.f32 %v3470, %v2734
        %v3525 = vmul.f32 %v3470, %v2735
        %v3526 = vmul.f32 %v3470, %v2736
        %v3527 = vmul.f32 %v3470, %v2737
        %v3528 = vmul.f32 %v3470, %v2738
        %v3529 = vmul.f32 %v3470, %v2739
        %v3530 = vmul.f32 %v3470, %v2740
        %v3531 = vmul.f32 %v3470, %v2741
        %v3532 = vmul.f32 %v3470, %v2742
        %v3533 = vmul.f32 %v3470, %v2743
        %v3534 = vmul.f32 %v3470, %v2744
        %v3535 = vadd.f32 %v3471, %v3487
        %v3536 = vadd.f32 %v3535, %v3503
        %v3537 = vadd.f32 %v3536, %v3519
        %v3538 = vrot.slane %v3537, 4
        %v3539 = vadd.f32 %v3537, %v3538
        %v3540 = vrot.slane %v3539, 2
        %v3541 = vadd.f32 %v3539, %v3540
        %v3542 = vrot.slane %v3541, 1
        %v3543 = vadd.f32 %v3541, %v3542
        %v3544 = vadd.f32 %v3472, %v3488
        %v3545 = vadd.f32 %v3544, %v3504
        %v3546 = vadd.f32 %v3545, %v3520
        %v3547 = vrot.slane %v3546, 4
        %v3548 = vadd.f32 %v3546, %v3547
        %v3549 = vrot.slane %v3548, 2
        %v3550 = vadd.f32 %v3548, %v3549
        %v3551 = vrot.slane %v3550, 1
        %v3552 = vadd.f32 %v3550, %v3551
        %v3553 = vadd.f32 %v3473, %v3489
        %v3554 = vadd.f32 %v3553, %v3505
        %v3555 = vadd.f32 %v3554, %v3521
        %v3556 = vrot.slane %v3555, 4
        %v3557 = vadd.f32 %v3555, %v3556
        %v3558 = vrot.slane %v3557, 2
        %v3559 = vadd.f32 %v3557, %v3558
        %v3560 = vrot.slane %v3559, 1
        %v3561 = vadd.f32 %v3559, %v3560
        %v3562 = vadd.f32 %v3474, %v3490
        %v3563 = vadd.f32 %v3562, %v3506
        %v3564 = vadd.f32 %v3563, %v3522
        %v3565 = vrot.slane %v3564, 4
        %v3566 = vadd.f32 %v3564, %v3565
        %v3567 = vrot.slane %v3566, 2
        %v3568 = vadd.f32 %v3566, %v3567
        %v3569 = vrot.slane %v3568, 1
        %v3570 = vadd.f32 %v3568, %v3569
        %v3571 = vadd.f32 %v3475, %v3491
        %v3572 = vadd.f32 %v3571, %v3507
        %v3573 = vadd.f32 %v3572, %v3523
        %v3574 = vrot.slane %v3573, 4
        %v3575 = vadd.f32 %v3573, %v3574
        %v3576 = vrot.slane %v3575, 2
        %v3577 = vadd.f32 %v3575, %v3576
        %v3578 = vrot.slane %v3577, 1
        %v3579 = vadd.f32 %v3577, %v3578
        %v3580 = vadd.f32 %v3476, %v3492
        %v3581 = vadd.f32 %v3580, %v3508
        %v3582 = vadd.f32 %v3581, %v3524
        %v3583 = vrot.slane %v3582, 4
        %v3584 = vadd.f32 %v3582, %v3583
        %v3585 = vrot.slane %v3584, 2
        %v3586 = vadd.f32 %v3584, %v3585
        %v3587 = vrot.slane %v3586, 1
        %v3588 = vadd.f32 %v3586, %v3587
        %v3589 = vadd.f32 %v3477, %v3493
        %v3590 = vadd.f32 %v3589, %v3509
        %v3591 = vadd.f32 %v3590, %v3525
        %v3592 = vrot.slane %v3591, 4
        %v3593 = vadd.f32 %v3591, %v3592
        %v3594 = vrot.slane %v3593, 2
        %v3595 = vadd.f32 %v3593, %v3594
        %v3596 = vrot.slane %v3595, 1
        %v3597 = vadd.f32 %v3595, %v3596
        %v3598 = vadd.f32 %v3478, %v3494
        %v3599 = vadd.f32 %v3598, %v3510
        %v3600 = vadd.f32 %v3599, %v3526
        %v3601 = vrot.slane %v3600, 4
        %v3602 = vadd.f32 %v3600, %v3601
        %v3603 = vrot.slane %v3602, 2
        %v3604 = vadd.f32 %v3602, %v3603
        %v3605 = vrot.slane %v3604, 1
        %v3606 = vadd.f32 %v3604, %v3605
        %v3607 = vadd.f32 %v3479, %v3495
        %v3608 = vadd.f32 %v3607, %v3511
        %v3609 = vadd.f32 %v3608, %v3527
        %v3610 = vrot.slane %v3609, 4
        %v3611 = vadd.f32 %v3609, %v3610
        %v3612 = vrot.slane %v3611, 2
        %v3613 = vadd.f32 %v3611, %v3612
        %v3614 = vrot.slane %v3613, 1
        %v3615 = vadd.f32 %v3613, %v3614
        %v3616 = vadd.f32 %v3480, %v3496
        %v3617 = vadd.f32 %v3616, %v3512
        %v3618 = vadd.f32 %v3617, %v3528
        %v3619 = vrot.slane %v3618, 4
        %v3620 = vadd.f32 %v3618, %v3619
        %v3621 = vrot.slane %v3620, 2
        %v3622 = vadd.f32 %v3620, %v3621
        %v3623 = vrot.slane %v3622, 1
        %v3624 = vadd.f32 %v3622, %v3623
        %v3625 = vadd.f32 %v3481, %v3497
        %v3626 = vadd.f32 %v3625, %v3513
        %v3627 = vadd.f32 %v3626, %v3529
        %v3628 = vrot.slane %v3627, 4
        %v3629 = vadd.f32 %v3627, %v3628
        %v3630 = vrot.slane %v3629, 2
        %v3631 = vadd.f32 %v3629, %v3630
        %v3632 = vrot.slane %v3631, 1
        %v3633 = vadd.f32 %v3631, %v3632
        %v3634 = vadd.f32 %v3482, %v3498
        %v3635 = vadd.f32 %v3634, %v3514
        %v3636 = vadd.f32 %v3635, %v3530
        %v3637 = vrot.slane %v3636, 4
        %v3638 = vadd.f32 %v3636, %v3637
        %v3639 = vrot.slane %v3638, 2
        %v3640 = vadd.f32 %v3638, %v3639
        %v3641 = vrot.slane %v3640, 1
        %v3642 = vadd.f32 %v3640, %v3641
        %v3643 = vadd.f32 %v3483, %v3499
        %v3644 = vadd.f32 %v3643, %v3515
        %v3645 = vadd.f32 %v3644, %v3531
        %v3646 = vrot.slane %v3645, 4
        %v3647 = vadd.f32 %v3645, %v3646
        %v3648 = vrot.slane %v3647, 2
        %v3649 = vadd.f32 %v3647, %v3648
        %v3650 = vrot.slane %v3649, 1
        %v3651 = vadd.f32 %v3649, %v3650
        %v3652 = vadd.f32 %v3484, %v3500
        %v3653 = vadd.f32 %v3652, %v3516
        %v3654 = vadd.f32 %v3653, %v3532
        %v3655 = vrot.slane %v3654, 4
        %v3656 = vadd.f32 %v3654, %v3655
        %v3657 = vrot.slane %v3656, 2
        %v3658 = vadd.f32 %v3656, %v3657
        %v3659 = vrot.slane %v3658, 1
        %v3660 = vadd.f32 %v3658, %v3659
        %v3661 = vadd.f32 %v3485, %v3501
        %v3662 = vadd.f32 %v3661, %v3517
        %v3663 = vadd.f32 %v3662, %v3533
        %v3664 = vrot.slane %v3663, 4
        %v3665 = vadd.f32 %v3663, %v3664
        %v3666 = vrot.slane %v3665, 2
        %v3667 = vadd.f32 %v3665, %v3666
        %v3668 = vrot.slane %v3667, 1
        %v3669 = vadd.f32 %v3667, %v3668
        %v3670 = vadd.f32 %v3486, %v3502
        %v3671 = vadd.f32 %v3670, %v3518
        %v3672 = vadd.f32 %v3671, %v3534
        %v3673 = vrot.slane %v3672, 4
        %v3674 = vadd.f32 %v3672, %v3673
        %v3675 = vrot.slane %v3674, 2
        %v3676 = vadd.f32 %v3674, %v3675
        %v3677 = vrot.slane %v3676, 1
        %v3678 = vadd.f32 %v3676, %v3677
        %vm3679 = vcmask 1040384
        %v3680 = vsel %vm3679, %v2844, %v3077
        %v3681 = vsel %vm3679, %v2853, %v3086
        %v3682 = vsel %vm3679, %v2862, %v3095
        %v3683 = vsel %vm3679, %v2871, %v3104
        %v3684 = vsel %vm3679, %v2880, %v3113
        %v3685 = vsel %vm3679, %v2889, %v3122
        %v3686 = vsel %vm3679, %v2898, %v3131
        %v3687 = vsel %vm3679, %v2907, %v3140
        %v3688 = vsel %vm3679, %v2916, %v3149
        %v3689 = vsel %vm3679, %v2925, %v3158
        %v3690 = vsel %vm3679, %v2934, %v3167
        %v3691 = vsel %vm3679, %v2943, %v3176
        %v3692 = vsel %vm3679, %v2952, %v3185
        %v3693 = vsel %vm3679, %v2961, %v3194
        %v3694 = vsel %vm3679, %v2970, %v3203
        %v3695 = vsel %vm3679, %v2979, %v3212
        %vm3696 = vcmask 1041408
        %v3697 = vsel %vm3696, %v3680, %v3310
        %v3698 = vsel %vm3696, %v3681, %v3319
        %v3699 = vsel %vm3696, %v3682, %v3328
        %v3700 = vsel %vm3696, %v3683, %v3337
        %v3701 = vsel %vm3696, %v3684, %v3346
        %v3702 = vsel %vm3696, %v3685, %v3355
        %v3703 = vsel %vm3696, %v3686, %v3364
        %v3704 = vsel %vm3696, %v3687, %v3373
        %v3705 = vsel %vm3696, %v3688, %v3382
        %v3706 = vsel %vm3696, %v3689, %v3391
        %v3707 = vsel %vm3696, %v3690, %v3400
        %v3708 = vsel %vm3696, %v3691, %v3409
        %v3709 = vsel %vm3696, %v3692, %v3418
        %v3710 = vsel %vm3696, %v3693, %v3427
        %v3711 = vsel %vm3696, %v3694, %v3436
        %v3712 = vsel %vm3696, %v3695, %v3445
        %vm3713 = vcmask 1042432
        %v3714 = vsel %vm3713, %v3697, %v3543
        %v3715 = vsel %vm3713, %v3698, %v3552
        %v3716 = vsel %vm3713, %v3699, %v3561
        %v3717 = vsel %vm3713, %v3700, %v3570
        %v3718 = vsel %vm3713, %v3701, %v3579
        %v3719 = vsel %vm3713, %v3702, %v3588
        %v3720 = vsel %vm3713, %v3703, %v3597
        %v3721 = vsel %vm3713, %v3704, %v3606
        %v3722 = vsel %vm3713, %v3705, %v3615
        %v3723 = vsel %vm3713, %v3706, %v3624
        %v3724 = vsel %vm3713, %v3707, %v3633
        %v3725 = vsel %vm3713, %v3708, %v3642
        %v3726 = vsel %vm3713, %v3709, %v3651
        %v3727 = vsel %vm3713, %v3710, %v3660
        %v3728 = vsel %vm3713, %v3711, %v3669
        %v3729 = vsel %vm3713, %v3712, %v3678
        %3731 = vset.pattern.permute.xlu0 0
        %3732 = vperm.xlu0 %3731, %v2746
        %v3733 = vpop.permute.xlu0 %3732
        %v3735 = vadd.f32 %v3714, %v3733
        %v3736 = vadd.f32 %v3715, %v3733
        %v3737 = vadd.f32 %v3716, %v3733
        %v3738 = vadd.f32 %v3717, %v3733
        %v3739 = vadd.f32 %v3718, %v3733
        %v3740 = vadd.f32 %v3719, %v3733
        %v3741 = vadd.f32 %v3720, %v3733
        %v3742 = vadd.f32 %v3721, %v3733
        %v3743 = vadd.f32 %v3722, %v3733
        %v3744 = vadd.f32 %v3723, %v3733
        %v3745 = vadd.f32 %v3724, %v3733
        %v3746 = vadd.f32 %v3725, %v3733
        %v3747 = vadd.f32 %v3726, %v3733
        %v3748 = vadd.f32 %v3727, %v3733
        %v3749 = vadd.f32 %v3728, %v3733
        %v3750 = vadd.f32 %v3729, %v3733
        %v3767 = vrot.slane %v3736, 4
        %v3768 = vrot.slane %v3738, 4
        %v3769 = vrot.slane %v3740, 4
        %v3770 = vrot.slane %v3742, 4
        %v3771 = vrot.slane %v3744, 4
        %v3772 = vrot.slane %v3746, 4
        %v3773 = vrot.slane %v3748, 4
        %v3774 = vrot.slane %v3750, 4
        %vm3775 = vcmask 1043456
        %v3776 = vsel %vm3775, %v3735, %v3767
        %v3777 = vsel %vm3775, %v3737, %v3768
        %v3778 = vsel %vm3775, %v3739, %v3769
        %v3779 = vsel %vm3775, %v3741, %v3770
        %v3780 = vsel %vm3775, %v3743, %v3771
        %v3781 = vsel %vm3775, %v3745, %v3772
        %v3782 = vsel %vm3775, %v3747, %v3773
        %v3783 = vsel %vm3775, %v3749, %v3774
        %3792 = vst [vmem:[%s269] sm:$0xff] %v3776
        %3793 = vst [vmem:[%s269 + $0x8] sm:$0xff] %v3777
        %3794 = vst [vmem:[%s269 + $0x10] sm:$0xff] %v3778
        %3795 = vst [vmem:[%s269 + $0x18] sm:$0xff] %v3779
        %3796 = vst [vmem:[%s269 + $0x20] sm:$0xff] %v3780
        %3797 = vst [vmem:[%s269 + $0x28] sm:$0xff] %v3781
        %3798 = vst [vmem:[%s269 + $0x30] sm:$0xff] %v3782
        %3799 = vst [vmem:[%s269 + $0x38] sm:$0xff] %v3783
        %s3800 = sand.u32 %s162, 1
        %s3801 = scalar_lea.sflag [#allocation4], %s3800
        %s3802 = sand.u32 %s162, 1
        %s3803 = smul.addr %s3802, 64
        %s3804 = scalar_lea.vmem [#allocation5], %s3803
        // Predicated region
        $region49: #{tpu_custom_call.1} parent=43 // pred_check
          %p3805 = pneg %p172
        $region50: #{tpu_custom_call.1} parent=43 // pred_check_branch
          %3807 = sbr.rel (%p3805) target = $region52
        $region51: #{tpu_custom_call.1} parent=43 // pred_region
          %s3808 = smul.u32 16, %s23
          %3810 = vsyncadd %s3801, 0
          %s3811 = smul.addr %s3808, 4
          %s3812 = scalar_lea.hbm %s6, %s3811
          %s3814 = sshll.u32 %s3804, 4
          %s3815 = int_to_ptr.vmem [resolvable:$true] %s3814
          %s3816 = sshll.u32 %s3812, 4
          %s3817 = int_to_ptr.hbm [resolvable:$true] %s3816
          %3819 = dma.vmem_to_hbm [thread:$0]  %s3815, 1024, %s3817, %s3801
        $region52: #{tpu_custom_call.1} parent=43 // pred_fallthru
          _
      $region44: #{tpu_custom_call.1} parent=5 // pred_fallthru
        _
      %p3820 = scmp.le.s32.totalorder 2, %s18
      // Predicated region
      $region53: #{tpu_custom_call.1} parent=5 // pred_check
        %p3821 = pneg %p3820
      $region54: #{tpu_custom_call.1} parent=5 // pred_check_branch
        %3823 = sbr.rel (%p3821) target = $region56
      $region55: #{tpu_custom_call.1} parent=5 // pred_region
        %s3824 = ssub.s32 %s18, 2
        // Predicated region
        $region57: #{tpu_custom_call.1} parent=55 // pred_check
          %p3825 = pneg %p178
        $region58: #{tpu_custom_call.1} parent=55 // pred_check_branch
          %3827 = sbr.rel (%p3825) target = $region60
        $region59: #{tpu_custom_call.1} parent=55 // pred_region
          %s3828 = sand.u32 %s163, 1
          %s3829 = scalar_lea.sflag [#allocation4], %s3828
          %s3830 = sand.u32 %s163, 1
          %s3831 = smul.addr %s3830, 64
          %s3832 = scalar_lea.vmem [#allocation5], %s3831
          %3834 = dma.done %s3829, 1024
        $region60: #{tpu_custom_call.1} parent=55 // pred_fallthru
          _
      $region56: #{tpu_custom_call.1} parent=5 // pred_fallthru
        _
    $region6: #{tpu_custom_call.1} parent=1 // loop_footer
      %s22 = sadd.s32 1, %s18
    $region7: #{tpu_custom_call.1} parent=1 // loop_footer_branch
      %17 = sbr.rel target = $region3
    $region8: #{tpu_custom_call.1} parent=1 // loop_exit
      _
    %3835 = vsyncpa [#allocation3], 1
    %s3836 = scalar_lea.sflag [#allocation3], 1
    %3837 = vsyncpa %s3836, 1
    %3838 = vsyncpa [#allocation4], 1
    %s3839 = scalar_lea.sflag [#allocation4], 1
    %3840 = vsyncpa %s3839, 1

</llo_original>
